<compile_context>
chip_gen: v5e
topology: v5e:2x2
jax: 0.10.0
libtpu: 0.0.40
codegen_flags: <defaults>
</compile_context>

<pallas_src>
import functools

import jax
import jax.numpy as jnp
from jax.experimental import pallas as pl
from jax.experimental.pallas import tpu as pltpu

LANE = 128


def _round_up(n, m):
    return (n + m - 1) // m * m


@functools.partial(jax.jit, static_argnames=("compute_dtype",))
def residual_forward(x_nchw, p, *, compute_dtype=jnp.float32):
    """x_nchw: (B, Cin, H, W) float32 -> (B, Cout, H, W) float32."""
    cdt = compute_dtype
    x = jnp.transpose(x_nchw, (0, 2, 3, 1))            # NCHW -> NHWC
    B, H, W, Cin = x.shape
    Cmid = p["w1"].shape[1]
    Cout = p["w2"].shape[1]

    # ---- lane density: pad all channel axes up to a multiple of 128 --------
    Cin_p, Cmid_p, Cout_p = (_round_up(c, LANE) for c in (Cin, Cmid, Cout))

    def padc(a, *tgt):                 # zero-pad each axis up to target size
        pads = tuple((0, t - s) for s, t in zip(a.shape, tgt))
        return jnp.pad(a, pads)

    # ---- fold conv biases into the *following* folded-BN constants ---------
    #   BN2(conv1(h)) = s2*(h@W1) + (b2 + s2*c1b)
    #   BN3(conv3(h)) = s3*conv3(h) + (b3 + s3*c3b)
    s1 = padc(p["s1"], 1, Cin_p)
    b1 = padc(p["b1"], 1, Cin_p)
    s2 = padc(p["s2"], 1, Cmid_p)
    b2 = padc(p["b2"] + p["s2"] * p["c1b"], 1, Cmid_p)
    s3 = padc(p["s3"], 1, Cmid_p)
    b3 = padc(p["b3"] + p["s3"] * p["c3b"], 1, Cmid_p)
    c2b = padc(p["c2b"], 1, Cout_p)
    bsk = padc(p["bsk"], 1, Cout_p)

    w1 = padc(p["w1"], Cin_p, Cmid_p).astype(cdt)
    w3 = padc(p["w3"], 3, 3, Cmid_p, Cmid_p).astype(cdt)
    w2 = padc(p["w2"], Cmid_p, Cout_p).astype(cdt)
    wsk = padc(p["wsk"], Cin_p, Cout_p).astype(cdt)

    x_p = padc(x, B, H, W, Cin_p).astype(cdt)

    # ---- flattened, row-padded scratch geometry for the 3x3 conv -----------
    # Image pixel (y, x) lives at scratch row B0 + y*W + x.  Tap (dy, dx) of
    # every output pixel is then a single contiguous slice at static offset
    # dy*W + dx; vertical padding is handled by zeroed top/bottom regions and
    # horizontal wrap-around by the masks inside the kernel.
    HW = H * W
    B0 = W + 8                      # first interior row (aligned when W % 8 == 0)
    NFLAT = HW + 2 * W + 16         # >= B0 + HW + W + 1 (max tap-slice end)

    def kernel(x_ref, s1_r, b1_r, w1_r, s2_r, b2_r, w3_r, s3_r, b3_r,
               w2_r, c2b_r, wsk_r, bsk_r, out_ref, flat_ref):
        f32 = jnp.float32
        xf = x_ref[...].reshape(HW, Cin_p)              # compute dtype
        x32 = xf.astype(f32)

        # BN1 + ReLU (inference BN, folded)
        h1 = jnp.maximum(x32 * s1_r[...] + b1_r[...], 0.0)

        # 1x1 conv Cin -> Cmid (its bias is folded into b2)
        g1 = jnp.dot(h1.astype(cdt), w1_r[...], preferred_element_type=f32)

        # BN2 + ReLU
        h2 = jnp.maximum(g1 * s2_r[...] + b2_r[...], 0.0)

        # ---- 3x3 conv, stride 1, pad 1 -------------------------------------
        # Zero only the halo rows (cheap; redone every step so it stays correct
        # when the "parallel" batch axis is split across TensorCores).
        flat_ref[0:B0, :] = jnp.zeros((B0, Cmid_p), cdt)
        flat_ref[B0 + HW:NFLAT, :] = jnp.zeros((NFLAT - B0 - HW, Cmid_p), cdt)
        flat_ref[B0:B0 + HW, :] = h2.astype(cdt)

        xcol = jax.lax.broadcasted_iota(jnp.int32, (H, W, Cmid_p), 1)
        xcol = xcol.reshape(HW, Cmid_p)
        not_left = xcol != 0           # kills wrapped reads for taps with dx = -1
        not_right = xcol != W - 1      # kills wrapped reads for taps with dx = +1

        acc = None
        for ky in range(3):
            for kx in range(3):
                start = B0 + (ky - 1) * W + (kx - 1)
                win = flat_ref[start:start + HW, :]     # contiguous 2-D slice
                if kx == 0:
                    win = jnp.where(not_left, win, jnp.zeros_like(win))
                elif kx == 2:
                    win = jnp.where(not_right, win, jnp.zeros_like(win))
                t = jnp.dot(win, w3_r[ky, kx], preferred_element_type=f32)
                acc = t if acc is None else acc + t

        # BN3 + ReLU (3x3 conv bias folded into b3)
        h3 = jnp.maximum(acc * s3_r[...] + b3_r[...], 0.0)

        # 1x1 conv Cmid -> Cout
        h4 = jnp.dot(h3.astype(cdt), w2_r[...],
                     preferred_element_type=f32) + c2b_r[...]

        # skip path: 1x1 conv Cin -> Cout on raw x, then ReLU
        sk = jnp.dot(xf, wsk_r[...], preferred_element_type=f32) + bsk_r[...]
        sk = jnp.maximum(sk, 0.0)

        out_ref[...] = (h4 + sk).reshape(H, W, Cout_p).astype(out_ref.dtype)

    def cspec(shape):                   # constant (grid-invariant) operand
        zeros = (0,) * len(shape)
        return pl.BlockSpec(shape, lambda b: zeros)

    x_spec = pl.BlockSpec((pl.Squeezed(), H, W, Cin_p), lambda b: (b, 0, 0, 0))
    out_spec = pl.BlockSpec((pl.Squeezed(), H, W, Cout_p), lambda b: (b, 0, 0, 0))

    in_specs = [
        x_spec,
        cspec((1, Cin_p)), cspec((1, Cin_p)),            # BN1
        cspec((Cin_p, Cmid_p)),                          # conv1 (1x1)
        cspec((1, Cmid_p)), cspec((1, Cmid_p)),          # BN2 (conv1 bias folded)
        cspec((3, 3, Cmid_p, Cmid_p)),                   # conv3x3
        cspec((1, Cmid_p)), cspec((1, Cmid_p)),          # BN3 (conv3 bias folded)
        cspec((Cmid_p, Cout_p)), cspec((1, Cout_p)),     # conv2 (1x1)
        cspec((Cin_p, Cout_p)), cspec((1, Cout_p)),      # skip conv (1x1)
    ]

    # TODO(synk): for realistic hourglass sizes on v7x (64 MiB VMEM, 2 TCs), add
    # a second "parallel" grid axis tiling H (1-row halo) and single-buffer the
    # constant weight specs (pipeline_mode=pl.Buffered(1)) to shrink VMEM.
    out_p = pl.pallas_call(
        kernel,
        out_shape=jax.ShapeDtypeStruct((B, H, W, Cout_p), cdt),
        grid_spec=pltpu.PrefetchScalarGridSpec(
            num_scalar_prefetch=0,
            grid=(B,),
            in_specs=in_specs,
            out_specs=out_spec,
            scratch_shapes=[pltpu.VMEM((NFLAT, Cmid_p), cdt)],
        ),
        compiler_params=pltpu.CompilerParams(
            dimension_semantics=("parallel",),
            vmem_limit_bytes=32 * 1024 * 1024,
        ),
    )(x_p, s1, b1, w1, s2, b2, w3, s3, b3, w2, c2b, wsk, bsk)

    out = out_p[..., :Cout].astype(jnp.float32)          # drop channel padding
    return jnp.transpose(out, (0, 3, 1, 2))              # NHWC -> NCHW


def init_params(key, ins, outs):
    """Deterministic synthetic parameters (BN folded to scale/bias)."""
    mid = outs // 2
    ks = jax.random.split(key, 10)

    def bn_fold(k, c):
        kg, kb, km, kv = jax.random.split(k, 4)
        gamma = jax.random.uniform(kg, (c,), minval=0.5, maxval=1.5)
        beta = 0.1 * jax.random.normal(kb, (c,))
        mean = 0.1 * jax.random.normal(km, (c,))
        var = jax.random.uniform(kv, (c,), minval=0.5, maxval=1.5)
        scale = gamma / jnp.sqrt(var + 1e-5)
        bias = beta - mean * scale
        return (scale.reshape(1, c).astype(jnp.float32),
                bias.reshape(1, c).astype(jnp.float32))

    def conv_w(k, cin, cout, kh=1, kw=1):
        fan_in = cin * kh * kw
        return jax.random.normal(k, (kh, kw, cin, cout), jnp.float32) / jnp.sqrt(fan_in)

    s1, b1 = bn_fold(ks[0], ins)
    s2, b2 = bn_fold(ks[1], mid)
    s3, b3 = bn_fold(ks[2], mid)

    w1 = conv_w(ks[3], ins, mid)[0, 0]                    # (ins, mid)
    c1b = (0.05 * jax.random.normal(ks[4], (mid,))).reshape(1, mid).astype(jnp.float32)
    w3 = conv_w(ks[5], mid, mid, 3, 3)                    # (3, 3, mid, mid)
    c3b = (0.05 * jax.random.normal(ks[6], (mid,))).reshape(1, mid).astype(jnp.float32)
    w2 = conv_w(ks[7], mid, outs)[0, 0]                   # (mid, outs)
    c2b = (0.05 * jax.random.normal(ks[8], (outs,))).reshape(1, outs).astype(jnp.float32)
    wsk = conv_w(ks[9], ins, outs)[0, 0]                  # (ins, outs)
    bsk = jnp.zeros((1, outs), jnp.float32)

    return dict(s1=s1, b1=b1, w1=w1, c1b=c1b, s2=s2, b2=b2,
                w3=w3, c3b=c3b, s3=s3, b3=b3, w2=w2, c2b=c2b,
                wsk=wsk, bsk=bsk)


def residual_ref(x_nchw, p):
    """Pure-JAX reference (f32, unpadded) for verification."""
    x = jnp.transpose(x_nchw, (0, 2, 3, 1)).astype(jnp.float32)
    h = jnp.maximum(x * p['s1'][0] + p['b1'][0], 0.0)
    h = jnp.einsum('bhwc,cd->bhwd', h, p['w1']) + p['c1b'][0]
    h = jnp.maximum(h * p['s2'][0] + p['b2'][0], 0.0)
    h = jax.lax.conv_general_dilated(
        h, p['w3'], window_strides=(1, 1), padding='SAME',
        dimension_numbers=('NHWC', 'HWIO', 'NHWC')) + p['c3b'][0]
    h = jnp.maximum(h * p['s3'][0] + p['b3'][0], 0.0)
    h = jnp.einsum('bhwc,cd->bhwd', h, p['w2']) + p['c2b'][0]
    skip = jnp.einsum('bhwc,cd->bhwd', x, p['wsk']) + p['bsk'][0]
    skip = jnp.maximum(skip, 0.0)
    out = h + skip
    return jnp.transpose(out, (0, 3, 1, 2))


if __name__ == "__main__":
    key = jax.random.PRNGKey(0)
    k_x, k_p = jax.random.split(key)

    B, INS, OUTS, H, W = 2, 4, 8, 16, 16
    x = jax.random.normal(k_x, (B, INS, H, W), jnp.float32)   # NCHW like PyTorch
    params = init_params(k_p, INS, OUTS)

    ref = residual_ref(x, params)

    # f32 compute path: must match the reference tightly.
    out = jax.block_until_ready(residual_forward(x, params))
    assert out.shape == (B, OUTS, H, W), out.shape
    assert jnp.allclose(out, ref, atol=1e-4, rtol=1e-4), \
        float(jnp.max(jnp.abs(out - ref)))

    # bf16 MXU/DMA path (v5e/v6e bandwidth + MXU win): loose tolerance.
    out_bf16 = jax.block_until_ready(
        residual_forward(x, params, compute_dtype=jnp.bfloat16))
    assert out_bf16.shape == (B, OUTS, H, W), out_bf16.shape
    assert jnp.allclose(out_bf16, ref, atol=0.25, rtol=0.1), \
        float(jnp.max(jnp.abs(out_bf16 - ref)))

    print("KERNEL_OK")
</pallas_src>

<mosaic_0001>
module attributes {stable_mosaic.version = 11 : i64} {
  func.func @kernel(%arg0: i32, %arg1: memref<1x16x16x128xf32, #tpu.memory_space<vmem>>, %arg2: memref<1x128xf32, #tpu.memory_space<vmem>>, %arg3: memref<1x128xf32, #tpu.memory_space<vmem>>, %arg4: memref<128x128xf32, #tpu.memory_space<vmem>>, %arg5: memref<1x128xf32, #tpu.memory_space<vmem>>, %arg6: memref<1x128xf32, #tpu.memory_space<vmem>>, %arg7: memref<3x3x128x128xf32, #tpu.memory_space<vmem>>, %arg8: memref<1x128xf32, #tpu.memory_space<vmem>>, %arg9: memref<1x128xf32, #tpu.memory_space<vmem>>, %arg10: memref<128x128xf32, #tpu.memory_space<vmem>>, %arg11: memref<1x128xf32, #tpu.memory_space<vmem>>, %arg12: memref<128x128xf32, #tpu.memory_space<vmem>>, %arg13: memref<1x128xf32, #tpu.memory_space<vmem>>, %arg14: memref<1x16x16x128xf32, #tpu.memory_space<vmem>>, %arg15: memref<304x128xf32, #tpu.memory_space<vmem>>) attributes {dimension_semantics = [#tpu.dimension_semantics<parallel>], iteration_bounds = array<i64: 2>, scalar_prefetch = 0 : i64, scratch_operands = 1 : i64, tpu.core_type = #tpu.core_type<tc>, window_params = [{transform_indices = @transform_0, window_bounds = array<i64: 1, 16, 16, 128>}, {pipeline_mode = #tpu.pipeline_mode<synchronous>, transform_indices = @transform_1, window_bounds = array<i64: 1, 128>}, {pipeline_mode = #tpu.pipeline_mode<synchronous>, transform_indices = @transform_2, window_bounds = array<i64: 1, 128>}, {pipeline_mode = #tpu.pipeline_mode<synchronous>, transform_indices = @transform_3, window_bounds = array<i64: 128, 128>}, {pipeline_mode = #tpu.pipeline_mode<synchronous>, transform_indices = @transform_4, window_bounds = array<i64: 1, 128>}, {pipeline_mode = #tpu.pipeline_mode<synchronous>, transform_indices = @transform_5, window_bounds = array<i64: 1, 128>}, {pipeline_mode = #tpu.pipeline_mode<synchronous>, transform_indices = @transform_6, window_bounds = array<i64: 3, 3, 128, 128>}, {pipeline_mode = #tpu.pipeline_mode<synchronous>, transform_indices = @transform_7, window_bounds = array<i64: 1, 128>}, {pipeline_mode = #tpu.pipeline_mode<synchronous>, transform_indices = @transform_8, window_bounds = array<i64: 1, 128>}, {pipeline_mode = #tpu.pipeline_mode<synchronous>, transform_indices = @transform_9, window_bounds = array<i64: 128, 128>}, {pipeline_mode = #tpu.pipeline_mode<synchronous>, transform_indices = @transform_10, window_bounds = array<i64: 1, 128>}, {pipeline_mode = #tpu.pipeline_mode<synchronous>, transform_indices = @transform_11, window_bounds = array<i64: 128, 128>}, {pipeline_mode = #tpu.pipeline_mode<synchronous>, transform_indices = @transform_12, window_bounds = array<i64: 1, 128>}, {transform_indices = @transform_13, window_bounds = array<i64: 1, 16, 16, 128>}]} {
    %c0 = arith.constant 0 : index
    %c0_0 = arith.constant 0 : index
    %c0_1 = arith.constant 0 : index
    %c0_2 = arith.constant 0 : index
    %0 = vector.load %arg1[%c0, %c0_0, %c0_1, %c0_2] : memref<1x16x16x128xf32, #tpu.memory_space<vmem>>, vector<1x16x16x128xf32>
    %1 = vector.shape_cast %0 : vector<1x16x16x128xf32> to vector<16x16x128xf32>
    %2 = vector.shape_cast %1 : vector<16x16x128xf32> to vector<256x128xf32>
    %c0_3 = arith.constant 0 : index
    %c0_4 = arith.constant 0 : index
    %3 = vector.load %arg2[%c0_3, %c0_4] : memref<1x128xf32, #tpu.memory_space<vmem>>, vector<1x128xf32>
    %4 = vector.broadcast %3 : vector<1x128xf32> to vector<256x128xf32>
    %5 = arith.mulf %2, %4 : vector<256x128xf32>
    %c0_5 = arith.constant 0 : index
    %c0_6 = arith.constant 0 : index
    %6 = vector.load %arg3[%c0_5, %c0_6] : memref<1x128xf32, #tpu.memory_space<vmem>>, vector<1x128xf32>
    %7 = vector.broadcast %6 : vector<1x128xf32> to vector<256x128xf32>
    %8 = arith.addf %5, %7 : vector<256x128xf32>
    %cst = arith.constant 0.000000e+00 : f32
    %9 = vector.broadcast %cst : f32 to vector<256x128xf32>
    %10 = arith.maximumf %8, %9 : vector<256x128xf32>
    %c0_7 = arith.constant 0 : index
    %c0_8 = arith.constant 0 : index
    %11 = vector.load %arg4[%c0_7, %c0_8] : memref<128x128xf32, #tpu.memory_space<vmem>>, vector<128x128xf32>
    %cst_9 = arith.constant dense<0.000000e+00> : vector<256x128xf32>
    %12 = tpu.matmul %10, %11, %cst_9 {dimension_numbers = #tpu.dot_dimension_numbers<[1], [0], [0], [1], [0, 0, 1, 1], [], []>} : vector<256x128xf32>, vector<128x128xf32>, vector<256x128xf32> -> vector<256x128xf32>
    %c0_10 = arith.constant 0 : index
    %c0_11 = arith.constant 0 : index
    %13 = vector.load %arg5[%c0_10, %c0_11] : memref<1x128xf32, #tpu.memory_space<vmem>>, vector<1x128xf32>
    %14 = vector.broadcast %13 : vector<1x128xf32> to vector<256x128xf32>
    %15 = arith.mulf %12, %14 : vector<256x128xf32>
    %c0_12 = arith.constant 0 : index
    %c0_13 = arith.constant 0 : index
    %16 = vector.load %arg6[%c0_12, %c0_13] : memref<1x128xf32, #tpu.memory_space<vmem>>, vector<1x128xf32>
    %17 = vector.broadcast %16 : vector<1x128xf32> to vector<256x128xf32>
    %18 = arith.addf %15, %17 : vector<256x128xf32>
    %cst_14 = arith.constant 0.000000e+00 : f32
    %19 = vector.broadcast %cst_14 : f32 to vector<256x128xf32>
    %20 = arith.maximumf %18, %19 : vector<256x128xf32>
    %cst_15 = arith.constant 0.000000e+00 : f32
    %21 = vector.broadcast %cst_15 : f32 to vector<24x128xf32>
    %c0_16 = arith.constant 0 : index
    %c0_17 = arith.constant 0 : index
    %22 = vector.load %arg15[%c0_16, %c0_17] : memref<304x128xf32, #tpu.memory_space<vmem>>, vector<24x128xf32>
    tpu.vector_store %arg15[%c0_16, %c0_17], %21 {strides = array<i32>} : memref<304x128xf32, #tpu.memory_space<vmem>>, vector<24x128xf32>,
    %cst_18 = arith.constant 0.000000e+00 : f32
    %23 = vector.broadcast %cst_18 : f32 to vector<24x128xf32>
    %c280 = arith.constant 280 : index
    %c0_19 = arith.constant 0 : index
    %24 = vector.load %arg15[%c280, %c0_19] : memref<304x128xf32, #tpu.memory_space<vmem>>, vector<24x128xf32>
    tpu.vector_store %arg15[%c280, %c0_19], %23 {strides = array<i32>} : memref<304x128xf32, #tpu.memory_space<vmem>>, vector<24x128xf32>,
    %c24 = arith.constant 24 : index
    %c0_20 = arith.constant 0 : index
    %25 = vector.load %arg15[%c24, %c0_20] : memref<304x128xf32, #tpu.memory_space<vmem>>, vector<256x128xf32>
    tpu.vector_store %arg15[%c24, %c0_20], %20 {strides = array<i32>} : memref<304x128xf32, #tpu.memory_space<vmem>>, vector<256x128xf32>,
    %26 = tpu.iota {dimensions = array<i32: 1>} : vector<16x16x128xi32>
    %27 = vector.shape_cast %26 : vector<16x16x128xi32> to vector<256x128xi32>
    %c0_i32 = arith.constant 0 : i32
    %28 = vector.broadcast %c0_i32 : i32 to vector<256x128xi32>
    %29 = arith.cmpi ne, %27, %28 : vector<256x128xi32>
    %c15_i32 = arith.constant 15 : i32
    %30 = vector.broadcast %c15_i32 : i32 to vector<256x128xi32>
    %31 = arith.cmpi ne, %27, %30 : vector<256x128xi32>
    %c7 = arith.constant 7 : index
    %c0_21 = arith.constant 0 : index
    %32 = vector.load %arg15[%c7, %c0_21] : memref<304x128xf32, #tpu.memory_space<vmem>>, vector<256x128xf32>
    %cst_22 = arith.constant 0.000000e+00 : f32
    %33 = vector.broadcast %cst_22 : f32 to vector<256x128xf32>
    %34 = arith.select %29, %32, %33 : vector<256x128xi1>, vector<256x128xf32>
    %c0_23 = arith.constant 0 : index
    %c0_24 = arith.constant 0 : index
    %c0_25 = arith.constant 0 : index
    %c0_26 = arith.constant 0 : index
    %35 = vector.load %arg7[%c0_23, %c0_24, %c0_25, %c0_26] : memref<3x3x128x128xf32, #tpu.memory_space<vmem>>, vector<1x1x128x128xf32>
    %36 = vector.shape_cast %35 : vector<1x1x128x128xf32> to vector<128x128xf32>
    %cst_27 = arith.constant dense<0.000000e+00> : vector<256x128xf32>
    %37 = tpu.matmul %34, %36, %cst_27 {dimension_numbers = #tpu.dot_dimension_numbers<[1], [0], [0], [1], [0, 0, 1, 1], [], []>} : vector<256x128xf32>, vector<128x128xf32>, vector<256x128xf32> -> vector<256x128xf32>
    %c8 = arith.constant 8 : index
    %c0_28 = arith.constant 0 : index
    %38 = vector.load %arg15[%c8, %c0_28] : memref<304x128xf32, #tpu.memory_space<vmem>>, vector<256x128xf32>
    %c0_29 = arith.constant 0 : index
    %c1 = arith.constant 1 : index
    %c0_30 = arith.constant 0 : index
    %c0_31 = arith.constant 0 : index
    %39 = vector.load %arg7[%c0_29, %c1, %c0_30, %c0_31] : memref<3x3x128x128xf32, #tpu.memory_space<vmem>>, vector<1x1x128x128xf32>
    %40 = vector.shape_cast %39 : vector<1x1x128x128xf32> to vector<128x128xf32>
    %cst_32 = arith.constant dense<0.000000e+00> : vector<256x128xf32>
    %41 = tpu.matmul %38, %40, %cst_32 {dimension_numbers = #tpu.dot_dimension_numbers<[1], [0], [0], [1], [0, 0, 1, 1], [], []>} : vector<256x128xf32>, vector<128x128xf32>, vector<256x128xf32> -> vector<256x128xf32>
    %42 = arith.addf %37, %41 : vector<256x128xf32>
    %c9 = arith.constant 9 : index
    %c0_33 = arith.constant 0 : index
    %43 = vector.load %arg15[%c9, %c0_33] : memref<304x128xf32, #tpu.memory_space<vmem>>, vector<256x128xf32>
    %cst_34 = arith.constant 0.000000e+00 : f32
    %44 = vector.broadcast %cst_34 : f32 to vector<256x128xf32>
    %45 = arith.select %31, %43, %44 : vector<256x128xi1>, vector<256x128xf32>
    %c0_35 = arith.constant 0 : index
    %c2 = arith.constant 2 : index
    %c0_36 = arith.constant 0 : index
    %c0_37 = arith.constant 0 : index
    %46 = vector.load %arg7[%c0_35, %c2, %c0_36, %c0_37] : memref<3x3x128x128xf32, #tpu.memory_space<vmem>>, vector<1x1x128x128xf32>
    %47 = vector.shape_cast %46 : vector<1x1x128x128xf32> to vector<128x128xf32>
    %cst_38 = arith.constant dense<0.000000e+00> : vector<256x128xf32>
    %48 = tpu.matmul %45, %47, %cst_38 {dimension_numbers = #tpu.dot_dimension_numbers<[1], [0], [0], [1], [0, 0, 1, 1], [], []>} : vector<256x128xf32>, vector<128x128xf32>, vector<256x128xf32> -> vector<256x128xf32>
    %49 = arith.addf %42, %48 : vector<256x128xf32>
    %c23 = arith.constant 23 : index
    %c0_39 = arith.constant 0 : index
    %50 = vector.load %arg15[%c23, %c0_39] : memref<304x128xf32, #tpu.memory_space<vmem>>, vector<256x128xf32>
    %cst_40 = arith.constant 0.000000e+00 : f32
    %51 = vector.broadcast %cst_40 : f32 to vector<256x128xf32>
    %52 = arith.select %29, %50, %51 : vector<256x128xi1>, vector<256x128xf32>
    %c1_41 = arith.constant 1 : index
    %c0_42 = arith.constant 0 : index
    %c0_43 = arith.constant 0 : index
    %c0_44 = arith.constant 0 : index
    %53 = vector.load %arg7[%c1_41, %c0_42, %c0_43, %c0_44] : memref<3x3x128x128xf32, #tpu.memory_space<vmem>>, vector<1x1x128x128xf32>
    %54 = vector.shape_cast %53 : vector<1x1x128x128xf32> to vector<128x128xf32>
    %cst_45 = arith.constant dense<0.000000e+00> : vector<256x128xf32>
    %55 = tpu.matmul %52, %54, %cst_45 {dimension_numbers = #tpu.dot_dimension_numbers<[1], [0], [0], [1], [0, 0, 1, 1], [], []>} : vector<256x128xf32>, vector<128x128xf32>, vector<256x128xf32> -> vector<256x128xf32>
    %56 = arith.addf %49, %55 : vector<256x128xf32>
    %c24_46 = arith.constant 24 : index
    %c0_47 = arith.constant 0 : index
    %57 = vector.load %arg15[%c24_46, %c0_47] : memref<304x128xf32, #tpu.memory_space<vmem>>, vector<256x128xf32>
    %c1_48 = arith.constant 1 : index
    %c1_49 = arith.constant 1 : index
    %c0_50 = arith.constant 0 : index
    %c0_51 = arith.constant 0 : index
    %58 = vector.load %arg7[%c1_48, %c1_49, %c0_50, %c0_51] : memref<3x3x128x128xf32, #tpu.memory_space<vmem>>, vector<1x1x128x128xf32>
    %59 = vector.shape_cast %58 : vector<1x1x128x128xf32> to vector<128x128xf32>
    %cst_52 = arith.constant dense<0.000000e+00> : vector<256x128xf32>
    %60 = tpu.matmul %57, %59, %cst_52 {dimension_numbers = #tpu.dot_dimension_numbers<[1], [0], [0], [1], [0, 0, 1, 1], [], []>} : vector<256x128xf32>, vector<128x128xf32>, vector<256x128xf32> -> vector<256x128xf32>
    %61 = arith.addf %56, %60 : vector<256x128xf32>
    %c25 = arith.constant 25 : index
    %c0_53 = arith.constant 0 : index
    %62 = vector.load %arg15[%c25, %c0_53] : memref<304x128xf32, #tpu.memory_space<vmem>>, vector<256x128xf32>
    %cst_54 = arith.constant 0.000000e+00 : f32
    %63 = vector.broadcast %cst_54 : f32 to vector<256x128xf32>
    %64 = arith.select %31, %62, %63 : vector<256x128xi1>, vector<256x128xf32>
    %c1_55 = arith.constant 1 : index
    %c2_56 = arith.constant 2 : index
    %c0_57 = arith.constant 0 : index
    %c0_58 = arith.constant 0 : index
    %65 = vector.load %arg7[%c1_55, %c2_56, %c0_57, %c0_58] : memref<3x3x128x128xf32, #tpu.memory_space<vmem>>, vector<1x1x128x128xf32>
    %66 = vector.shape_cast %65 : vector<1x1x128x128xf32> to vector<128x128xf32>
    %cst_59 = arith.constant dense<0.000000e+00> : vector<256x128xf32>
    %67 = tpu.matmul %64, %66, %cst_59 {dimension_numbers = #tpu.dot_dimension_numbers<[1], [0], [0], [1], [0, 0, 1, 1], [], []>} : vector<256x128xf32>, vector<128x128xf32>, vector<256x128xf32> -> vector<256x128xf32>
    %68 = arith.addf %61, %67 : vector<256x128xf32>
    %c39 = arith.constant 39 : index
    %c0_60 = arith.constant 0 : index
    %69 = vector.load %arg15[%c39, %c0_60] : memref<304x128xf32, #tpu.memory_space<vmem>>, vector<256x128xf32>
    %cst_61 = arith.constant 0.000000e+00 : f32
    %70 = vector.broadcast %cst_61 : f32 to vector<256x128xf32>
    %71 = arith.select %29, %69, %70 : vector<256x128xi1>, vector<256x128xf32>
    %c2_62 = arith.constant 2 : index
    %c0_63 = arith.constant 0 : index
    %c0_64 = arith.constant 0 : index
    %c0_65 = arith.constant 0 : index
    %72 = vector.load %arg7[%c2_62, %c0_63, %c0_64, %c0_65] : memref<3x3x128x128xf32, #tpu.memory_space<vmem>>, vector<1x1x128x128xf32>
    %73 = vector.shape_cast %72 : vector<1x1x128x128xf32> to vector<128x128xf32>
    %cst_66 = arith.constant dense<0.000000e+00> : vector<256x128xf32>
    %74 = tpu.matmul %71, %73, %cst_66 {dimension_numbers = #tpu.dot_dimension_numbers<[1], [0], [0], [1], [0, 0, 1, 1], [], []>} : vector<256x128xf32>, vector<128x128xf32>, vector<256x128xf32> -> vector<256x128xf32>
    %75 = arith.addf %68, %74 : vector<256x128xf32>
    %c40 = arith.constant 40 : index
    %c0_67 = arith.constant 0 : index
    %76 = vector.load %arg15[%c40, %c0_67] : memref<304x128xf32, #tpu.memory_space<vmem>>, vector<256x128xf32>
    %c2_68 = arith.constant 2 : index
    %c1_69 = arith.constant 1 : index
    %c0_70 = arith.constant 0 : index
    %c0_71 = arith.constant 0 : index
    %77 = vector.load %arg7[%c2_68, %c1_69, %c0_70, %c0_71] : memref<3x3x128x128xf32, #tpu.memory_space<vmem>>, vector<1x1x128x128xf32>
    %78 = vector.shape_cast %77 : vector<1x1x128x128xf32> to vector<128x128xf32>
    %cst_72 = arith.constant dense<0.000000e+00> : vector<256x128xf32>
    %79 = tpu.matmul %76, %78, %cst_72 {dimension_numbers = #tpu.dot_dimension_numbers<[1], [0], [0], [1], [0, 0, 1, 1], [], []>} : vector<256x128xf32>, vector<128x128xf32>, vector<256x128xf32> -> vector<256x128xf32>
    %80 = arith.addf %75, %79 : vector<256x128xf32>
    %c41 = arith.constant 41 : index
    %c0_73 = arith.constant 0 : index
    %81 = vector.load %arg15[%c41, %c0_73] : memref<304x128xf32, #tpu.memory_space<vmem>>, vector<256x128xf32>
    %cst_74 = arith.constant 0.000000e+00 : f32
    %82 = vector.broadcast %cst_74 : f32 to vector<256x128xf32>
    %83 = arith.select %31, %81, %82 : vector<256x128xi1>, vector<256x128xf32>
    %c2_75 = arith.constant 2 : index
    %c2_76 = arith.constant 2 : index
    %c0_77 = arith.constant 0 : index
    %c0_78 = arith.constant 0 : index
    %84 = vector.load %arg7[%c2_75, %c2_76, %c0_77, %c0_78] : memref<3x3x128x128xf32, #tpu.memory_space<vmem>>, vector<1x1x128x128xf32>
    %85 = vector.shape_cast %84 : vector<1x1x128x128xf32> to vector<128x128xf32>
    %cst_79 = arith.constant dense<0.000000e+00> : vector<256x128xf32>
    %86 = tpu.matmul %83, %85, %cst_79 {dimension_numbers = #tpu.dot_dimension_numbers<[1], [0], [0], [1], [0, 0, 1, 1], [], []>} : vector<256x128xf32>, vector<128x128xf32>, vector<256x128xf32> -> vector<256x128xf32>
    %87 = arith.addf %80, %86 : vector<256x128xf32>
    %c0_80 = arith.constant 0 : index
    %c0_81 = arith.constant 0 : index
    %88 = vector.load %arg8[%c0_80, %c0_81] : memref<1x128xf32, #tpu.memory_space<vmem>>, vector<1x128xf32>
    %89 = vector.broadcast %88 : vector<1x128xf32> to vector<256x128xf32>
    %90 = arith.mulf %87, %89 : vector<256x128xf32>
    %c0_82 = arith.constant 0 : index
    %c0_83 = arith.constant 0 : index
    %91 = vector.load %arg9[%c0_82, %c0_83] : memref<1x128xf32, #tpu.memory_space<vmem>>, vector<1x128xf32>
    %92 = vector.broadcast %91 : vector<1x128xf32> to vector<256x128xf32>
    %93 = arith.addf %90, %92 : vector<256x128xf32>
    %cst_84 = arith.constant 0.000000e+00 : f32
    %94 = vector.broadcast %cst_84 : f32 to vector<256x128xf32>
    %95 = arith.maximumf %93, %94 : vector<256x128xf32>
    %c0_85 = arith.constant 0 : index
    %c0_86 = arith.constant 0 : index
    %96 = vector.load %arg10[%c0_85, %c0_86] : memref<128x128xf32, #tpu.memory_space<vmem>>, vector<128x128xf32>
    %cst_87 = arith.constant dense<0.000000e+00> : vector<256x128xf32>
    %97 = tpu.matmul %95, %96, %cst_87 {dimension_numbers = #tpu.dot_dimension_numbers<[1], [0], [0], [1], [0, 0, 1, 1], [], []>} : vector<256x128xf32>, vector<128x128xf32>, vector<256x128xf32> -> vector<256x128xf32>
    %c0_88 = arith.constant 0 : index
    %c0_89 = arith.constant 0 : index
    %98 = vector.load %arg11[%c0_88, %c0_89] : memref<1x128xf32, #tpu.memory_space<vmem>>, vector<1x128xf32>
    %99 = vector.broadcast %98 : vector<1x128xf32> to vector<256x128xf32>
    %100 = arith.addf %97, %99 : vector<256x128xf32>
    %c0_90 = arith.constant 0 : index
    %c0_91 = arith.constant 0 : index
    %101 = vector.load %arg12[%c0_90, %c0_91] : memref<128x128xf32, #tpu.memory_space<vmem>>, vector<128x128xf32>
    %cst_92 = arith.constant dense<0.000000e+00> : vector<256x128xf32>
    %102 = tpu.matmul %2, %101, %cst_92 {dimension_numbers = #tpu.dot_dimension_numbers<[1], [0], [0], [1], [0, 0, 1, 1], [], []>} : vector<256x128xf32>, vector<128x128xf32>, vector<256x128xf32> -> vector<256x128xf32>
    %c0_93 = arith.constant 0 : index
    %c0_94 = arith.constant 0 : index
    %103 = vector.load %arg13[%c0_93, %c0_94] : memref<1x128xf32, #tpu.memory_space<vmem>>, vector<1x128xf32>
    %104 = vector.broadcast %103 : vector<1x128xf32> to vector<256x128xf32>
    %105 = arith.addf %102, %104 : vector<256x128xf32>
    %cst_95 = arith.constant 0.000000e+00 : f32
    %106 = vector.broadcast %cst_95 : f32 to vector<256x128xf32>
    %107 = arith.maximumf %105, %106 : vector<256x128xf32>
    %108 = arith.addf %100, %107 : vector<256x128xf32>
    %109 = vector.shape_cast %108 : vector<256x128xf32> to vector<16x16x128xf32>
    %c0_96 = arith.constant 0 : index
    %c0_97 = arith.constant 0 : index
    %c0_98 = arith.constant 0 : index
    %c0_99 = arith.constant 0 : index
    %110 = vector.load %arg14[%c0_96, %c0_97, %c0_98, %c0_99] : memref<1x16x16x128xf32, #tpu.memory_space<vmem>>, vector<1x16x16x128xf32>
    %111 = vector.shape_cast %110 : vector<1x16x16x128xf32> to vector<16x16x128xf32>
    %112 = vector.shape_cast %109 : vector<16x16x128xf32> to vector<1x16x16x128xf32>
    tpu.vector_store %arg14[%c0_96, %c0_97, %c0_98, %c0_99], %112 {strides = array<i32>} : memref<1x16x16x128xf32, #tpu.memory_space<vmem>>, vector<1x16x16x128xf32>,
    return
  }
  func.func @transform_0(%arg0: i32) -> (i32, i32, i32, i32) {
    %c0_i32 = arith.constant 0 : i32
    %c0_i32_0 = arith.constant 0 : i32
    %c0_i32_1 = arith.constant 0 : i32
    %c0_i32_2 = arith.constant 0 : i32
    return %arg0, %c0_i32, %c0_i32_0, %c0_i32_1 : i32, i32, i32, i32
  }
  func.func @transform_1(%arg0: i32) -> (i32, i32) {
    %c0_i32 = arith.constant 0 : i32
    %c0_i32_0 = arith.constant 0 : i32
    %c0_i32_1 = arith.constant 0 : i32
    return %c0_i32, %c0_i32_0 : i32, i32
  }
  func.func @transform_2(%arg0: i32) -> (i32, i32) {
    %c0_i32 = arith.constant 0 : i32
    %c0_i32_0 = arith.constant 0 : i32
    %c0_i32_1 = arith.constant 0 : i32
    return %c0_i32, %c0_i32_0 : i32, i32
  }
  func.func @transform_3(%arg0: i32) -> (i32, i32) {
    %c0_i32 = arith.constant 0 : i32
    %c0_i32_0 = arith.constant 0 : i32
    %c0_i32_1 = arith.constant 0 : i32
    return %c0_i32, %c0_i32_0 : i32, i32
  }
  func.func @transform_4(%arg0: i32) -> (i32, i32) {
    %c0_i32 = arith.constant 0 : i32
    %c0_i32_0 = arith.constant 0 : i32
    %c0_i32_1 = arith.constant 0 : i32
    return %c0_i32, %c0_i32_0 : i32, i32
  }
  func.func @transform_5(%arg0: i32) -> (i32, i32) {
    %c0_i32 = arith.constant 0 : i32
    %c0_i32_0 = arith.constant 0 : i32
    %c0_i32_1 = arith.constant 0 : i32
    return %c0_i32, %c0_i32_0 : i32, i32
  }
  func.func @transform_6(%arg0: i32) -> (i32, i32, i32, i32) {
    %c0_i32 = arith.constant 0 : i32
    %c0_i32_0 = arith.constant 0 : i32
    %c0_i32_1 = arith.constant 0 : i32
    %c0_i32_2 = arith.constant 0 : i32
    %c0_i32_3 = arith.constant 0 : i32
    return %c0_i32, %c0_i32_0, %c0_i32_1, %c0_i32_2 : i32, i32, i32, i32
  }
  func.func @transform_7(%arg0: i32) -> (i32, i32) {
    %c0_i32 = arith.constant 0 : i32
    %c0_i32_0 = arith.constant 0 : i32
    %c0_i32_1 = arith.constant 0 : i32
    return %c0_i32, %c0_i32_0 : i32, i32
  }
  func.func @transform_8(%arg0: i32) -> (i32, i32) {
    %c0_i32 = arith.constant 0 : i32
    %c0_i32_0 = arith.constant 0 : i32
    %c0_i32_1 = arith.constant 0 : i32
    return %c0_i32, %c0_i32_0 : i32, i32
  }
  func.func @transform_9(%arg0: i32) -> (i32, i32) {
    %c0_i32 = arith.constant 0 : i32
    %c0_i32_0 = arith.constant 0 : i32
    %c0_i32_1 = arith.constant 0 : i32
    return %c0_i32, %c0_i32_0 : i32, i32
  }
  func.func @transform_10(%arg0: i32) -> (i32, i32) {
    %c0_i32 = arith.constant 0 : i32
    %c0_i32_0 = arith.constant 0 : i32
    %c0_i32_1 = arith.constant 0 : i32
    return %c0_i32, %c0_i32_0 : i32, i32
  }
  func.func @transform_11(%arg0: i32) -> (i32, i32) {
    %c0_i32 = arith.constant 0 : i32
    %c0_i32_0 = arith.constant 0 : i32
    %c0_i32_1 = arith.constant 0 : i32
    return %c0_i32, %c0_i32_0 : i32, i32
  }
  func.func @transform_12(%arg0: i32) -> (i32, i32) {
    %c0_i32 = arith.constant 0 : i32
    %c0_i32_0 = arith.constant 0 : i32
    %c0_i32_1 = arith.constant 0 : i32
    return %c0_i32, %c0_i32_0 : i32, i32
  }
  func.func @transform_13(%arg0: i32) -> (i32, i32, i32, i32) {
    %c0_i32 = arith.constant 0 : i32
    %c0_i32_0 = arith.constant 0 : i32
    %c0_i32_1 = arith.constant 0 : i32
    %c0_i32_2 = arith.constant 0 : i32
    return %arg0, %c0_i32, %c0_i32_0, %c0_i32_1 : i32, i32, i32, i32
  }
}

</mosaic_0001>

<llo_original>
// kernel: residual_forward.1
$region0: #{residual_forward.1}
  #allocation0 [shape = 'u32[]', space=smem, size = 0x4, offset = 0x4, fixed_abs, tag = 'smem constant byte address 0x4 - core index']
  #allocation1 [shape = 'u32[72,128]{1,0:T(1,128)}', space=vmem, size = 0x9000, scoped, tag = 'internal scratch']
  #allocation2 [shape = 'f32[304,128]{1,0:T(8,128)}', space=vmem, size = 0x26000, scoped, tag = 'scratch operand']
  %s0 = inlined_call_operand.vmem [shape: f32[2,16,16,128], index: 0, kind: input, shape index: {}]
  %s1 = inlined_call_operand.vmem [shape: f32[1,128], index: 1, kind: input, shape index: {}]
  %s2 = inlined_call_operand.vmem [shape: f32[1,128], index: 2, kind: input, shape index: {}]
  %s3 = inlined_call_operand.vmem [shape: f32[128,128], index: 3, kind: input, shape index: {}]
  %s4 = inlined_call_operand.vmem [shape: f32[1,128], index: 4, kind: input, shape index: {}]
  %s5 = inlined_call_operand.vmem [shape: f32[1,128], index: 5, kind: input, shape index: {}]
  %s6 = inlined_call_operand.vmem [shape: f32[3,3,128,128], index: 6, kind: input, shape index: {}]
  %s7 = inlined_call_operand.vmem [shape: f32[1,128], index: 7, kind: input, shape index: {}]
  %s8 = inlined_call_operand.vmem [shape: f32[1,128], index: 8, kind: input, shape index: {}]
  %s9 = inlined_call_operand.vmem [shape: f32[128,128], index: 9, kind: input, shape index: {}]
  %s10 = inlined_call_operand.vmem [shape: f32[1,128], index: 10, kind: input, shape index: {}]
  %s11 = inlined_call_operand.vmem [shape: f32[128,128], index: 11, kind: input, shape index: {}]
  %s12 = inlined_call_operand.vmem [shape: f32[1,128], index: 12, kind: input, shape index: {}]
  %s13 = inlined_call_operand.vmem [shape: f32[2,16,16,128], index: 13, kind: output, shape index: {}]
  %s14 = sld [smem:[#allocation0]]
  $region85: #{residual_forward.1} parent=0
    _
  %s16 = ssub.s32 1, %s14
  %s17 = scalar_select 0, %s16, %s14
  loop: start=0, step=1, limit=4
  $region2: #{residual_forward.1} parent=0 // loop_pre_header
    _
  $region3: #{residual_forward.1} parent=0 // loop_header
    %s19 = sphi 0, %s23
    %p20 = scmp.ge.s32.totalorder %s19, 4
    %s29 = sphi 0, %s31
    %s32 = sphi 0, %s29
    %s33 = sphi 0, %s32
    %s49 = sphi 0, %s33
    %s53 = sphi 0, %s53
    %s55 = sphi 0, %s53
    %s56 = sphi 0, %s55
    %s70 = sphi 0, %s56
    %s74 = sphi 0, %s74
    %s76 = sphi 0, %s74
    %s77 = sphi 0, %s76
    %s91 = sphi 0, %s77
    %s95 = sphi 0, %s95
    %s97 = sphi 0, %s95
    %s98 = sphi 0, %s97
    %s112 = sphi 0, %s98
    %s116 = sphi 0, %s116
    %s118 = sphi 0, %s116
    %s119 = sphi 0, %s118
    %s133 = sphi 0, %s119
    %s137 = sphi 0, %s137
    %s139 = sphi 0, %s137
    %s140 = sphi 0, %s139
    %s154 = sphi 0, %s140
    %s158 = sphi 0, %s158
    %s160 = sphi 0, %s158
    %s161 = sphi 0, %s160
    %s175 = sphi 0, %s161
    %s179 = sphi 0, %s179
    %s181 = sphi 0, %s179
    %s182 = sphi 0, %s181
    %s196 = sphi 0, %s182
    %s200 = sphi 0, %s200
    %s202 = sphi 0, %s200
    %s203 = sphi 0, %s202
    %s217 = sphi 0, %s203
    %s221 = sphi 0, %s221
    %s223 = sphi 0, %s221
    %s224 = sphi 0, %s223
    %s238 = sphi 0, %s224
    %s242 = sphi 0, %s242
    %s244 = sphi 0, %s242
    %s245 = sphi 0, %s244
    %s259 = sphi 0, %s245
    %s263 = sphi 0, %s263
    %s265 = sphi 0, %s263
    %s266 = sphi 0, %s265
    %s280 = sphi 0, %s266
    %s284 = sphi 0, %s284
    %s286 = sphi 0, %s284
    %s287 = sphi 0, %s286
    %s301 = sphi 0, %s287
    %s307 = sphi 0, %s309
    %s310 = sphi 0, %s307
    %s311 = sphi 0, %s310
    %s327 = sphi 0, %s311
  $region4: #{residual_forward.1} parent=0 // loop_header_branch
    %22 = sbr.rel (%p20) target = $region8
  $region5: #{residual_forward.1} parent=0 // loop_body
    %s24 = ssub.s32 %s19, 1
    %s25 = ssub.s32 %s19, 2
    %s26 = sadd.s32 %s19, 1
    %s27 = ssub.s32 %s19, %s26
    %p28 = scmp.eq.s32.totalorder %s27, 0
    %s30 = sadd.s32 %s29, 1
    %s31 = scalar_select %p28, %s29, %s30
    %p34 = pneg %p28
    %p35 = scmp.eq.s32.totalorder %s19, 1
    %p36 = por %p34, %p35
    %p37 = scmp.ne.s32.totalorder %s29, %s32
    %p38 = scmp.eq.s32.totalorder %s19, 0
    %p39 = por %p37, %p38
    %p40 = scmp.ne.s32.totalorder %s29, %s32
    %p41 = scmp.eq.s32.totalorder %s24, 1
    %p42 = por %p40, %p41
    %p43 = scmp.ne.s32.totalorder %s32, %s33
    %p44 = scmp.eq.s32.totalorder %s24, 0
    %p45 = por %p43, %p44
    %p46 = scmp.ne.s32.totalorder %s32, %s33
    %p47 = scmp.eq.s32.totalorder %s25, 1
    %p48 = por %p46, %p47
    %p50 = scmp.ne.s32.totalorder %s33, %s49
    %p51 = scmp.eq.s32.totalorder %s25, 0
    %p52 = por %p50, %p51
    %s54 = sadd.s32 %s53, 1
    %p57 = scmp.eq.s32.totalorder %s19, 1
    %p58 = scmp.ne.s32.totalorder %s53, %s55
    %p59 = scmp.eq.s32.totalorder %s19, 0
    %p60 = por %p58, %p59
    %p61 = scmp.ne.s32.totalorder %s53, %s55
    %p62 = scmp.eq.s32.totalorder %s24, 1
    %p63 = por %p61, %p62
    %p64 = scmp.ne.s32.totalorder %s55, %s56
    %p65 = scmp.eq.s32.totalorder %s24, 0
    %p66 = por %p64, %p65
    %p67 = scmp.ne.s32.totalorder %s55, %s56
    %p68 = scmp.eq.s32.totalorder %s25, 1
    %p69 = por %p67, %p68
    %p71 = scmp.ne.s32.totalorder %s56, %s70
    %p72 = scmp.eq.s32.totalorder %s25, 0
    %p73 = por %p71, %p72
    %s75 = sadd.s32 %s74, 1
    %p78 = scmp.eq.s32.totalorder %s19, 1
    %p79 = scmp.ne.s32.totalorder %s74, %s76
    %p80 = scmp.eq.s32.totalorder %s19, 0
    %p81 = por %p79, %p80
    %p82 = scmp.ne.s32.totalorder %s74, %s76
    %p83 = scmp.eq.s32.totalorder %s24, 1
    %p84 = por %p82, %p83
    %p85 = scmp.ne.s32.totalorder %s76, %s77
    %p86 = scmp.eq.s32.totalorder %s24, 0
    %p87 = por %p85, %p86
    %p88 = scmp.ne.s32.totalorder %s76, %s77
    %p89 = scmp.eq.s32.totalorder %s25, 1
    %p90 = por %p88, %p89
    %p92 = scmp.ne.s32.totalorder %s77, %s91
    %p93 = scmp.eq.s32.totalorder %s25, 0
    %p94 = por %p92, %p93
    %s96 = sadd.s32 %s95, 1
    %p99 = scmp.eq.s32.totalorder %s19, 1
    %p100 = scmp.ne.s32.totalorder %s95, %s97
    %p101 = scmp.eq.s32.totalorder %s19, 0
    %p102 = por %p100, %p101
    %p103 = scmp.ne.s32.totalorder %s95, %s97
    %p104 = scmp.eq.s32.totalorder %s24, 1
    %p105 = por %p103, %p104
    %p106 = scmp.ne.s32.totalorder %s97, %s98
    %p107 = scmp.eq.s32.totalorder %s24, 0
    %p108 = por %p106, %p107
    %p109 = scmp.ne.s32.totalorder %s97, %s98
    %p110 = scmp.eq.s32.totalorder %s25, 1
    %p111 = por %p109, %p110
    %p113 = scmp.ne.s32.totalorder %s98, %s112
    %p114 = scmp.eq.s32.totalorder %s25, 0
    %p115 = por %p113, %p114
    %s117 = sadd.s32 %s116, 1
    %p120 = scmp.eq.s32.totalorder %s19, 1
    %p121 = scmp.ne.s32.totalorder %s116, %s118
    %p122 = scmp.eq.s32.totalorder %s19, 0
    %p123 = por %p121, %p122
    %p124 = scmp.ne.s32.totalorder %s116, %s118
    %p125 = scmp.eq.s32.totalorder %s24, 1
    %p126 = por %p124, %p125
    %p127 = scmp.ne.s32.totalorder %s118, %s119
    %p128 = scmp.eq.s32.totalorder %s24, 0
    %p129 = por %p127, %p128
    %p130 = scmp.ne.s32.totalorder %s118, %s119
    %p131 = scmp.eq.s32.totalorder %s25, 1
    %p132 = por %p130, %p131
    %p134 = scmp.ne.s32.totalorder %s119, %s133
    %p135 = scmp.eq.s32.totalorder %s25, 0
    %p136 = por %p134, %p135
    %s138 = sadd.s32 %s137, 1
    %p141 = scmp.eq.s32.totalorder %s19, 1
    %p142 = scmp.ne.s32.totalorder %s137, %s139
    %p143 = scmp.eq.s32.totalorder %s19, 0
    %p144 = por %p142, %p143
    %p145 = scmp.ne.s32.totalorder %s137, %s139
    %p146 = scmp.eq.s32.totalorder %s24, 1
    %p147 = por %p145, %p146
    %p148 = scmp.ne.s32.totalorder %s139, %s140
    %p149 = scmp.eq.s32.totalorder %s24, 0
    %p150 = por %p148, %p149
    %p151 = scmp.ne.s32.totalorder %s139, %s140
    %p152 = scmp.eq.s32.totalorder %s25, 1
    %p153 = por %p151, %p152
    %p155 = scmp.ne.s32.totalorder %s140, %s154
    %p156 = scmp.eq.s32.totalorder %s25, 0
    %p157 = por %p155, %p156
    %s159 = sadd.s32 %s158, 1
    %p162 = scmp.eq.s32.totalorder %s19, 1
    %p163 = scmp.ne.s32.totalorder %s158, %s160
    %p164 = scmp.eq.s32.totalorder %s19, 0
    %p165 = por %p163, %p164
    %p166 = scmp.ne.s32.totalorder %s158, %s160
    %p167 = scmp.eq.s32.totalorder %s24, 1
    %p168 = por %p166, %p167
    %p169 = scmp.ne.s32.totalorder %s160, %s161
    %p170 = scmp.eq.s32.totalorder %s24, 0
    %p171 = por %p169, %p170
    %p172 = scmp.ne.s32.totalorder %s160, %s161
    %p173 = scmp.eq.s32.totalorder %s25, 1
    %p174 = por %p172, %p173
    %p176 = scmp.ne.s32.totalorder %s161, %s175
    %p177 = scmp.eq.s32.totalorder %s25, 0
    %p178 = por %p176, %p177
    %s180 = sadd.s32 %s179, 1
    %p183 = scmp.eq.s32.totalorder %s19, 1
    %p184 = scmp.ne.s32.totalorder %s179, %s181
    %p185 = scmp.eq.s32.totalorder %s19, 0
    %p186 = por %p184, %p185
    %p187 = scmp.ne.s32.totalorder %s179, %s181
    %p188 = scmp.eq.s32.totalorder %s24, 1
    %p189 = por %p187, %p188
    %p190 = scmp.ne.s32.totalorder %s181, %s182
    %p191 = scmp.eq.s32.totalorder %s24, 0
    %p192 = por %p190, %p191
    %p193 = scmp.ne.s32.totalorder %s181, %s182
    %p194 = scmp.eq.s32.totalorder %s25, 1
    %p195 = por %p193, %p194
    %p197 = scmp.ne.s32.totalorder %s182, %s196
    %p198 = scmp.eq.s32.totalorder %s25, 0
    %p199 = por %p197, %p198
    %s201 = sadd.s32 %s200, 1
    %p204 = scmp.eq.s32.totalorder %s19, 1
    %p205 = scmp.ne.s32.totalorder %s200, %s202
    %p206 = scmp.eq.s32.totalorder %s19, 0
    %p207 = por %p205, %p206
    %p208 = scmp.ne.s32.totalorder %s200, %s202
    %p209 = scmp.eq.s32.totalorder %s24, 1
    %p210 = por %p208, %p209
    %p211 = scmp.ne.s32.totalorder %s202, %s203
    %p212 = scmp.eq.s32.totalorder %s24, 0
    %p213 = por %p211, %p212
    %p214 = scmp.ne.s32.totalorder %s202, %s203
    %p215 = scmp.eq.s32.totalorder %s25, 1
    %p216 = por %p214, %p215
    %p218 = scmp.ne.s32.totalorder %s203, %s217
    %p219 = scmp.eq.s32.totalorder %s25, 0
    %p220 = por %p218, %p219
    %s222 = sadd.s32 %s221, 1
    %p225 = scmp.eq.s32.totalorder %s19, 1
    %p226 = scmp.ne.s32.totalorder %s221, %s223
    %p227 = scmp.eq.s32.totalorder %s19, 0
    %p228 = por %p226, %p227
    %p229 = scmp.ne.s32.totalorder %s221, %s223
    %p230 = scmp.eq.s32.totalorder %s24, 1
    %p231 = por %p229, %p230
    %p232 = scmp.ne.s32.totalorder %s223, %s224
    %p233 = scmp.eq.s32.totalorder %s24, 0
    %p234 = por %p232, %p233
    %p235 = scmp.ne.s32.totalorder %s223, %s224
    %p236 = scmp.eq.s32.totalorder %s25, 1
    %p237 = por %p235, %p236
    %p239 = scmp.ne.s32.totalorder %s224, %s238
    %p240 = scmp.eq.s32.totalorder %s25, 0
    %p241 = por %p239, %p240
    %s243 = sadd.s32 %s242, 1
    %p246 = scmp.eq.s32.totalorder %s19, 1
    %p247 = scmp.ne.s32.totalorder %s242, %s244
    %p248 = scmp.eq.s32.totalorder %s19, 0
    %p249 = por %p247, %p248
    %p250 = scmp.ne.s32.totalorder %s242, %s244
    %p251 = scmp.eq.s32.totalorder %s24, 1
    %p252 = por %p250, %p251
    %p253 = scmp.ne.s32.totalorder %s244, %s245
    %p254 = scmp.eq.s32.totalorder %s24, 0
    %p255 = por %p253, %p254
    %p256 = scmp.ne.s32.totalorder %s244, %s245
    %p257 = scmp.eq.s32.totalorder %s25, 1
    %p258 = por %p256, %p257
    %p260 = scmp.ne.s32.totalorder %s245, %s259
    %p261 = scmp.eq.s32.totalorder %s25, 0
    %p262 = por %p260, %p261
    %s264 = sadd.s32 %s263, 1
    %p267 = scmp.eq.s32.totalorder %s19, 1
    %p268 = scmp.ne.s32.totalorder %s263, %s265
    %p269 = scmp.eq.s32.totalorder %s19, 0
    %p270 = por %p268, %p269
    %p271 = scmp.ne.s32.totalorder %s263, %s265
    %p272 = scmp.eq.s32.totalorder %s24, 1
    %p273 = por %p271, %p272
    %p274 = scmp.ne.s32.totalorder %s265, %s266
    %p275 = scmp.eq.s32.totalorder %s24, 0
    %p276 = por %p274, %p275
    %p277 = scmp.ne.s32.totalorder %s265, %s266
    %p278 = scmp.eq.s32.totalorder %s25, 1
    %p279 = por %p277, %p278
    %p281 = scmp.ne.s32.totalorder %s266, %s280
    %p282 = scmp.eq.s32.totalorder %s25, 0
    %p283 = por %p281, %p282
    %s285 = sadd.s32 %s284, 1
    %p288 = scmp.eq.s32.totalorder %s19, 1
    %p289 = scmp.ne.s32.totalorder %s284, %s286
    %p290 = scmp.eq.s32.totalorder %s19, 0
    %p291 = por %p289, %p290
    %p292 = scmp.ne.s32.totalorder %s284, %s286
    %p293 = scmp.eq.s32.totalorder %s24, 1
    %p294 = por %p292, %p293
    %p295 = scmp.ne.s32.totalorder %s286, %s287
    %p296 = scmp.eq.s32.totalorder %s24, 0
    %p297 = por %p295, %p296
    %p298 = scmp.ne.s32.totalorder %s286, %s287
    %p299 = scmp.eq.s32.totalorder %s25, 1
    %p300 = por %p298, %p299
    %p302 = scmp.ne.s32.totalorder %s287, %s301
    %p303 = scmp.eq.s32.totalorder %s25, 0
    %p304 = por %p302, %p303
    %s305 = ssub.s32 %s19, %s26
    %p306 = scmp.eq.s32.totalorder %s305, 0
    %s308 = sadd.s32 %s307, 1
    %s309 = scalar_select %p306, %s307, %s308
    %p312 = pneg %p306
    %p313 = scmp.eq.s32.totalorder %s19, 1
    %p314 = por %p312, %p313
    %p315 = scmp.ne.s32.totalorder %s307, %s310
    %p316 = scmp.eq.s32.totalorder %s19, 0
    %p317 = por %p315, %p316
    %p318 = scmp.ne.s32.totalorder %s307, %s310
    %p319 = scmp.eq.s32.totalorder %s24, 1
    %p320 = por %p318, %p319
    %p321 = scmp.ne.s32.totalorder %s310, %s311
    %p322 = scmp.eq.s32.totalorder %s24, 0
    %p323 = por %p321, %p322
    %p324 = scmp.ne.s32.totalorder %s310, %s311
    %p325 = scmp.eq.s32.totalorder %s25, 1
    %p326 = por %p324, %p325
    %p328 = scmp.ne.s32.totalorder %s311, %s327
    %p329 = scmp.eq.s32.totalorder %s25, 0
    %p330 = por %p328, %p329
    %p331 = scmp.le.s32.totalorder 1, %s19
    %p332 = scmp.lt.s32.totalorder %s19, 3
    %p333 = pnand %p331, %p332
    %p334 = pneg %p333
    // Predicated region
    $region9: #{residual_forward.1} parent=5 // pred_check
      _
    $region10: #{residual_forward.1} parent=5 // pred_check_branch
      %336 = sbr.rel (%p333) target = $region12
    $region11: #{residual_forward.1} parent=5 // pred_region
      %s337 = ssub.s32 %s19, 1
      // Predicated region
      $region13: #{residual_forward.1} parent=11 // pred_check
        %p338 = pneg %p66
      $region14: #{residual_forward.1} parent=11 // pred_check_branch
        %340 = sbr.rel (%p338) target = $region16
      $region15: #{residual_forward.1} parent=11 // pred_region
        _
      $region16: #{residual_forward.1} parent=11 // pred_fallthru
        _
      // Predicated region
      $region17: #{residual_forward.1} parent=11 // pred_check
        %p341 = pneg %p87
      $region18: #{residual_forward.1} parent=11 // pred_check_branch
        %343 = sbr.rel (%p341) target = $region20
      $region19: #{residual_forward.1} parent=11 // pred_region
        _
      $region20: #{residual_forward.1} parent=11 // pred_fallthru
        _
      // Predicated region
      $region21: #{residual_forward.1} parent=11 // pred_check
        %p344 = pneg %p108
      $region22: #{residual_forward.1} parent=11 // pred_check_branch
        %346 = sbr.rel (%p344) target = $region24
      $region23: #{residual_forward.1} parent=11 // pred_region
        _
      $region24: #{residual_forward.1} parent=11 // pred_fallthru
        _
      // Predicated region
      $region25: #{residual_forward.1} parent=11 // pred_check
        %p347 = pneg %p129
      $region26: #{residual_forward.1} parent=11 // pred_check_branch
        %349 = sbr.rel (%p347) target = $region28
      $region27: #{residual_forward.1} parent=11 // pred_region
        _
      $region28: #{residual_forward.1} parent=11 // pred_fallthru
        _
      // Predicated region
      $region29: #{residual_forward.1} parent=11 // pred_check
        %p350 = pneg %p150
      $region30: #{residual_forward.1} parent=11 // pred_check_branch
        %352 = sbr.rel (%p350) target = $region32
      $region31: #{residual_forward.1} parent=11 // pred_region
        _
      $region32: #{residual_forward.1} parent=11 // pred_fallthru
        _
      // Predicated region
      $region33: #{residual_forward.1} parent=11 // pred_check
        %p353 = pneg %p171
      $region34: #{residual_forward.1} parent=11 // pred_check_branch
        %355 = sbr.rel (%p353) target = $region36
      $region35: #{residual_forward.1} parent=11 // pred_region
        _
      $region36: #{residual_forward.1} parent=11 // pred_fallthru
        _
      // Predicated region
      $region37: #{residual_forward.1} parent=11 // pred_check
        %p356 = pneg %p192
      $region38: #{residual_forward.1} parent=11 // pred_check_branch
        %358 = sbr.rel (%p356) target = $region40
      $region39: #{residual_forward.1} parent=11 // pred_region
        _
      $region40: #{residual_forward.1} parent=11 // pred_fallthru
        _
      // Predicated region
      $region41: #{residual_forward.1} parent=11 // pred_check
        %p359 = pneg %p213
      $region42: #{residual_forward.1} parent=11 // pred_check_branch
        %361 = sbr.rel (%p359) target = $region44
      $region43: #{residual_forward.1} parent=11 // pred_region
        _
      $region44: #{residual_forward.1} parent=11 // pred_fallthru
        _
      // Predicated region
      $region45: #{residual_forward.1} parent=11 // pred_check
        %p362 = pneg %p234
      $region46: #{residual_forward.1} parent=11 // pred_check_branch
        %364 = sbr.rel (%p362) target = $region48
      $region47: #{residual_forward.1} parent=11 // pred_region
        _
      $region48: #{residual_forward.1} parent=11 // pred_fallthru
        _
      // Predicated region
      $region49: #{residual_forward.1} parent=11 // pred_check
        %p365 = pneg %p255
      $region50: #{residual_forward.1} parent=11 // pred_check_branch
        %367 = sbr.rel (%p365) target = $region52
      $region51: #{residual_forward.1} parent=11 // pred_region
        _
      $region52: #{residual_forward.1} parent=11 // pred_fallthru
        _
      // Predicated region
      $region53: #{residual_forward.1} parent=11 // pred_check
        %p368 = pneg %p276
      $region54: #{residual_forward.1} parent=11 // pred_check_branch
        %370 = sbr.rel (%p368) target = $region56
      $region55: #{residual_forward.1} parent=11 // pred_region
        _
      $region56: #{residual_forward.1} parent=11 // pred_fallthru
        _
      // Predicated region
      $region57: #{residual_forward.1} parent=11 // pred_check
        %p371 = pneg %p297
      $region58: #{residual_forward.1} parent=11 // pred_check_branch
        %373 = sbr.rel (%p371) target = $region60
      $region59: #{residual_forward.1} parent=11 // pred_region
        _
      $region60: #{residual_forward.1} parent=11 // pred_fallthru
        _
    $region12: #{residual_forward.1} parent=5 // pred_fallthru
      _
    %p374 = scmp.lt.s32.totalorder %s19, 2
    // Predicated region
    $region61: #{residual_forward.1} parent=5 // pred_check
      %p375 = pneg %p374
    $region62: #{residual_forward.1} parent=5 // pred_check_branch
      %377 = sbr.rel (%p375) target = $region64
    $region63: #{residual_forward.1} parent=5 // pred_region
      // Predicated region
      $region65: #{residual_forward.1} parent=63 // pred_check
        %p378 = pneg %p39
      $region66: #{residual_forward.1} parent=63 // pred_check_branch
        %380 = sbr.rel (%p378) target = $region68
      $region67: #{residual_forward.1} parent=63 // pred_region
        %p381 = scmp.lt.s32.totalorder %s19, 1
        %s382 = scalar_select %p381, %s19, 1
        %s383 = smul.addr %s382, 32
        %s384 = smul.addr %s383, 8
        %s385 = scalar_lea.vmem %s0, %s384
      $region68: #{residual_forward.1} parent=63 // pred_fallthru
        _
    $region64: #{residual_forward.1} parent=5 // pred_fallthru
      _
    %p386 = scmp.le.s32.totalorder 1, %s19
    %p387 = scmp.lt.s32.totalorder %s19, 3
    %p388 = pnand %p386, %p387
    %p389 = pneg %p388
    // Predicated region
    $region69: #{residual_forward.1} parent=5 // pred_check
      _
    $region70: #{residual_forward.1} parent=5 // pred_check_branch
      %391 = sbr.rel (%p388) target = $region72
    $region71: #{residual_forward.1} parent=5 // pred_region
      %s392 = ssub.s32 %s19, 1
      %p393 = scmp.lt.s32.totalorder %s24, 1
      %s394 = scalar_select %p393, %s24, 1
      %s395 = smul.addr %s394, 32
      %s396 = smul.addr %s395, 8
      %s397 = scalar_lea.vmem %s0, %s396
      %p398 = pneg %p45
      %p399 = pneg %p42
      %p400 = pneg %p66
      %p401 = pneg %p63
      %p402 = pneg %p87
      %p403 = pneg %p84
      %p404 = pneg %p108
      %p405 = pneg %p105
      %p406 = pneg %p129
      %p407 = pneg %p126
      %p408 = pneg %p150
      %p409 = pneg %p147
      %p410 = pneg %p171
      %p411 = pneg %p168
      %p412 = pneg %p192
      %p413 = pneg %p189
      %p414 = pneg %p213
      %p415 = pneg %p210
      %p416 = pneg %p234
      %p417 = pneg %p231
      %p418 = pneg %p255
      %p419 = pneg %p252
      %p420 = pneg %p276
      %p421 = pneg %p273
      %p422 = pneg %p297
      %p423 = pneg %p294
      %p424 = pneg %p323
      %p425 = pneg %p320
      %p426 = scmp.lt.s32.totalorder %s24, 1
      %s427 = scalar_select %p426, %s24, 1
      %s428 = smul.addr %s427, 32
      %s429 = smul.addr %s428, 8
      %s430 = scalar_lea.vmem %s13, %s429
      %p431 = scmp.lt.s32.totalorder %s24, 1
      %s432 = scalar_select %p431, %s24, 1
      %s433 = smul.addr %s432, 32
      %s434 = smul.addr %s433, 8
      %s435 = scalar_lea.vmem %s0, %s434
      %p436 = scmp.lt.s32.totalorder %s24, 1
      %s437 = scalar_select %p436, %s24, 1
      %s438 = smul.addr %s437, 32
      %s439 = smul.addr %s438, 8
      %s440 = scalar_lea.vmem %s13, %s439
      %v441 = vld [vmem:[%s435] sm:$0xff]
      %v442 = vld [vmem:[%s435 + $0x8] sm:$0xff]
      %v443 = vld [vmem:[%s435 + $0x10] sm:$0xff]
      %v444 = vld [vmem:[%s435 + $0x18] sm:$0xff]
      %v445 = vld [vmem:[%s435 + $0x20] sm:$0xff]
      %v446 = vld [vmem:[%s435 + $0x28] sm:$0xff]
      %v447 = vld [vmem:[%s435 + $0x30] sm:$0xff]
      %v448 = vld [vmem:[%s435 + $0x38] sm:$0xff]
      %v449 = vld [vmem:[%s435 + $0x40] sm:$0xff]
      %v450 = vld [vmem:[%s435 + $0x48] sm:$0xff]
      %v451 = vld [vmem:[%s435 + $0x50] sm:$0xff]
      %v452 = vld [vmem:[%s435 + $0x58] sm:$0xff]
      %v453 = vld [vmem:[%s435 + $0x60] sm:$0xff]
      %v454 = vld [vmem:[%s435 + $0x68] sm:$0xff]
      %v455 = vld [vmem:[%s435 + $0x70] sm:$0xff]
      %v456 = vld [vmem:[%s435 + $0x78] sm:$0xff]
      %v457 = vld [vmem:[%s435 + $0x80] sm:$0xff]
      %v458 = vld [vmem:[%s435 + $0x88] sm:$0xff]
      %v459 = vld [vmem:[%s435 + $0x90] sm:$0xff]
      %v460 = vld [vmem:[%s435 + $0x98] sm:$0xff]
      %v461 = vld [vmem:[%s435 + $0xa0] sm:$0xff]
      %v462 = vld [vmem:[%s435 + $0xa8] sm:$0xff]
      %v463 = vld [vmem:[%s435 + $0xb0] sm:$0xff]
      %v464 = vld [vmem:[%s435 + $0xb8] sm:$0xff]
      %v465 = vld [vmem:[%s435 + $0xc0] sm:$0xff]
      %v466 = vld [vmem:[%s435 + $0xc8] sm:$0xff]
      %v467 = vld [vmem:[%s435 + $0xd0] sm:$0xff]
      %v468 = vld [vmem:[%s435 + $0xd8] sm:$0xff]
      %v469 = vld [vmem:[%s435 + $0xe0] sm:$0xff]
      %v470 = vld [vmem:[%s435 + $0xe8] sm:$0xff]
      %v471 = vld [vmem:[%s435 + $0xf0] sm:$0xff]
      %v472 = vld [vmem:[%s435 + $0xf8] sm:$0xff]
      %v473 = vld [vmem:[%s1] sm:$0x1]
      %v475 = vperm.slane %v473, 0
      %v477 = vmul.f32 %v441, %v475
      %v478 = vmul.f32 %v442, %v475
      %v479 = vmul.f32 %v443, %v475
      %v480 = vmul.f32 %v444, %v475
      %v481 = vmul.f32 %v445, %v475
      %v482 = vmul.f32 %v446, %v475
      %v483 = vmul.f32 %v447, %v475
      %v484 = vmul.f32 %v448, %v475
      %v485 = vmul.f32 %v449, %v475
      %v486 = vmul.f32 %v450, %v475
      %v487 = vmul.f32 %v451, %v475
      %v488 = vmul.f32 %v452, %v475
      %v489 = vmul.f32 %v453, %v475
      %v490 = vmul.f32 %v454, %v475
      %v491 = vmul.f32 %v455, %v475
      %v492 = vmul.f32 %v456, %v475
      %v493 = vmul.f32 %v457, %v475
      %v494 = vmul.f32 %v458, %v475
      %v495 = vmul.f32 %v459, %v475
      %v496 = vmul.f32 %v460, %v475
      %v497 = vmul.f32 %v461, %v475
      %v498 = vmul.f32 %v462, %v475
      %v499 = vmul.f32 %v463, %v475
      %v500 = vmul.f32 %v464, %v475
      %v501 = vmul.f32 %v465, %v475
      %v502 = vmul.f32 %v466, %v475
      %v503 = vmul.f32 %v467, %v475
      %v504 = vmul.f32 %v468, %v475
      %v505 = vmul.f32 %v469, %v475
      %v506 = vmul.f32 %v470, %v475
      %v507 = vmul.f32 %v471, %v475
      %v508 = vmul.f32 %v472, %v475
      %v509 = vld [vmem:[%s2] sm:$0x1]
      %v511 = vperm.slane %v509, 0
      %v513 = vadd.f32 %v477, %v511
      %v514 = vadd.f32 %v478, %v511
      %v515 = vadd.f32 %v479, %v511
      %v516 = vadd.f32 %v480, %v511
      %v517 = vadd.f32 %v481, %v511
      %v518 = vadd.f32 %v482, %v511
      %v519 = vadd.f32 %v483, %v511
      %v520 = vadd.f32 %v484, %v511
      %v521 = vadd.f32 %v485, %v511
      %v522 = vadd.f32 %v486, %v511
      %v523 = vadd.f32 %v487, %v511
      %v524 = vadd.f32 %v488, %v511
      %v525 = vadd.f32 %v489, %v511
      %v526 = vadd.f32 %v490, %v511
      %v527 = vadd.f32 %v491, %v511
      %v528 = vadd.f32 %v492, %v511
      %v529 = vadd.f32 %v493, %v511
      %v530 = vadd.f32 %v494, %v511
      %v531 = vadd.f32 %v495, %v511
      %v532 = vadd.f32 %v496, %v511
      %v533 = vadd.f32 %v497, %v511
      %v534 = vadd.f32 %v498, %v511
      %v535 = vadd.f32 %v499, %v511
      %v536 = vadd.f32 %v500, %v511
      %v537 = vadd.f32 %v501, %v511
      %v538 = vadd.f32 %v502, %v511
      %v539 = vadd.f32 %v503, %v511
      %v540 = vadd.f32 %v504, %v511
      %v541 = vadd.f32 %v505, %v511
      %v542 = vadd.f32 %v506, %v511
      %v543 = vadd.f32 %v507, %v511
      %v544 = vadd.f32 %v508, %v511
      %v545 = vmax.f32 %v513, 0.0
      %v546 = vmax.f32 %v514, 0.0
      %v547 = vmax.f32 %v515, 0.0
      %v548 = vmax.f32 %v516, 0.0
      %v549 = vmax.f32 %v517, 0.0
      %v550 = vmax.f32 %v518, 0.0
      %v551 = vmax.f32 %v519, 0.0
      %v552 = vmax.f32 %v520, 0.0
      %v553 = vmax.f32 %v521, 0.0
      %v554 = vmax.f32 %v522, 0.0
      %v555 = vmax.f32 %v523, 0.0
      %v556 = vmax.f32 %v524, 0.0
      %v557 = vmax.f32 %v525, 0.0
      %v558 = vmax.f32 %v526, 0.0
      %v559 = vmax.f32 %v527, 0.0
      %v560 = vmax.f32 %v528, 0.0
      %v561 = vmax.f32 %v529, 0.0
      %v562 = vmax.f32 %v530, 0.0
      %v563 = vmax.f32 %v531, 0.0
      %v564 = vmax.f32 %v532, 0.0
      %v565 = vmax.f32 %v533, 0.0
      %v566 = vmax.f32 %v534, 0.0
      %v567 = vmax.f32 %v535, 0.0
      %v568 = vmax.f32 %v536, 0.0
      %v569 = vmax.f32 %v537, 0.0
      %v570 = vmax.f32 %v538, 0.0
      %v571 = vmax.f32 %v539, 0.0
      %v572 = vmax.f32 %v540, 0.0
      %v573 = vmax.f32 %v541, 0.0
      %v574 = vmax.f32 %v542, 0.0
      %v575 = vmax.f32 %v543, 0.0
      %v576 = vmax.f32 %v544, 0.0
      %v577 = vld [vmem:[%s3] sm:$0xff]
      %v578 = vld [vmem:[%s3 + $0x8] sm:$0xff]
      %v579 = vld [vmem:[%s3 + $0x10] sm:$0xff]
      %v580 = vld [vmem:[%s3 + $0x18] sm:$0xff]
      %v581 = vld [vmem:[%s3 + $0x20] sm:$0xff]
      %v582 = vld [vmem:[%s3 + $0x28] sm:$0xff]
      %v583 = vld [vmem:[%s3 + $0x30] sm:$0xff]
      %v584 = vld [vmem:[%s3 + $0x38] sm:$0xff]
      %v585 = vld [vmem:[%s3 + $0x40] sm:$0xff]
      %v586 = vld [vmem:[%s3 + $0x48] sm:$0xff]
      %v587 = vld [vmem:[%s3 + $0x50] sm:$0xff]
      %v588 = vld [vmem:[%s3 + $0x58] sm:$0xff]
      %v589 = vld [vmem:[%s3 + $0x60] sm:$0xff]
      %v590 = vld [vmem:[%s3 + $0x68] sm:$0xff]
      %v591 = vld [vmem:[%s3 + $0x70] sm:$0xff]
      %v592 = vld [vmem:[%s3 + $0x78] sm:$0xff]
      %593 = vmatpush.msra.mxu0 %v592
      %594 = vmatpush.msra.mxu0 %v591
      %595 = vmatpush.msra.mxu0 %v590
      %596 = vmatpush.msra.mxu0 %v589
      %597 = vmatpush.msra.mxu0 %v588
      %598 = vmatpush.msra.mxu0 %v587
      %599 = vmatpush.msra.mxu0 %v586
      %600 = vmatpush.msra.mxu0 %v585
      %601 = vmatpush.msra.mxu0 %v584
      %602 = vmatpush.msra.mxu0 %v583
      %603 = vmatpush.msra.mxu0 %v582
      %604 = vmatpush.msra.mxu0 %v581
      %605 = vmatpush.msra.mxu0 %v580
      %606 = vmatpush.msra.mxu0 %v579
      %607 = vmatpush.msra.mxu0 %v578
      %608 = vmatpush.msra.mxu0 %v577
      %609 = vmatmul.f32.gmra.mxu0 %v545
      %v610 = vpop.f32.mrf.mxu0
      %v611 = vadd.f32 0.0, %v610
      %612 = vmatmul.f32.gmra.mxu0 %v546
      %v613 = vpop.f32.mrf.mxu0
      %v614 = vadd.f32 0.0, %v613
      %615 = vmatmul.f32.gmra.mxu0 %v547
      %v616 = vpop.f32.mrf.mxu0
      %v617 = vadd.f32 0.0, %v616
      %618 = vmatmul.f32.gmra.mxu0 %v548
      %v619 = vpop.f32.mrf.mxu0
      %v620 = vadd.f32 0.0, %v619
      %621 = vmatmul.f32.gmra.mxu0 %v549
      %v622 = vpop.f32.mrf.mxu0
      %v623 = vadd.f32 0.0, %v622
      %624 = vmatmul.f32.gmra.mxu0 %v550
      %v625 = vpop.f32.mrf.mxu0
      %v626 = vadd.f32 0.0, %v625
      %627 = vmatmul.f32.gmra.mxu0 %v551
      %v628 = vpop.f32.mrf.mxu0
      %v629 = vadd.f32 0.0, %v628
      %630 = vmatmul.f32.gmra.mxu0 %v552
      %v631 = vpop.f32.mrf.mxu0
      %v632 = vadd.f32 0.0, %v631
      %633 = vmatmul.f32.gmra.mxu0 %v553
      %v634 = vpop.f32.mrf.mxu0
      %v635 = vadd.f32 0.0, %v634
      %636 = vmatmul.f32.gmra.mxu0 %v554
      %v637 = vpop.f32.mrf.mxu0
      %v638 = vadd.f32 0.0, %v637
      %639 = vmatmul.f32.gmra.mxu0 %v555
      %v640 = vpop.f32.mrf.mxu0
      %v641 = vadd.f32 0.0, %v640
      %642 = vmatmul.f32.gmra.mxu0 %v556
      %v643 = vpop.f32.mrf.mxu0
      %v644 = vadd.f32 0.0, %v643
      %645 = vmatmul.f32.gmra.mxu0 %v557
      %v646 = vpop.f32.mrf.mxu0
      %v647 = vadd.f32 0.0, %v646
      %648 = vmatmul.f32.gmra.mxu0 %v558
      %v649 = vpop.f32.mrf.mxu0
      %v650 = vadd.f32 0.0, %v649
      %651 = vmatmul.f32.gmra.mxu0 %v559
      %v652 = vpop.f32.mrf.mxu0
      %v653 = vadd.f32 0.0, %v652
      %654 = vmatmul.f32.gmra.mxu0 %v560
      %v655 = vpop.f32.mrf.mxu0
      %v656 = vadd.f32 0.0, %v655
      %657 = vmatmul.f32.gmra.mxu0 %v561
      %v658 = vpop.f32.mrf.mxu0
      %v659 = vadd.f32 0.0, %v658
      %660 = vmatmul.f32.gmra.mxu0 %v562
      %v661 = vpop.f32.mrf.mxu0
      %v662 = vadd.f32 0.0, %v661
      %663 = vmatmul.f32.gmra.mxu0 %v563
      %v664 = vpop.f32.mrf.mxu0
      %v665 = vadd.f32 0.0, %v664
      %666 = vmatmul.f32.gmra.mxu0 %v564
      %v667 = vpop.f32.mrf.mxu0
      %v668 = vadd.f32 0.0, %v667
      %669 = vmatmul.f32.gmra.mxu0 %v565
      %v670 = vpop.f32.mrf.mxu0
      %v671 = vadd.f32 0.0, %v670
      %672 = vmatmul.f32.gmra.mxu0 %v566
      %v673 = vpop.f32.mrf.mxu0
      %v674 = vadd.f32 0.0, %v673
      %675 = vmatmul.f32.gmra.mxu0 %v567
      %v676 = vpop.f32.mrf.mxu0
      %v677 = vadd.f32 0.0, %v676
      %678 = vmatmul.f32.gmra.mxu0 %v568
      %v679 = vpop.f32.mrf.mxu0
      %v680 = vadd.f32 0.0, %v679
      %681 = vmatmul.f32.gmra.mxu0 %v569
      %v682 = vpop.f32.mrf.mxu0
      %v683 = vadd.f32 0.0, %v682
      %684 = vmatmul.f32.gmra.mxu0 %v570
      %v685 = vpop.f32.mrf.mxu0
      %v686 = vadd.f32 0.0, %v685
      %687 = vmatmul.f32.gmra.mxu0 %v571
      %v688 = vpop.f32.mrf.mxu0
      %v689 = vadd.f32 0.0, %v688
      %690 = vmatmul.f32.gmra.mxu0 %v572
      %v691 = vpop.f32.mrf.mxu0
      %v692 = vadd.f32 0.0, %v691
      %693 = vmatmul.f32.gmra.mxu0 %v573
      %v694 = vpop.f32.mrf.mxu0
      %v695 = vadd.f32 0.0, %v694
      %696 = vmatmul.f32.gmra.mxu0 %v574
      %v697 = vpop.f32.mrf.mxu0
      %v698 = vadd.f32 0.0, %v697
      %699 = vmatmul.f32.gmra.mxu0 %v575
      %v700 = vpop.f32.mrf.mxu0
      %v701 = vadd.f32 0.0, %v700
      %702 = vmatmul.f32.gmra.mxu0 %v576
      %v703 = vpop.f32.mrf.mxu0
      %v704 = vadd.f32 0.0, %v703
      %705 = vdwg.mxu0
      %v706 = vld [vmem:[%s4] sm:$0x1]
      %v708 = vperm.slane %v706, 0
      %v710 = vmul.f32 %v611, %v708
      %v711 = vmul.f32 %v614, %v708
      %v712 = vmul.f32 %v617, %v708
      %v713 = vmul.f32 %v620, %v708
      %v714 = vmul.f32 %v623, %v708
      %v715 = vmul.f32 %v626, %v708
      %v716 = vmul.f32 %v629, %v708
      %v717 = vmul.f32 %v632, %v708
      %v718 = vmul.f32 %v635, %v708
      %v719 = vmul.f32 %v638, %v708
      %v720 = vmul.f32 %v641, %v708
      %v721 = vmul.f32 %v644, %v708
      %v722 = vmul.f32 %v647, %v708
      %v723 = vmul.f32 %v650, %v708
      %v724 = vmul.f32 %v653, %v708
      %v725 = vmul.f32 %v656, %v708
      %v726 = vmul.f32 %v659, %v708
      %v727 = vmul.f32 %v662, %v708
      %v728 = vmul.f32 %v665, %v708
      %v729 = vmul.f32 %v668, %v708
      %v730 = vmul.f32 %v671, %v708
      %v731 = vmul.f32 %v674, %v708
      %v732 = vmul.f32 %v677, %v708
      %v733 = vmul.f32 %v680, %v708
      %v734 = vmul.f32 %v683, %v708
      %v735 = vmul.f32 %v686, %v708
      %v736 = vmul.f32 %v689, %v708
      %v737 = vmul.f32 %v692, %v708
      %v738 = vmul.f32 %v695, %v708
      %v739 = vmul.f32 %v698, %v708
      %v740 = vmul.f32 %v701, %v708
      %v741 = vmul.f32 %v704, %v708
      %v742 = vld [vmem:[%s5] sm:$0x1]
      %v744 = vperm.slane %v742, 0
      %v746 = vadd.f32 %v710, %v744
      %v747 = vadd.f32 %v711, %v744
      %v748 = vadd.f32 %v712, %v744
      %v749 = vadd.f32 %v713, %v744
      %v750 = vadd.f32 %v714, %v744
      %v751 = vadd.f32 %v715, %v744
      %v752 = vadd.f32 %v716, %v744
      %v753 = vadd.f32 %v717, %v744
      %v754 = vadd.f32 %v718, %v744
      %v755 = vadd.f32 %v719, %v744
      %v756 = vadd.f32 %v720, %v744
      %v757 = vadd.f32 %v721, %v744
      %v758 = vadd.f32 %v722, %v744
      %v759 = vadd.f32 %v723, %v744
      %v760 = vadd.f32 %v724, %v744
      %v761 = vadd.f32 %v725, %v744
      %v762 = vadd.f32 %v726, %v744
      %v763 = vadd.f32 %v727, %v744
      %v764 = vadd.f32 %v728, %v744
      %v765 = vadd.f32 %v729, %v744
      %v766 = vadd.f32 %v730, %v744
      %v767 = vadd.f32 %v731, %v744
      %v768 = vadd.f32 %v732, %v744
      %v769 = vadd.f32 %v733, %v744
      %v770 = vadd.f32 %v734, %v744
      %v771 = vadd.f32 %v735, %v744
      %v772 = vadd.f32 %v736, %v744
      %v773 = vadd.f32 %v737, %v744
      %v774 = vadd.f32 %v738, %v744
      %v775 = vadd.f32 %v739, %v744
      %v776 = vadd.f32 %v740, %v744
      %v777 = vadd.f32 %v741, %v744
      %v778 = vmax.f32 %v746, 0.0
      %v779 = vmax.f32 %v747, 0.0
      %v780 = vmax.f32 %v748, 0.0
      %v781 = vmax.f32 %v749, 0.0
      %v782 = vmax.f32 %v750, 0.0
      %v783 = vmax.f32 %v751, 0.0
      %v784 = vmax.f32 %v752, 0.0
      %v785 = vmax.f32 %v753, 0.0
      %v786 = vmax.f32 %v754, 0.0
      %v787 = vmax.f32 %v755, 0.0
      %v788 = vmax.f32 %v756, 0.0
      %v789 = vmax.f32 %v757, 0.0
      %v790 = vmax.f32 %v758, 0.0
      %v791 = vmax.f32 %v759, 0.0
      %v792 = vmax.f32 %v760, 0.0
      %v793 = vmax.f32 %v761, 0.0
      %v794 = vmax.f32 %v762, 0.0
      %v795 = vmax.f32 %v763, 0.0
      %v796 = vmax.f32 %v764, 0.0
      %v797 = vmax.f32 %v765, 0.0
      %v798 = vmax.f32 %v766, 0.0
      %v799 = vmax.f32 %v767, 0.0
      %v800 = vmax.f32 %v768, 0.0
      %v801 = vmax.f32 %v769, 0.0
      %v802 = vmax.f32 %v770, 0.0
      %v803 = vmax.f32 %v771, 0.0
      %v804 = vmax.f32 %v772, 0.0
      %v805 = vmax.f32 %v773, 0.0
      %v806 = vmax.f32 %v774, 0.0
      %v807 = vmax.f32 %v775, 0.0
      %v808 = vmax.f32 %v776, 0.0
      %v809 = vmax.f32 %v777, 0.0
      %810 = vst [vmem:[#allocation2] sm:$0xff] 0.0
      %811 = vst [vmem:[#allocation2 + $0x8] sm:$0xff] 0.0
      %812 = vst [vmem:[#allocation2 + $0x10] sm:$0xff] 0.0
      %813 = vst [vmem:[#allocation2 + $0x118] sm:$0xff] 0.0
      %814 = vst [vmem:[#allocation2 + $0x120] sm:$0xff] 0.0
      %815 = vst [vmem:[#allocation2 + $0x128] sm:$0xff] 0.0
      %816 = vst [vmem:[#allocation2 + $0x18] sm:$0xff] %v778
      %817 = vst [vmem:[#allocation2 + $0x20] sm:$0xff] %v779
      %818 = vst [vmem:[#allocation2 + $0x28] sm:$0xff] %v780
      %819 = vst [vmem:[#allocation2 + $0x30] sm:$0xff] %v781
      %820 = vst [vmem:[#allocation2 + $0x38] sm:$0xff] %v782
      %821 = vst [vmem:[#allocation2 + $0x40] sm:$0xff] %v783
      %822 = vst [vmem:[#allocation2 + $0x48] sm:$0xff] %v784
      %823 = vst [vmem:[#allocation2 + $0x50] sm:$0xff] %v785
      %824 = vst [vmem:[#allocation2 + $0x58] sm:$0xff] %v786
      %825 = vst [vmem:[#allocation2 + $0x60] sm:$0xff] %v787
      %826 = vst [vmem:[#allocation2 + $0x68] sm:$0xff] %v788
      %827 = vst [vmem:[#allocation2 + $0x70] sm:$0xff] %v789
      %828 = vst [vmem:[#allocation2 + $0x78] sm:$0xff] %v790
      %829 = vst [vmem:[#allocation2 + $0x80] sm:$0xff] %v791
      %830 = vst [vmem:[#allocation2 + $0x88] sm:$0xff] %v792
      %831 = vst [vmem:[#allocation2 + $0x90] sm:$0xff] %v793
      %832 = vst [vmem:[#allocation2 + $0x98] sm:$0xff] %v794
      %833 = vst [vmem:[#allocation2 + $0xa0] sm:$0xff] %v795
      %834 = vst [vmem:[#allocation2 + $0xa8] sm:$0xff] %v796
      %835 = vst [vmem:[#allocation2 + $0xb0] sm:$0xff] %v797
      %836 = vst [vmem:[#allocation2 + $0xb8] sm:$0xff] %v798
      %837 = vst [vmem:[#allocation2 + $0xc0] sm:$0xff] %v799
      %838 = vst [vmem:[#allocation2 + $0xc8] sm:$0xff] %v800
      %839 = vst [vmem:[#allocation2 + $0xd0] sm:$0xff] %v801
      %840 = vst [vmem:[#allocation2 + $0xd8] sm:$0xff] %v802
      %841 = vst [vmem:[#allocation2 + $0xe0] sm:$0xff] %v803
      %842 = vst [vmem:[#allocation2 + $0xe8] sm:$0xff] %v804
      %843 = vst [vmem:[#allocation2 + $0xf0] sm:$0xff] %v805
      %844 = vst [vmem:[#allocation2 + $0xf8] sm:$0xff] %v806
      %845 = vst [vmem:[#allocation2 + $0x100] sm:$0xff] %v807
      %846 = vst [vmem:[#allocation2 + $0x108] sm:$0xff] %v808
      %847 = vst [vmem:[#allocation2 + $0x110] sm:$0xff] %v809
      %v848 = vlaneseq
      %v849 = vshrl.u32 %v848, 7
      %v850 = vadd.s32 %v849, 8
      %vm851 = vcmp.ne.s32.totalorder %v849, 0
      %vm852 = vcmp.ne.s32.totalorder %v850, 0
      %vm853 = vcmp.ne.s32.totalorder %v849, 15
      %vm854 = vcmp.ne.s32.totalorder %v850, 15
      %v855 = vld [vmem:[#allocation2 + $0x7] sm:$0xff]
      %v856 = vld [vmem:[#allocation2 + $0xf] sm:$0xff]
      %v857 = vld [vmem:[#allocation2 + $0x17] sm:$0xff]
      %v858 = vld [vmem:[#allocation2 + $0x1f] sm:$0xff]
      %v859 = vld [vmem:[#allocation2 + $0x27] sm:$0xff]
      %v860 = vld [vmem:[#allocation2 + $0x2f] sm:$0xff]
      %v861 = vld [vmem:[#allocation2 + $0x37] sm:$0xff]
      %v862 = vld [vmem:[#allocation2 + $0x3f] sm:$0xff]
      %v863 = vld [vmem:[#allocation2 + $0x47] sm:$0xff]
      %v864 = vld [vmem:[#allocation2 + $0x4f] sm:$0xff]
      %v865 = vld [vmem:[#allocation2 + $0x57] sm:$0xff]
      %v866 = vld [vmem:[#allocation2 + $0x5f] sm:$0xff]
      %v867 = vld [vmem:[#allocation2 + $0x67] sm:$0xff]
      %v868 = vld [vmem:[#allocation2 + $0x6f] sm:$0xff]
      %v869 = vld [vmem:[#allocation2 + $0x77] sm:$0xff]
      %v870 = vld [vmem:[#allocation2 + $0x7f] sm:$0xff]
      %v871 = vld [vmem:[#allocation2 + $0x87] sm:$0xff]
      %v872 = vld [vmem:[#allocation2 + $0x8f] sm:$0xff]
      %v873 = vld [vmem:[#allocation2 + $0x97] sm:$0xff]
      %v874 = vld [vmem:[#allocation2 + $0x9f] sm:$0xff]
      %v875 = vld [vmem:[#allocation2 + $0xa7] sm:$0xff]
      %v876 = vld [vmem:[#allocation2 + $0xaf] sm:$0xff]
      %v877 = vld [vmem:[#allocation2 + $0xb7] sm:$0xff]
      %v878 = vld [vmem:[#allocation2 + $0xbf] sm:$0xff]
      %v879 = vld [vmem:[#allocation2 + $0xc7] sm:$0xff]
      %v880 = vld [vmem:[#allocation2 + $0xcf] sm:$0xff]
      %v881 = vld [vmem:[#allocation2 + $0xd7] sm:$0xff]
      %v882 = vld [vmem:[#allocation2 + $0xdf] sm:$0xff]
      %v883 = vld [vmem:[#allocation2 + $0xe7] sm:$0xff]
      %v884 = vld [vmem:[#allocation2 + $0xef] sm:$0xff]
      %v885 = vld [vmem:[#allocation2 + $0xf7] sm:$0xff]
      %v886 = vld [vmem:[#allocation2 + $0xff] sm:$0xff]
      %v887 = vsel %vm851, %v855, 0.0
      %v888 = vsel %vm852, %v856, 0.0
      %v889 = vsel %vm851, %v857, 0.0
      %v890 = vsel %vm852, %v858, 0.0
      %v891 = vsel %vm851, %v859, 0.0
      %v892 = vsel %vm852, %v860, 0.0
      %v893 = vsel %vm851, %v861, 0.0
      %v894 = vsel %vm852, %v862, 0.0
      %v895 = vsel %vm851, %v863, 0.0
      %v896 = vsel %vm852, %v864, 0.0
      %v897 = vsel %vm851, %v865, 0.0
      %v898 = vsel %vm852, %v866, 0.0
      %v899 = vsel %vm851, %v867, 0.0
      %v900 = vsel %vm852, %v868, 0.0
      %v901 = vsel %vm851, %v869, 0.0
      %v902 = vsel %vm852, %v870, 0.0
      %v903 = vsel %vm851, %v871, 0.0
      %v904 = vsel %vm852, %v872, 0.0
      %v905 = vsel %vm851, %v873, 0.0
      %v906 = vsel %vm852, %v874, 0.0
      %v907 = vsel %vm851, %v875, 0.0
      %v908 = vsel %vm852, %v876, 0.0
      %v909 = vsel %vm851, %v877, 0.0
      %v910 = vsel %vm852, %v878, 0.0
      %v911 = vsel %vm851, %v879, 0.0
      %v912 = vsel %vm852, %v880, 0.0
      %v913 = vsel %vm851, %v881, 0.0
      %v914 = vsel %vm852, %v882, 0.0
      %v915 = vsel %vm851, %v883, 0.0
      %v916 = vsel %vm852, %v884, 0.0
      %v917 = vsel %vm851, %v885, 0.0
      %v918 = vsel %vm852, %v886, 0.0
      %v919 = vld [vmem:[%s6] sm:$0xff]
      %v920 = vld [vmem:[%s6 + $0x8] sm:$0xff]
      %v921 = vld [vmem:[%s6 + $0x10] sm:$0xff]
      %v922 = vld [vmem:[%s6 + $0x18] sm:$0xff]
      %v923 = vld [vmem:[%s6 + $0x20] sm:$0xff]
      %v924 = vld [vmem:[%s6 + $0x28] sm:$0xff]
      %v925 = vld [vmem:[%s6 + $0x30] sm:$0xff]
      %v926 = vld [vmem:[%s6 + $0x38] sm:$0xff]
      %v927 = vld [vmem:[%s6 + $0x40] sm:$0xff]
      %v928 = vld [vmem:[%s6 + $0x48] sm:$0xff]
      %v929 = vld [vmem:[%s6 + $0x50] sm:$0xff]
      %v930 = vld [vmem:[%s6 + $0x58] sm:$0xff]
      %v931 = vld [vmem:[%s6 + $0x60] sm:$0xff]
      %v932 = vld [vmem:[%s6 + $0x68] sm:$0xff]
      %v933 = vld [vmem:[%s6 + $0x70] sm:$0xff]
      %v934 = vld [vmem:[%s6 + $0x78] sm:$0xff]
      %v935 = vld [vmem:[#allocation2 + $0x8] sm:$0xff]
      %v936 = vld [vmem:[#allocation2 + $0x10] sm:$0xff]
      %v937 = vld [vmem:[#allocation2 + $0x18] sm:$0xff]
      %v938 = vld [vmem:[#allocation2 + $0x20] sm:$0xff]
      %v939 = vld [vmem:[#allocation2 + $0x28] sm:$0xff]
      %v940 = vld [vmem:[#allocation2 + $0x30] sm:$0xff]
      %v941 = vld [vmem:[#allocation2 + $0x38] sm:$0xff]
      %v942 = vld [vmem:[#allocation2 + $0x40] sm:$0xff]
      %v943 = vld [vmem:[#allocation2 + $0x48] sm:$0xff]
      %v944 = vld [vmem:[#allocation2 + $0x50] sm:$0xff]
      %v945 = vld [vmem:[#allocation2 + $0x58] sm:$0xff]
      %v946 = vld [vmem:[#allocation2 + $0x60] sm:$0xff]
      %v947 = vld [vmem:[#allocation2 + $0x68] sm:$0xff]
      %v948 = vld [vmem:[#allocation2 + $0x70] sm:$0xff]
      %v949 = vld [vmem:[#allocation2 + $0x78] sm:$0xff]
      %v950 = vld [vmem:[#allocation2 + $0x80] sm:$0xff]
      %v951 = vld [vmem:[#allocation2 + $0x88] sm:$0xff]
      %v952 = vld [vmem:[#allocation2 + $0x90] sm:$0xff]
      %v953 = vld [vmem:[#allocation2 + $0x98] sm:$0xff]
      %v954 = vld [vmem:[#allocation2 + $0xa0] sm:$0xff]
      %v955 = vld [vmem:[#allocation2 + $0xa8] sm:$0xff]
      %v956 = vld [vmem:[#allocation2 + $0xb0] sm:$0xff]
      %v957 = vld [vmem:[#allocation2 + $0xb8] sm:$0xff]
      %v958 = vld [vmem:[#allocation2 + $0xc0] sm:$0xff]
      %v959 = vld [vmem:[#allocation2 + $0xc8] sm:$0xff]
      %v960 = vld [vmem:[#allocation2 + $0xd0] sm:$0xff]
      %v961 = vld [vmem:[#allocation2 + $0xd8] sm:$0xff]
      %v962 = vld [vmem:[#allocation2 + $0xe0] sm:$0xff]
      %v963 = vld [vmem:[#allocation2 + $0xe8] sm:$0xff]
      %v964 = vld [vmem:[#allocation2 + $0xf0] sm:$0xff]
      %v965 = vld [vmem:[#allocation2 + $0xf8] sm:$0xff]
      %v966 = vld [vmem:[#allocation2 + $0x100] sm:$0xff]
      %s967 = scalar_lea.vmem %s6, 128
      %v968 = vld [vmem:[%s967] sm:$0xff]
      %v969 = vld [vmem:[%s967 + $0x8] sm:$0xff]
      %v970 = vld [vmem:[%s967 + $0x10] sm:$0xff]
      %v971 = vld [vmem:[%s967 + $0x18] sm:$0xff]
      %v972 = vld [vmem:[%s967 + $0x20] sm:$0xff]
      %v973 = vld [vmem:[%s967 + $0x28] sm:$0xff]
      %v974 = vld [vmem:[%s967 + $0x30] sm:$0xff]
      %v975 = vld [vmem:[%s967 + $0x38] sm:$0xff]
      %v976 = vld [vmem:[%s967 + $0x40] sm:$0xff]
      %v977 = vld [vmem:[%s967 + $0x48] sm:$0xff]
      %v978 = vld [vmem:[%s967 + $0x50] sm:$0xff]
      %v979 = vld [vmem:[%s967 + $0x58] sm:$0xff]
      %v980 = vld [vmem:[%s967 + $0x60] sm:$0xff]
      %v981 = vld [vmem:[%s967 + $0x68] sm:$0xff]
      %v982 = vld [vmem:[%s967 + $0x70] sm:$0xff]
      %v983 = vld [vmem:[%s967 + $0x78] sm:$0xff]
      %984 = vmatpush.msra.mxu0 %v983
      %985 = vmatpush.msra.mxu0 %v982
      %986 = vmatpush.msra.mxu0 %v981
      %987 = vmatpush.msra.mxu0 %v980
      %988 = vmatpush.msra.mxu0 %v979
      %989 = vmatpush.msra.mxu0 %v978
      %990 = vmatpush.msra.mxu0 %v977
      %991 = vmatpush.msra.mxu0 %v976
      %992 = vmatpush.msra.mxu0 %v975
      %993 = vmatpush.msra.mxu0 %v974
      %994 = vmatpush.msra.mxu0 %v973
      %995 = vmatpush.msra.mxu0 %v972
      %996 = vmatpush.msra.mxu0 %v971
      %997 = vmatpush.msra.mxu0 %v970
      %998 = vmatpush.msra.mxu0 %v969
      %999 = vmatpush.msra.mxu0 %v968
      %1000 = vmatmul.f32.gmra.mxu0 %v935
      %v1001 = vpop.f32.mrf.mxu0
      %v1002 = vadd.f32 0.0, %v1001
      %1003 = vmatmul.f32.gmra.mxu0 %v936
      %v1004 = vpop.f32.mrf.mxu0
      %v1005 = vadd.f32 0.0, %v1004
      %1006 = vmatmul.f32.gmra.mxu0 %v937
      %v1007 = vpop.f32.mrf.mxu0
      %v1008 = vadd.f32 0.0, %v1007
      %1009 = vmatmul.f32.gmra.mxu0 %v938
      %v1010 = vpop.f32.mrf.mxu0
      %v1011 = vadd.f32 0.0, %v1010
      %1012 = vmatmul.f32.gmra.mxu0 %v939
      %v1013 = vpop.f32.mrf.mxu0
      %v1014 = vadd.f32 0.0, %v1013
      %1015 = vmatmul.f32.gmra.mxu0 %v940
      %v1016 = vpop.f32.mrf.mxu0
      %v1017 = vadd.f32 0.0, %v1016
      %1018 = vmatmul.f32.gmra.mxu0 %v941
      %v1019 = vpop.f32.mrf.mxu0
      %v1020 = vadd.f32 0.0, %v1019
      %1021 = vmatmul.f32.gmra.mxu0 %v942
      %v1022 = vpop.f32.mrf.mxu0
      %v1023 = vadd.f32 0.0, %v1022
      %1024 = vmatmul.f32.gmra.mxu0 %v943
      %v1025 = vpop.f32.mrf.mxu0
      %v1026 = vadd.f32 0.0, %v1025
      %1027 = vmatmul.f32.gmra.mxu0 %v944
      %v1028 = vpop.f32.mrf.mxu0
      %v1029 = vadd.f32 0.0, %v1028
      %1030 = vmatmul.f32.gmra.mxu0 %v945
      %v1031 = vpop.f32.mrf.mxu0
      %v1032 = vadd.f32 0.0, %v1031
      %1033 = vmatmul.f32.gmra.mxu0 %v946
      %v1034 = vpop.f32.mrf.mxu0
      %v1035 = vadd.f32 0.0, %v1034
      %1036 = vmatmul.f32.gmra.mxu0 %v947
      %v1037 = vpop.f32.mrf.mxu0
      %v1038 = vadd.f32 0.0, %v1037
      %1039 = vmatmul.f32.gmra.mxu0 %v948
      %v1040 = vpop.f32.mrf.mxu0
      %v1041 = vadd.f32 0.0, %v1040
      %1042 = vmatmul.f32.gmra.mxu0 %v949
      %v1043 = vpop.f32.mrf.mxu0
      %v1044 = vadd.f32 0.0, %v1043
      %1045 = vmatmul.f32.gmra.mxu0 %v950
      %v1046 = vpop.f32.mrf.mxu0
      %v1047 = vadd.f32 0.0, %v1046
      %1048 = vmatmul.f32.gmra.mxu0 %v951
      %v1049 = vpop.f32.mrf.mxu0
      %v1050 = vadd.f32 0.0, %v1049
      %1051 = vmatmul.f32.gmra.mxu0 %v952
      %v1052 = vpop.f32.mrf.mxu0
      %v1053 = vadd.f32 0.0, %v1052
      %1054 = vmatmul.f32.gmra.mxu0 %v953
      %v1055 = vpop.f32.mrf.mxu0
      %v1056 = vadd.f32 0.0, %v1055
      %1057 = vmatmul.f32.gmra.mxu0 %v954
      %v1058 = vpop.f32.mrf.mxu0
      %v1059 = vadd.f32 0.0, %v1058
      %1060 = vmatmul.f32.gmra.mxu0 %v955
      %v1061 = vpop.f32.mrf.mxu0
      %v1062 = vadd.f32 0.0, %v1061
      %1063 = vmatmul.f32.gmra.mxu0 %v956
      %v1064 = vpop.f32.mrf.mxu0
      %v1065 = vadd.f32 0.0, %v1064
      %1066 = vmatmul.f32.gmra.mxu0 %v957
      %v1067 = vpop.f32.mrf.mxu0
      %v1068 = vadd.f32 0.0, %v1067
      %1069 = vmatmul.f32.gmra.mxu0 %v958
      %v1070 = vpop.f32.mrf.mxu0
      %v1071 = vadd.f32 0.0, %v1070
      %1072 = vmatmul.f32.gmra.mxu0 %v959
      %v1073 = vpop.f32.mrf.mxu0
      %v1074 = vadd.f32 0.0, %v1073
      %1075 = vmatmul.f32.gmra.mxu0 %v960
      %v1076 = vpop.f32.mrf.mxu0
      %v1077 = vadd.f32 0.0, %v1076
      %1078 = vmatmul.f32.gmra.mxu0 %v961
      %v1079 = vpop.f32.mrf.mxu0
      %v1080 = vadd.f32 0.0, %v1079
      %1081 = vmatmul.f32.gmra.mxu0 %v962
      %v1082 = vpop.f32.mrf.mxu0
      %v1083 = vadd.f32 0.0, %v1082
      %1084 = vmatmul.f32.gmra.mxu0 %v963
      %v1085 = vpop.f32.mrf.mxu0
      %v1086 = vadd.f32 0.0, %v1085
      %1087 = vmatmul.f32.gmra.mxu0 %v964
      %v1088 = vpop.f32.mrf.mxu0
      %v1089 = vadd.f32 0.0, %v1088
      %1090 = vmatmul.f32.gmra.mxu0 %v965
      %v1091 = vpop.f32.mrf.mxu0
      %v1092 = vadd.f32 0.0, %v1091
      %1093 = vmatmul.f32.gmra.mxu0 %v966
      %v1094 = vpop.f32.mrf.mxu0
      %v1095 = vadd.f32 0.0, %v1094
      %1096 = vdwg.mxu0
      %1097 = vmatpush.msra.mxu0 %v934
      %1098 = vmatpush.msra.mxu0 %v933
      %1099 = vmatpush.msra.mxu0 %v932
      %1100 = vmatpush.msra.mxu0 %v931
      %1101 = vmatpush.msra.mxu0 %v930
      %1102 = vmatpush.msra.mxu0 %v929
      %1103 = vmatpush.msra.mxu0 %v928
      %1104 = vmatpush.msra.mxu0 %v927
      %1105 = vmatpush.msra.mxu0 %v926
      %1106 = vmatpush.msra.mxu0 %v925
      %1107 = vmatpush.msra.mxu0 %v924
      %1108 = vmatpush.msra.mxu0 %v923
      %1109 = vmatpush.msra.mxu0 %v922
      %1110 = vmatpush.msra.mxu0 %v921
      %1111 = vmatpush.msra.mxu0 %v920
      %1112 = vmatpush.msra.mxu0 %v919
      %1113 = vmatmul.f32.gmra.mxu0 %v887
      %v1114 = vpop.f32.mrf.mxu0
      %v1115 = vadd.f32 %v1002, %v1114
      %1116 = vmatmul.f32.gmra.mxu0 %v888
      %v1117 = vpop.f32.mrf.mxu0
      %v1118 = vadd.f32 %v1005, %v1117
      %1119 = vmatmul.f32.gmra.mxu0 %v889
      %v1120 = vpop.f32.mrf.mxu0
      %v1121 = vadd.f32 %v1008, %v1120
      %1122 = vmatmul.f32.gmra.mxu0 %v890
      %v1123 = vpop.f32.mrf.mxu0
      %v1124 = vadd.f32 %v1011, %v1123
      %1125 = vmatmul.f32.gmra.mxu0 %v891
      %v1126 = vpop.f32.mrf.mxu0
      %v1127 = vadd.f32 %v1014, %v1126
      %1128 = vmatmul.f32.gmra.mxu0 %v892
      %v1129 = vpop.f32.mrf.mxu0
      %v1130 = vadd.f32 %v1017, %v1129
      %1131 = vmatmul.f32.gmra.mxu0 %v893
      %v1132 = vpop.f32.mrf.mxu0
      %v1133 = vadd.f32 %v1020, %v1132
      %1134 = vmatmul.f32.gmra.mxu0 %v894
      %v1135 = vpop.f32.mrf.mxu0
      %v1136 = vadd.f32 %v1023, %v1135
      %1137 = vmatmul.f32.gmra.mxu0 %v895
      %v1138 = vpop.f32.mrf.mxu0
      %v1139 = vadd.f32 %v1026, %v1138
      %1140 = vmatmul.f32.gmra.mxu0 %v896
      %v1141 = vpop.f32.mrf.mxu0
      %v1142 = vadd.f32 %v1029, %v1141
      %1143 = vmatmul.f32.gmra.mxu0 %v897
      %v1144 = vpop.f32.mrf.mxu0
      %v1145 = vadd.f32 %v1032, %v1144
      %1146 = vmatmul.f32.gmra.mxu0 %v898
      %v1147 = vpop.f32.mrf.mxu0
      %v1148 = vadd.f32 %v1035, %v1147
      %1149 = vmatmul.f32.gmra.mxu0 %v899
      %v1150 = vpop.f32.mrf.mxu0
      %v1151 = vadd.f32 %v1038, %v1150
      %1152 = vmatmul.f32.gmra.mxu0 %v900
      %v1153 = vpop.f32.mrf.mxu0
      %v1154 = vadd.f32 %v1041, %v1153
      %1155 = vmatmul.f32.gmra.mxu0 %v901
      %v1156 = vpop.f32.mrf.mxu0
      %v1157 = vadd.f32 %v1044, %v1156
      %1158 = vmatmul.f32.gmra.mxu0 %v902
      %v1159 = vpop.f32.mrf.mxu0
      %v1160 = vadd.f32 %v1047, %v1159
      %1161 = vmatmul.f32.gmra.mxu0 %v903
      %v1162 = vpop.f32.mrf.mxu0
      %v1163 = vadd.f32 %v1050, %v1162
      %1164 = vmatmul.f32.gmra.mxu0 %v904
      %v1165 = vpop.f32.mrf.mxu0
      %v1166 = vadd.f32 %v1053, %v1165
      %1167 = vmatmul.f32.gmra.mxu0 %v905
      %v1168 = vpop.f32.mrf.mxu0
      %v1169 = vadd.f32 %v1056, %v1168
      %1170 = vmatmul.f32.gmra.mxu0 %v906
      %v1171 = vpop.f32.mrf.mxu0
      %v1172 = vadd.f32 %v1059, %v1171
      %1173 = vmatmul.f32.gmra.mxu0 %v907
      %v1174 = vpop.f32.mrf.mxu0
      %v1175 = vadd.f32 %v1062, %v1174
      %1176 = vmatmul.f32.gmra.mxu0 %v908
      %v1177 = vpop.f32.mrf.mxu0
      %v1178 = vadd.f32 %v1065, %v1177
      %1179 = vmatmul.f32.gmra.mxu0 %v909
      %v1180 = vpop.f32.mrf.mxu0
      %v1181 = vadd.f32 %v1068, %v1180
      %1182 = vmatmul.f32.gmra.mxu0 %v910
      %v1183 = vpop.f32.mrf.mxu0
      %v1184 = vadd.f32 %v1071, %v1183
      %1185 = vmatmul.f32.gmra.mxu0 %v911
      %v1186 = vpop.f32.mrf.mxu0
      %v1187 = vadd.f32 %v1074, %v1186
      %1188 = vmatmul.f32.gmra.mxu0 %v912
      %v1189 = vpop.f32.mrf.mxu0
      %v1190 = vadd.f32 %v1077, %v1189
      %1191 = vmatmul.f32.gmra.mxu0 %v913
      %v1192 = vpop.f32.mrf.mxu0
      %v1193 = vadd.f32 %v1080, %v1192
      %1194 = vmatmul.f32.gmra.mxu0 %v914
      %v1195 = vpop.f32.mrf.mxu0
      %v1196 = vadd.f32 %v1083, %v1195
      %1197 = vmatmul.f32.gmra.mxu0 %v915
      %v1198 = vpop.f32.mrf.mxu0
      %v1199 = vadd.f32 %v1086, %v1198
      %1200 = vmatmul.f32.gmra.mxu0 %v916
      %v1201 = vpop.f32.mrf.mxu0
      %v1202 = vadd.f32 %v1089, %v1201
      %1203 = vmatmul.f32.gmra.mxu0 %v917
      %v1204 = vpop.f32.mrf.mxu0
      %v1205 = vadd.f32 %v1092, %v1204
      %1206 = vmatmul.f32.gmra.mxu0 %v918
      %v1207 = vpop.f32.mrf.mxu0
      %v1208 = vadd.f32 %v1095, %v1207
      %1209 = vdwg.mxu0
      %v1210 = vld [vmem:[#allocation2 + $0x9] sm:$0xff]
      %v1211 = vld [vmem:[#allocation2 + $0x11] sm:$0xff]
      %v1212 = vld [vmem:[#allocation2 + $0x19] sm:$0xff]
      %v1213 = vld [vmem:[#allocation2 + $0x21] sm:$0xff]
      %v1214 = vld [vmem:[#allocation2 + $0x29] sm:$0xff]
      %v1215 = vld [vmem:[#allocation2 + $0x31] sm:$0xff]
      %v1216 = vld [vmem:[#allocation2 + $0x39] sm:$0xff]
      %v1217 = vld [vmem:[#allocation2 + $0x41] sm:$0xff]
      %v1218 = vld [vmem:[#allocation2 + $0x49] sm:$0xff]
      %v1219 = vld [vmem:[#allocation2 + $0x51] sm:$0xff]
      %v1220 = vld [vmem:[#allocation2 + $0x59] sm:$0xff]
      %v1221 = vld [vmem:[#allocation2 + $0x61] sm:$0xff]
      %v1222 = vld [vmem:[#allocation2 + $0x69] sm:$0xff]
      %v1223 = vld [vmem:[#allocation2 + $0x71] sm:$0xff]
      %v1224 = vld [vmem:[#allocation2 + $0x79] sm:$0xff]
      %v1225 = vld [vmem:[#allocation2 + $0x81] sm:$0xff]
      %v1226 = vld [vmem:[#allocation2 + $0x89] sm:$0xff]
      %v1227 = vld [vmem:[#allocation2 + $0x91] sm:$0xff]
      %v1228 = vld [vmem:[#allocation2 + $0x99] sm:$0xff]
      %v1229 = vld [vmem:[#allocation2 + $0xa1] sm:$0xff]
      %v1230 = vld [vmem:[#allocation2 + $0xa9] sm:$0xff]
      %v1231 = vld [vmem:[#allocation2 + $0xb1] sm:$0xff]
      %v1232 = vld [vmem:[#allocation2 + $0xb9] sm:$0xff]
      %v1233 = vld [vmem:[#allocation2 + $0xc1] sm:$0xff]
      %v1234 = vld [vmem:[#allocation2 + $0xc9] sm:$0xff]
      %v1235 = vld [vmem:[#allocation2 + $0xd1] sm:$0xff]
      %v1236 = vld [vmem:[#allocation2 + $0xd9] sm:$0xff]
      %v1237 = vld [vmem:[#allocation2 + $0xe1] sm:$0xff]
      %v1238 = vld [vmem:[#allocation2 + $0xe9] sm:$0xff]
      %v1239 = vld [vmem:[#allocation2 + $0xf1] sm:$0xff]
      %v1240 = vld [vmem:[#allocation2 + $0xf9] sm:$0xff]
      %v1241 = vld [vmem:[#allocation2 + $0x101] sm:$0xff]
      %v1242 = vsel %vm853, %v1210, 0.0
      %v1243 = vsel %vm854, %v1211, 0.0
      %v1244 = vsel %vm853, %v1212, 0.0
      %v1245 = vsel %vm854, %v1213, 0.0
      %v1246 = vsel %vm853, %v1214, 0.0
      %v1247 = vsel %vm854, %v1215, 0.0
      %v1248 = vsel %vm853, %v1216, 0.0
      %v1249 = vsel %vm854, %v1217, 0.0
      %v1250 = vsel %vm853, %v1218, 0.0
      %v1251 = vsel %vm854, %v1219, 0.0
      %v1252 = vsel %vm853, %v1220, 0.0
      %v1253 = vsel %vm854, %v1221, 0.0
      %v1254 = vsel %vm853, %v1222, 0.0
      %v1255 = vsel %vm854, %v1223, 0.0
      %v1256 = vsel %vm853, %v1224, 0.0
      %v1257 = vsel %vm854, %v1225, 0.0
      %v1258 = vsel %vm853, %v1226, 0.0
      %v1259 = vsel %vm854, %v1227, 0.0
      %v1260 = vsel %vm853, %v1228, 0.0
      %v1261 = vsel %vm854, %v1229, 0.0
      %v1262 = vsel %vm853, %v1230, 0.0
      %v1263 = vsel %vm854, %v1231, 0.0
      %v1264 = vsel %vm853, %v1232, 0.0
      %v1265 = vsel %vm854, %v1233, 0.0
      %v1266 = vsel %vm853, %v1234, 0.0
      %v1267 = vsel %vm854, %v1235, 0.0
      %v1268 = vsel %vm853, %v1236, 0.0
      %v1269 = vsel %vm854, %v1237, 0.0
      %v1270 = vsel %vm853, %v1238, 0.0
      %v1271 = vsel %vm854, %v1239, 0.0
      %v1272 = vsel %vm853, %v1240, 0.0
      %v1273 = vsel %vm854, %v1241, 0.0
      %s1274 = scalar_lea.vmem %s6, 256
      %v1275 = vld [vmem:[%s1274] sm:$0xff]
      %v1276 = vld [vmem:[%s1274 + $0x8] sm:$0xff]
      %v1277 = vld [vmem:[%s1274 + $0x10] sm:$0xff]
      %v1278 = vld [vmem:[%s1274 + $0x18] sm:$0xff]
      %v1279 = vld [vmem:[%s1274 + $0x20] sm:$0xff]
      %v1280 = vld [vmem:[%s1274 + $0x28] sm:$0xff]
      %v1281 = vld [vmem:[%s1274 + $0x30] sm:$0xff]
      %v1282 = vld [vmem:[%s1274 + $0x38] sm:$0xff]
      %v1283 = vld [vmem:[%s1274 + $0x40] sm:$0xff]
      %v1284 = vld [vmem:[%s1274 + $0x48] sm:$0xff]
      %v1285 = vld [vmem:[%s1274 + $0x50] sm:$0xff]
      %v1286 = vld [vmem:[%s1274 + $0x58] sm:$0xff]
      %v1287 = vld [vmem:[%s1274 + $0x60] sm:$0xff]
      %v1288 = vld [vmem:[%s1274 + $0x68] sm:$0xff]
      %v1289 = vld [vmem:[%s1274 + $0x70] sm:$0xff]
      %v1290 = vld [vmem:[%s1274 + $0x78] sm:$0xff]
      %1291 = vmatpush.msra.mxu0 %v1290
      %1292 = vmatpush.msra.mxu0 %v1289
      %1293 = vmatpush.msra.mxu0 %v1288
      %1294 = vmatpush.msra.mxu0 %v1287
      %1295 = vmatpush.msra.mxu0 %v1286
      %1296 = vmatpush.msra.mxu0 %v1285
      %1297 = vmatpush.msra.mxu0 %v1284
      %1298 = vmatpush.msra.mxu0 %v1283
      %1299 = vmatpush.msra.mxu0 %v1282
      %1300 = vmatpush.msra.mxu0 %v1281
      %1301 = vmatpush.msra.mxu0 %v1280
      %1302 = vmatpush.msra.mxu0 %v1279
      %1303 = vmatpush.msra.mxu0 %v1278
      %1304 = vmatpush.msra.mxu0 %v1277
      %1305 = vmatpush.msra.mxu0 %v1276
      %1306 = vmatpush.msra.mxu0 %v1275
      %1307 = vmatmul.f32.gmra.mxu0 %v1242
      %v1308 = vpop.f32.mrf.mxu0
      %v1309 = vadd.f32 0.0, %v1308
      %1310 = vmatmul.f32.gmra.mxu0 %v1243
      %v1311 = vpop.f32.mrf.mxu0
      %v1312 = vadd.f32 0.0, %v1311
      %1313 = vmatmul.f32.gmra.mxu0 %v1244
      %v1314 = vpop.f32.mrf.mxu0
      %v1315 = vadd.f32 0.0, %v1314
      %1316 = vmatmul.f32.gmra.mxu0 %v1245
      %v1317 = vpop.f32.mrf.mxu0
      %v1318 = vadd.f32 0.0, %v1317
      %1319 = vmatmul.f32.gmra.mxu0 %v1246
      %v1320 = vpop.f32.mrf.mxu0
      %v1321 = vadd.f32 0.0, %v1320
      %1322 = vmatmul.f32.gmra.mxu0 %v1247
      %v1323 = vpop.f32.mrf.mxu0
      %v1324 = vadd.f32 0.0, %v1323
      %1325 = vmatmul.f32.gmra.mxu0 %v1248
      %v1326 = vpop.f32.mrf.mxu0
      %v1327 = vadd.f32 0.0, %v1326
      %1328 = vmatmul.f32.gmra.mxu0 %v1249
      %v1329 = vpop.f32.mrf.mxu0
      %v1330 = vadd.f32 0.0, %v1329
      %1331 = vmatmul.f32.gmra.mxu0 %v1250
      %v1332 = vpop.f32.mrf.mxu0
      %v1333 = vadd.f32 0.0, %v1332
      %1334 = vmatmul.f32.gmra.mxu0 %v1251
      %v1335 = vpop.f32.mrf.mxu0
      %v1336 = vadd.f32 0.0, %v1335
      %1337 = vmatmul.f32.gmra.mxu0 %v1252
      %v1338 = vpop.f32.mrf.mxu0
      %v1339 = vadd.f32 0.0, %v1338
      %1340 = vmatmul.f32.gmra.mxu0 %v1253
      %v1341 = vpop.f32.mrf.mxu0
      %v1342 = vadd.f32 0.0, %v1341
      %1343 = vmatmul.f32.gmra.mxu0 %v1254
      %v1344 = vpop.f32.mrf.mxu0
      %v1345 = vadd.f32 0.0, %v1344
      %1346 = vmatmul.f32.gmra.mxu0 %v1255
      %v1347 = vpop.f32.mrf.mxu0
      %v1348 = vadd.f32 0.0, %v1347
      %1349 = vmatmul.f32.gmra.mxu0 %v1256
      %v1350 = vpop.f32.mrf.mxu0
      %v1351 = vadd.f32 0.0, %v1350
      %1352 = vmatmul.f32.gmra.mxu0 %v1257
      %v1353 = vpop.f32.mrf.mxu0
      %v1354 = vadd.f32 0.0, %v1353
      %1355 = vmatmul.f32.gmra.mxu0 %v1258
      %v1356 = vpop.f32.mrf.mxu0
      %v1357 = vadd.f32 0.0, %v1356
      %1358 = vmatmul.f32.gmra.mxu0 %v1259
      %v1359 = vpop.f32.mrf.mxu0
      %v1360 = vadd.f32 0.0, %v1359
      %1361 = vmatmul.f32.gmra.mxu0 %v1260
      %v1362 = vpop.f32.mrf.mxu0
      %v1363 = vadd.f32 0.0, %v1362
      %1364 = vmatmul.f32.gmra.mxu0 %v1261
      %v1365 = vpop.f32.mrf.mxu0
      %v1366 = vadd.f32 0.0, %v1365
      %1367 = vmatmul.f32.gmra.mxu0 %v1262
      %v1368 = vpop.f32.mrf.mxu0
      %v1369 = vadd.f32 0.0, %v1368
      %1370 = vmatmul.f32.gmra.mxu0 %v1263
      %v1371 = vpop.f32.mrf.mxu0
      %v1372 = vadd.f32 0.0, %v1371
      %1373 = vmatmul.f32.gmra.mxu0 %v1264
      %v1374 = vpop.f32.mrf.mxu0
      %v1375 = vadd.f32 0.0, %v1374
      %1376 = vmatmul.f32.gmra.mxu0 %v1265
      %v1377 = vpop.f32.mrf.mxu0
      %v1378 = vadd.f32 0.0, %v1377
      %1379 = vmatmul.f32.gmra.mxu0 %v1266
      %v1380 = vpop.f32.mrf.mxu0
      %v1381 = vadd.f32 0.0, %v1380
      %1382 = vmatmul.f32.gmra.mxu0 %v1267
      %v1383 = vpop.f32.mrf.mxu0
      %v1384 = vadd.f32 0.0, %v1383
      %1385 = vmatmul.f32.gmra.mxu0 %v1268
      %v1386 = vpop.f32.mrf.mxu0
      %v1387 = vadd.f32 0.0, %v1386
      %1388 = vmatmul.f32.gmra.mxu0 %v1269
      %v1389 = vpop.f32.mrf.mxu0
      %v1390 = vadd.f32 0.0, %v1389
      %1391 = vmatmul.f32.gmra.mxu0 %v1270
      %v1392 = vpop.f32.mrf.mxu0
      %v1393 = vadd.f32 0.0, %v1392
      %1394 = vmatmul.f32.gmra.mxu0 %v1271
      %v1395 = vpop.f32.mrf.mxu0
      %v1396 = vadd.f32 0.0, %v1395
      %1397 = vmatmul.f32.gmra.mxu0 %v1272
      %v1398 = vpop.f32.mrf.mxu0
      %v1399 = vadd.f32 0.0, %v1398
      %1400 = vmatmul.f32.gmra.mxu0 %v1273
      %v1401 = vpop.f32.mrf.mxu0
      %v1402 = vadd.f32 0.0, %v1401
      %1403 = vdwg.mxu0
      %v1404 = vadd.f32 %v1115, %v1309
      %v1405 = vadd.f32 %v1118, %v1312
      %v1406 = vadd.f32 %v1121, %v1315
      %v1407 = vadd.f32 %v1124, %v1318
      %v1408 = vadd.f32 %v1127, %v1321
      %v1409 = vadd.f32 %v1130, %v1324
      %v1410 = vadd.f32 %v1133, %v1327
      %v1411 = vadd.f32 %v1136, %v1330
      %v1412 = vadd.f32 %v1139, %v1333
      %v1413 = vadd.f32 %v1142, %v1336
      %v1414 = vadd.f32 %v1145, %v1339
      %v1415 = vadd.f32 %v1148, %v1342
      %v1416 = vadd.f32 %v1151, %v1345
      %v1417 = vadd.f32 %v1154, %v1348
      %v1418 = vadd.f32 %v1157, %v1351
      %v1419 = vadd.f32 %v1160, %v1354
      %v1420 = vadd.f32 %v1163, %v1357
      %v1421 = vadd.f32 %v1166, %v1360
      %v1422 = vadd.f32 %v1169, %v1363
      %v1423 = vadd.f32 %v1172, %v1366
      %v1424 = vadd.f32 %v1175, %v1369
      %v1425 = vadd.f32 %v1178, %v1372
      %v1426 = vadd.f32 %v1181, %v1375
      %v1427 = vadd.f32 %v1184, %v1378
      %v1428 = vadd.f32 %v1187, %v1381
      %v1429 = vadd.f32 %v1190, %v1384
      %v1430 = vadd.f32 %v1193, %v1387
      %v1431 = vadd.f32 %v1196, %v1390
      %v1432 = vadd.f32 %v1199, %v1393
      %v1433 = vadd.f32 %v1202, %v1396
      %v1434 = vadd.f32 %v1205, %v1399
      %v1435 = vadd.f32 %v1208, %v1402
      %v1436 = vld [vmem:[#allocation2 + $0x17] sm:$0xff]
      %v1437 = vld [vmem:[#allocation2 + $0x1f] sm:$0xff]
      %v1438 = vld [vmem:[#allocation2 + $0x27] sm:$0xff]
      %v1439 = vld [vmem:[#allocation2 + $0x2f] sm:$0xff]
      %v1440 = vld [vmem:[#allocation2 + $0x37] sm:$0xff]
      %v1441 = vld [vmem:[#allocation2 + $0x3f] sm:$0xff]
      %v1442 = vld [vmem:[#allocation2 + $0x47] sm:$0xff]
      %v1443 = vld [vmem:[#allocation2 + $0x4f] sm:$0xff]
      %v1444 = vld [vmem:[#allocation2 + $0x57] sm:$0xff]
      %v1445 = vld [vmem:[#allocation2 + $0x5f] sm:$0xff]
      %v1446 = vld [vmem:[#allocation2 + $0x67] sm:$0xff]
      %v1447 = vld [vmem:[#allocation2 + $0x6f] sm:$0xff]
      %v1448 = vld [vmem:[#allocation2 + $0x77] sm:$0xff]
      %v1449 = vld [vmem:[#allocation2 + $0x7f] sm:$0xff]
      %v1450 = vld [vmem:[#allocation2 + $0x87] sm:$0xff]
      %v1451 = vld [vmem:[#allocation2 + $0x8f] sm:$0xff]
      %v1452 = vld [vmem:[#allocation2 + $0x97] sm:$0xff]
      %v1453 = vld [vmem:[#allocation2 + $0x9f] sm:$0xff]
      %v1454 = vld [vmem:[#allocation2 + $0xa7] sm:$0xff]
      %v1455 = vld [vmem:[#allocation2 + $0xaf] sm:$0xff]
      %v1456 = vld [vmem:[#allocation2 + $0xb7] sm:$0xff]
      %v1457 = vld [vmem:[#allocation2 + $0xbf] sm:$0xff]
      %v1458 = vld [vmem:[#allocation2 + $0xc7] sm:$0xff]
      %v1459 = vld [vmem:[#allocation2 + $0xcf] sm:$0xff]
      %v1460 = vld [vmem:[#allocation2 + $0xd7] sm:$0xff]
      %v1461 = vld [vmem:[#allocation2 + $0xdf] sm:$0xff]
      %v1462 = vld [vmem:[#allocation2 + $0xe7] sm:$0xff]
      %v1463 = vld [vmem:[#allocation2 + $0xef] sm:$0xff]
      %v1464 = vld [vmem:[#allocation2 + $0xf7] sm:$0xff]
      %v1465 = vld [vmem:[#allocation2 + $0xff] sm:$0xff]
      %v1466 = vld [vmem:[#allocation2 + $0x107] sm:$0xff]
      %v1467 = vld [vmem:[#allocation2 + $0x10f] sm:$0xff]
      %v1468 = vsel %vm851, %v1436, 0.0
      %v1469 = vsel %vm852, %v1437, 0.0
      %v1470 = vsel %vm851, %v1438, 0.0
      %v1471 = vsel %vm852, %v1439, 0.0
      %v1472 = vsel %vm851, %v1440, 0.0
      %v1473 = vsel %vm852, %v1441, 0.0
      %v1474 = vsel %vm851, %v1442, 0.0
      %v1475 = vsel %vm852, %v1443, 0.0
      %v1476 = vsel %vm851, %v1444, 0.0
      %v1477 = vsel %vm852, %v1445, 0.0
      %v1478 = vsel %vm851, %v1446, 0.0
      %v1479 = vsel %vm852, %v1447, 0.0
      %v1480 = vsel %vm851, %v1448, 0.0
      %v1481 = vsel %vm852, %v1449, 0.0
      %v1482 = vsel %vm851, %v1450, 0.0
      %v1483 = vsel %vm852, %v1451, 0.0
      %v1484 = vsel %vm851, %v1452, 0.0
      %v1485 = vsel %vm852, %v1453, 0.0
      %v1486 = vsel %vm851, %v1454, 0.0
      %v1487 = vsel %vm852, %v1455, 0.0
      %v1488 = vsel %vm851, %v1456, 0.0
      %v1489 = vsel %vm852, %v1457, 0.0
      %v1490 = vsel %vm851, %v1458, 0.0
      %v1491 = vsel %vm852, %v1459, 0.0
      %v1492 = vsel %vm851, %v1460, 0.0
      %v1493 = vsel %vm852, %v1461, 0.0
      %v1494 = vsel %vm851, %v1462, 0.0
      %v1495 = vsel %vm852, %v1463, 0.0
      %v1496 = vsel %vm851, %v1464, 0.0
      %v1497 = vsel %vm852, %v1465, 0.0
      %v1498 = vsel %vm851, %v1466, 0.0
      %v1499 = vsel %vm852, %v1467, 0.0
      %s1500 = scalar_lea.vmem %s6, 384
      %v1501 = vld [vmem:[%s1500] sm:$0xff]
      %v1502 = vld [vmem:[%s1500 + $0x8] sm:$0xff]
      %v1503 = vld [vmem:[%s1500 + $0x10] sm:$0xff]
      %v1504 = vld [vmem:[%s1500 + $0x18] sm:$0xff]
      %v1505 = vld [vmem:[%s1500 + $0x20] sm:$0xff]
      %v1506 = vld [vmem:[%s1500 + $0x28] sm:$0xff]
      %v1507 = vld [vmem:[%s1500 + $0x30] sm:$0xff]
      %v1508 = vld [vmem:[%s1500 + $0x38] sm:$0xff]
      %v1509 = vld [vmem:[%s1500 + $0x40] sm:$0xff]
      %v1510 = vld [vmem:[%s1500 + $0x48] sm:$0xff]
      %v1511 = vld [vmem:[%s1500 + $0x50] sm:$0xff]
      %v1512 = vld [vmem:[%s1500 + $0x58] sm:$0xff]
      %v1513 = vld [vmem:[%s1500 + $0x60] sm:$0xff]
      %v1514 = vld [vmem:[%s1500 + $0x68] sm:$0xff]
      %v1515 = vld [vmem:[%s1500 + $0x70] sm:$0xff]
      %v1516 = vld [vmem:[%s1500 + $0x78] sm:$0xff]
      %1517 = vmatpush.msra.mxu0 %v1516
      %1518 = vmatpush.msra.mxu0 %v1515
      %1519 = vmatpush.msra.mxu0 %v1514
      %1520 = vmatpush.msra.mxu0 %v1513
      %1521 = vmatpush.msra.mxu0 %v1512
      %1522 = vmatpush.msra.mxu0 %v1511
      %1523 = vmatpush.msra.mxu0 %v1510
      %1524 = vmatpush.msra.mxu0 %v1509
      %1525 = vmatpush.msra.mxu0 %v1508
      %1526 = vmatpush.msra.mxu0 %v1507
      %1527 = vmatpush.msra.mxu0 %v1506
      %1528 = vmatpush.msra.mxu0 %v1505
      %1529 = vmatpush.msra.mxu0 %v1504
      %1530 = vmatpush.msra.mxu0 %v1503
      %1531 = vmatpush.msra.mxu0 %v1502
      %1532 = vmatpush.msra.mxu0 %v1501
      %1533 = vmatmul.f32.gmra.mxu0 %v1468
      %v1534 = vpop.f32.mrf.mxu0
      %v1535 = vadd.f32 0.0, %v1534
      %1536 = vmatmul.f32.gmra.mxu0 %v1469
      %v1537 = vpop.f32.mrf.mxu0
      %v1538 = vadd.f32 0.0, %v1537
      %1539 = vmatmul.f32.gmra.mxu0 %v1470
      %v1540 = vpop.f32.mrf.mxu0
      %v1541 = vadd.f32 0.0, %v1540
      %1542 = vmatmul.f32.gmra.mxu0 %v1471
      %v1543 = vpop.f32.mrf.mxu0
      %v1544 = vadd.f32 0.0, %v1543
      %1545 = vmatmul.f32.gmra.mxu0 %v1472
      %v1546 = vpop.f32.mrf.mxu0
      %v1547 = vadd.f32 0.0, %v1546
      %1548 = vmatmul.f32.gmra.mxu0 %v1473
      %v1549 = vpop.f32.mrf.mxu0
      %v1550 = vadd.f32 0.0, %v1549
      %1551 = vmatmul.f32.gmra.mxu0 %v1474
      %v1552 = vpop.f32.mrf.mxu0
      %v1553 = vadd.f32 0.0, %v1552
      %1554 = vmatmul.f32.gmra.mxu0 %v1475
      %v1555 = vpop.f32.mrf.mxu0
      %v1556 = vadd.f32 0.0, %v1555
      %1557 = vmatmul.f32.gmra.mxu0 %v1476
      %v1558 = vpop.f32.mrf.mxu0
      %v1559 = vadd.f32 0.0, %v1558
      %1560 = vmatmul.f32.gmra.mxu0 %v1477
      %v1561 = vpop.f32.mrf.mxu0
      %v1562 = vadd.f32 0.0, %v1561
      %1563 = vmatmul.f32.gmra.mxu0 %v1478
      %v1564 = vpop.f32.mrf.mxu0
      %v1565 = vadd.f32 0.0, %v1564
      %1566 = vmatmul.f32.gmra.mxu0 %v1479
      %v1567 = vpop.f32.mrf.mxu0
      %v1568 = vadd.f32 0.0, %v1567
      %1569 = vmatmul.f32.gmra.mxu0 %v1480
      %v1570 = vpop.f32.mrf.mxu0
      %v1571 = vadd.f32 0.0, %v1570
      %1572 = vmatmul.f32.gmra.mxu0 %v1481
      %v1573 = vpop.f32.mrf.mxu0
      %v1574 = vadd.f32 0.0, %v1573
      %1575 = vmatmul.f32.gmra.mxu0 %v1482
      %v1576 = vpop.f32.mrf.mxu0
      %v1577 = vadd.f32 0.0, %v1576
      %1578 = vmatmul.f32.gmra.mxu0 %v1483
      %v1579 = vpop.f32.mrf.mxu0
      %v1580 = vadd.f32 0.0, %v1579
      %1581 = vmatmul.f32.gmra.mxu0 %v1484
      %v1582 = vpop.f32.mrf.mxu0
      %v1583 = vadd.f32 0.0, %v1582
      %1584 = vmatmul.f32.gmra.mxu0 %v1485
      %v1585 = vpop.f32.mrf.mxu0
      %v1586 = vadd.f32 0.0, %v1585
      %1587 = vmatmul.f32.gmra.mxu0 %v1486
      %v1588 = vpop.f32.mrf.mxu0
      %v1589 = vadd.f32 0.0, %v1588
      %1590 = vmatmul.f32.gmra.mxu0 %v1487
      %v1591 = vpop.f32.mrf.mxu0
      %v1592 = vadd.f32 0.0, %v1591
      %1593 = vmatmul.f32.gmra.mxu0 %v1488
      %v1594 = vpop.f32.mrf.mxu0
      %v1595 = vadd.f32 0.0, %v1594
      %1596 = vmatmul.f32.gmra.mxu0 %v1489
      %v1597 = vpop.f32.mrf.mxu0
      %v1598 = vadd.f32 0.0, %v1597
      %1599 = vmatmul.f32.gmra.mxu0 %v1490
      %v1600 = vpop.f32.mrf.mxu0
      %v1601 = vadd.f32 0.0, %v1600
      %1602 = vmatmul.f32.gmra.mxu0 %v1491
      %v1603 = vpop.f32.mrf.mxu0
      %v1604 = vadd.f32 0.0, %v1603
      %1605 = vmatmul.f32.gmra.mxu0 %v1492
      %v1606 = vpop.f32.mrf.mxu0
      %v1607 = vadd.f32 0.0, %v1606
      %1608 = vmatmul.f32.gmra.mxu0 %v1493
      %v1609 = vpop.f32.mrf.mxu0
      %v1610 = vadd.f32 0.0, %v1609
      %1611 = vmatmul.f32.gmra.mxu0 %v1494
      %v1612 = vpop.f32.mrf.mxu0
      %v1613 = vadd.f32 0.0, %v1612
      %1614 = vmatmul.f32.gmra.mxu0 %v1495
      %v1615 = vpop.f32.mrf.mxu0
      %v1616 = vadd.f32 0.0, %v1615
      %1617 = vmatmul.f32.gmra.mxu0 %v1496
      %v1618 = vpop.f32.mrf.mxu0
      %v1619 = vadd.f32 0.0, %v1618
      %1620 = vmatmul.f32.gmra.mxu0 %v1497
      %v1621 = vpop.f32.mrf.mxu0
      %v1622 = vadd.f32 0.0, %v1621
      %1623 = vmatmul.f32.gmra.mxu0 %v1498
      %v1624 = vpop.f32.mrf.mxu0
      %v1625 = vadd.f32 0.0, %v1624
      %1626 = vmatmul.f32.gmra.mxu0 %v1499
      %v1627 = vpop.f32.mrf.mxu0
      %v1628 = vadd.f32 0.0, %v1627
      %1629 = vdwg.mxu0
      %v1630 = vadd.f32 %v1404, %v1535
      %v1631 = vadd.f32 %v1405, %v1538
      %v1632 = vadd.f32 %v1406, %v1541
      %v1633 = vadd.f32 %v1407, %v1544
      %v1634 = vadd.f32 %v1408, %v1547
      %v1635 = vadd.f32 %v1409, %v1550
      %v1636 = vadd.f32 %v1410, %v1553
      %v1637 = vadd.f32 %v1411, %v1556
      %v1638 = vadd.f32 %v1412, %v1559
      %v1639 = vadd.f32 %v1413, %v1562
      %v1640 = vadd.f32 %v1414, %v1565
      %v1641 = vadd.f32 %v1415, %v1568
      %v1642 = vadd.f32 %v1416, %v1571
      %v1643 = vadd.f32 %v1417, %v1574
      %v1644 = vadd.f32 %v1418, %v1577
      %v1645 = vadd.f32 %v1419, %v1580
      %v1646 = vadd.f32 %v1420, %v1583
      %v1647 = vadd.f32 %v1421, %v1586
      %v1648 = vadd.f32 %v1422, %v1589
      %v1649 = vadd.f32 %v1423, %v1592
      %v1650 = vadd.f32 %v1424, %v1595
      %v1651 = vadd.f32 %v1425, %v1598
      %v1652 = vadd.f32 %v1426, %v1601
      %v1653 = vadd.f32 %v1427, %v1604
      %v1654 = vadd.f32 %v1428, %v1607
      %v1655 = vadd.f32 %v1429, %v1610
      %v1656 = vadd.f32 %v1430, %v1613
      %v1657 = vadd.f32 %v1431, %v1616
      %v1658 = vadd.f32 %v1432, %v1619
      %v1659 = vadd.f32 %v1433, %v1622
      %v1660 = vadd.f32 %v1434, %v1625
      %v1661 = vadd.f32 %v1435, %v1628
      %v1662 = vld [vmem:[#allocation2 + $0x18] sm:$0xff]
      %v1663 = vld [vmem:[#allocation2 + $0x20] sm:$0xff]
      %v1664 = vld [vmem:[#allocation2 + $0x28] sm:$0xff]
      %v1665 = vld [vmem:[#allocation2 + $0x30] sm:$0xff]
      %v1666 = vld [vmem:[#allocation2 + $0x38] sm:$0xff]
      %v1667 = vld [vmem:[#allocation2 + $0x40] sm:$0xff]
      %v1668 = vld [vmem:[#allocation2 + $0x48] sm:$0xff]
      %v1669 = vld [vmem:[#allocation2 + $0x50] sm:$0xff]
      %v1670 = vld [vmem:[#allocation2 + $0x58] sm:$0xff]
      %v1671 = vld [vmem:[#allocation2 + $0x60] sm:$0xff]
      %v1672 = vld [vmem:[#allocation2 + $0x68] sm:$0xff]
      %v1673 = vld [vmem:[#allocation2 + $0x70] sm:$0xff]
      %v1674 = vld [vmem:[#allocation2 + $0x78] sm:$0xff]
      %v1675 = vld [vmem:[#allocation2 + $0x80] sm:$0xff]
      %v1676 = vld [vmem:[#allocation2 + $0x88] sm:$0xff]
      %v1677 = vld [vmem:[#allocation2 + $0x90] sm:$0xff]
      %v1678 = vld [vmem:[#allocation2 + $0x98] sm:$0xff]
      %v1679 = vld [vmem:[#allocation2 + $0xa0] sm:$0xff]
      %v1680 = vld [vmem:[#allocation2 + $0xa8] sm:$0xff]
      %v1681 = vld [vmem:[#allocation2 + $0xb0] sm:$0xff]
      %v1682 = vld [vmem:[#allocation2 + $0xb8] sm:$0xff]
      %v1683 = vld [vmem:[#allocation2 + $0xc0] sm:$0xff]
      %v1684 = vld [vmem:[#allocation2 + $0xc8] sm:$0xff]
      %v1685 = vld [vmem:[#allocation2 + $0xd0] sm:$0xff]
      %v1686 = vld [vmem:[#allocation2 + $0xd8] sm:$0xff]
      %v1687 = vld [vmem:[#allocation2 + $0xe0] sm:$0xff]
      %v1688 = vld [vmem:[#allocation2 + $0xe8] sm:$0xff]
      %v1689 = vld [vmem:[#allocation2 + $0xf0] sm:$0xff]
      %v1690 = vld [vmem:[#allocation2 + $0xf8] sm:$0xff]
      %v1691 = vld [vmem:[#allocation2 + $0x100] sm:$0xff]
      %v1692 = vld [vmem:[#allocation2 + $0x108] sm:$0xff]
      %v1693 = vld [vmem:[#allocation2 + $0x110] sm:$0xff]
      %s1694 = scalar_lea.vmem %s6, 512
      %v1695 = vld [vmem:[%s1694] sm:$0xff]
      %v1696 = vld [vmem:[%s1694 + $0x8] sm:$0xff]
      %v1697 = vld [vmem:[%s1694 + $0x10] sm:$0xff]
      %v1698 = vld [vmem:[%s1694 + $0x18] sm:$0xff]
      %v1699 = vld [vmem:[%s1694 + $0x20] sm:$0xff]
      %v1700 = vld [vmem:[%s1694 + $0x28] sm:$0xff]
      %v1701 = vld [vmem:[%s1694 + $0x30] sm:$0xff]
      %v1702 = vld [vmem:[%s1694 + $0x38] sm:$0xff]
      %v1703 = vld [vmem:[%s1694 + $0x40] sm:$0xff]
      %v1704 = vld [vmem:[%s1694 + $0x48] sm:$0xff]
      %v1705 = vld [vmem:[%s1694 + $0x50] sm:$0xff]
      %v1706 = vld [vmem:[%s1694 + $0x58] sm:$0xff]
      %v1707 = vld [vmem:[%s1694 + $0x60] sm:$0xff]
      %v1708 = vld [vmem:[%s1694 + $0x68] sm:$0xff]
      %v1709 = vld [vmem:[%s1694 + $0x70] sm:$0xff]
      %v1710 = vld [vmem:[%s1694 + $0x78] sm:$0xff]
      %1711 = vmatpush.msra.mxu0 %v1710
      %1712 = vmatpush.msra.mxu0 %v1709
      %1713 = vmatpush.msra.mxu0 %v1708
      %1714 = vmatpush.msra.mxu0 %v1707
      %1715 = vmatpush.msra.mxu0 %v1706
      %1716 = vmatpush.msra.mxu0 %v1705
      %1717 = vmatpush.msra.mxu0 %v1704
      %1718 = vmatpush.msra.mxu0 %v1703
      %1719 = vmatpush.msra.mxu0 %v1702
      %1720 = vmatpush.msra.mxu0 %v1701
      %1721 = vmatpush.msra.mxu0 %v1700
      %1722 = vmatpush.msra.mxu0 %v1699
      %1723 = vmatpush.msra.mxu0 %v1698
      %1724 = vmatpush.msra.mxu0 %v1697
      %1725 = vmatpush.msra.mxu0 %v1696
      %1726 = vmatpush.msra.mxu0 %v1695
      %1727 = vmatmul.f32.gmra.mxu0 %v1662
      %v1728 = vpop.f32.mrf.mxu0
      %v1729 = vadd.f32 0.0, %v1728
      %1730 = vmatmul.f32.gmra.mxu0 %v1663
      %v1731 = vpop.f32.mrf.mxu0
      %v1732 = vadd.f32 0.0, %v1731
      %1733 = vmatmul.f32.gmra.mxu0 %v1664
      %v1734 = vpop.f32.mrf.mxu0
      %v1735 = vadd.f32 0.0, %v1734
      %1736 = vmatmul.f32.gmra.mxu0 %v1665
      %v1737 = vpop.f32.mrf.mxu0
      %v1738 = vadd.f32 0.0, %v1737
      %1739 = vmatmul.f32.gmra.mxu0 %v1666
      %v1740 = vpop.f32.mrf.mxu0
      %v1741 = vadd.f32 0.0, %v1740
      %1742 = vmatmul.f32.gmra.mxu0 %v1667
      %v1743 = vpop.f32.mrf.mxu0
      %v1744 = vadd.f32 0.0, %v1743
      %1745 = vmatmul.f32.gmra.mxu0 %v1668
      %v1746 = vpop.f32.mrf.mxu0
      %v1747 = vadd.f32 0.0, %v1746
      %1748 = vmatmul.f32.gmra.mxu0 %v1669
      %v1749 = vpop.f32.mrf.mxu0
      %v1750 = vadd.f32 0.0, %v1749
      %1751 = vmatmul.f32.gmra.mxu0 %v1670
      %v1752 = vpop.f32.mrf.mxu0
      %v1753 = vadd.f32 0.0, %v1752
      %1754 = vmatmul.f32.gmra.mxu0 %v1671
      %v1755 = vpop.f32.mrf.mxu0
      %v1756 = vadd.f32 0.0, %v1755
      %1757 = vmatmul.f32.gmra.mxu0 %v1672
      %v1758 = vpop.f32.mrf.mxu0
      %v1759 = vadd.f32 0.0, %v1758
      %1760 = vmatmul.f32.gmra.mxu0 %v1673
      %v1761 = vpop.f32.mrf.mxu0
      %v1762 = vadd.f32 0.0, %v1761
      %1763 = vmatmul.f32.gmra.mxu0 %v1674
      %v1764 = vpop.f32.mrf.mxu0
      %v1765 = vadd.f32 0.0, %v1764
      %1766 = vmatmul.f32.gmra.mxu0 %v1675
      %v1767 = vpop.f32.mrf.mxu0
      %v1768 = vadd.f32 0.0, %v1767
      %1769 = vmatmul.f32.gmra.mxu0 %v1676
      %v1770 = vpop.f32.mrf.mxu0
      %v1771 = vadd.f32 0.0, %v1770
      %1772 = vmatmul.f32.gmra.mxu0 %v1677
      %v1773 = vpop.f32.mrf.mxu0
      %v1774 = vadd.f32 0.0, %v1773
      %1775 = vmatmul.f32.gmra.mxu0 %v1678
      %v1776 = vpop.f32.mrf.mxu0
      %v1777 = vadd.f32 0.0, %v1776
      %1778 = vmatmul.f32.gmra.mxu0 %v1679
      %v1779 = vpop.f32.mrf.mxu0
      %v1780 = vadd.f32 0.0, %v1779
      %1781 = vmatmul.f32.gmra.mxu0 %v1680
      %v1782 = vpop.f32.mrf.mxu0
      %v1783 = vadd.f32 0.0, %v1782
      %1784 = vmatmul.f32.gmra.mxu0 %v1681
      %v1785 = vpop.f32.mrf.mxu0
      %v1786 = vadd.f32 0.0, %v1785
      %1787 = vmatmul.f32.gmra.mxu0 %v1682
      %v1788 = vpop.f32.mrf.mxu0
      %v1789 = vadd.f32 0.0, %v1788
      %1790 = vmatmul.f32.gmra.mxu0 %v1683
      %v1791 = vpop.f32.mrf.mxu0
      %v1792 = vadd.f32 0.0, %v1791
      %1793 = vmatmul.f32.gmra.mxu0 %v1684
      %v1794 = vpop.f32.mrf.mxu0
      %v1795 = vadd.f32 0.0, %v1794
      %1796 = vmatmul.f32.gmra.mxu0 %v1685
      %v1797 = vpop.f32.mrf.mxu0
      %v1798 = vadd.f32 0.0, %v1797
      %1799 = vmatmul.f32.gmra.mxu0 %v1686
      %v1800 = vpop.f32.mrf.mxu0
      %v1801 = vadd.f32 0.0, %v1800
      %1802 = vmatmul.f32.gmra.mxu0 %v1687
      %v1803 = vpop.f32.mrf.mxu0
      %v1804 = vadd.f32 0.0, %v1803
      %1805 = vmatmul.f32.gmra.mxu0 %v1688
      %v1806 = vpop.f32.mrf.mxu0
      %v1807 = vadd.f32 0.0, %v1806
      %1808 = vmatmul.f32.gmra.mxu0 %v1689
      %v1809 = vpop.f32.mrf.mxu0
      %v1810 = vadd.f32 0.0, %v1809
      %1811 = vmatmul.f32.gmra.mxu0 %v1690
      %v1812 = vpop.f32.mrf.mxu0
      %v1813 = vadd.f32 0.0, %v1812
      %1814 = vmatmul.f32.gmra.mxu0 %v1691
      %v1815 = vpop.f32.mrf.mxu0
      %v1816 = vadd.f32 0.0, %v1815
      %1817 = vmatmul.f32.gmra.mxu0 %v1692
      %v1818 = vpop.f32.mrf.mxu0
      %v1819 = vadd.f32 0.0, %v1818
      %1820 = vmatmul.f32.gmra.mxu0 %v1693
      %v1821 = vpop.f32.mrf.mxu0
      %v1822 = vadd.f32 0.0, %v1821
      %1823 = vdwg.mxu0
      %v1824 = vadd.f32 %v1630, %v1729
      %v1825 = vadd.f32 %v1631, %v1732
      %v1826 = vadd.f32 %v1632, %v1735
      %v1827 = vadd.f32 %v1633, %v1738
      %v1828 = vadd.f32 %v1634, %v1741
      %v1829 = vadd.f32 %v1635, %v1744
      %v1830 = vadd.f32 %v1636, %v1747
      %v1831 = vadd.f32 %v1637, %v1750
      %v1832 = vadd.f32 %v1638, %v1753
      %v1833 = vadd.f32 %v1639, %v1756
      %v1834 = vadd.f32 %v1640, %v1759
      %v1835 = vadd.f32 %v1641, %v1762
      %v1836 = vadd.f32 %v1642, %v1765
      %v1837 = vadd.f32 %v1643, %v1768
      %v1838 = vadd.f32 %v1644, %v1771
      %v1839 = vadd.f32 %v1645, %v1774
      %v1840 = vadd.f32 %v1646, %v1777
      %v1841 = vadd.f32 %v1647, %v1780
      %v1842 = vadd.f32 %v1648, %v1783
      %v1843 = vadd.f32 %v1649, %v1786
      %v1844 = vadd.f32 %v1650, %v1789
      %v1845 = vadd.f32 %v1651, %v1792
      %v1846 = vadd.f32 %v1652, %v1795
      %v1847 = vadd.f32 %v1653, %v1798
      %v1848 = vadd.f32 %v1654, %v1801
      %v1849 = vadd.f32 %v1655, %v1804
      %v1850 = vadd.f32 %v1656, %v1807
      %v1851 = vadd.f32 %v1657, %v1810
      %v1852 = vadd.f32 %v1658, %v1813
      %v1853 = vadd.f32 %v1659, %v1816
      %v1854 = vadd.f32 %v1660, %v1819
      %v1855 = vadd.f32 %v1661, %v1822
      %v1856 = vld [vmem:[#allocation2 + $0x19] sm:$0xff]
      %v1857 = vld [vmem:[#allocation2 + $0x21] sm:$0xff]
      %v1858 = vld [vmem:[#allocation2 + $0x29] sm:$0xff]
      %v1859 = vld [vmem:[#allocation2 + $0x31] sm:$0xff]
      %v1860 = vld [vmem:[#allocation2 + $0x39] sm:$0xff]
      %v1861 = vld [vmem:[#allocation2 + $0x41] sm:$0xff]
      %v1862 = vld [vmem:[#allocation2 + $0x49] sm:$0xff]
      %v1863 = vld [vmem:[#allocation2 + $0x51] sm:$0xff]
      %v1864 = vld [vmem:[#allocation2 + $0x59] sm:$0xff]
      %v1865 = vld [vmem:[#allocation2 + $0x61] sm:$0xff]
      %v1866 = vld [vmem:[#allocation2 + $0x69] sm:$0xff]
      %v1867 = vld [vmem:[#allocation2 + $0x71] sm:$0xff]
      %v1868 = vld [vmem:[#allocation2 + $0x79] sm:$0xff]
      %v1869 = vld [vmem:[#allocation2 + $0x81] sm:$0xff]
      %v1870 = vld [vmem:[#allocation2 + $0x89] sm:$0xff]
      %v1871 = vld [vmem:[#allocation2 + $0x91] sm:$0xff]
      %v1872 = vld [vmem:[#allocation2 + $0x99] sm:$0xff]
      %v1873 = vld [vmem:[#allocation2 + $0xa1] sm:$0xff]
      %v1874 = vld [vmem:[#allocation2 + $0xa9] sm:$0xff]
      %v1875 = vld [vmem:[#allocation2 + $0xb1] sm:$0xff]
      %v1876 = vld [vmem:[#allocation2 + $0xb9] sm:$0xff]
      %v1877 = vld [vmem:[#allocation2 + $0xc1] sm:$0xff]
      %v1878 = vld [vmem:[#allocation2 + $0xc9] sm:$0xff]
      %v1879 = vld [vmem:[#allocation2 + $0xd1] sm:$0xff]
      %v1880 = vld [vmem:[#allocation2 + $0xd9] sm:$0xff]
      %v1881 = vld [vmem:[#allocation2 + $0xe1] sm:$0xff]
      %v1882 = vld [vmem:[#allocation2 + $0xe9] sm:$0xff]
      %v1883 = vld [vmem:[#allocation2 + $0xf1] sm:$0xff]
      %v1884 = vld [vmem:[#allocation2 + $0xf9] sm:$0xff]
      %v1885 = vld [vmem:[#allocation2 + $0x101] sm:$0xff]
      %v1886 = vld [vmem:[#allocation2 + $0x109] sm:$0xff]
      %v1887 = vld [vmem:[#allocation2 + $0x111] sm:$0xff]
      %v1888 = vsel %vm853, %v1856, 0.0
      %v1889 = vsel %vm854, %v1857, 0.0
      %v1890 = vsel %vm853, %v1858, 0.0
      %v1891 = vsel %vm854, %v1859, 0.0
      %v1892 = vsel %vm853, %v1860, 0.0
      %v1893 = vsel %vm854, %v1861, 0.0
      %v1894 = vsel %vm853, %v1862, 0.0
      %v1895 = vsel %vm854, %v1863, 0.0
      %v1896 = vsel %vm853, %v1864, 0.0
      %v1897 = vsel %vm854, %v1865, 0.0
      %v1898 = vsel %vm853, %v1866, 0.0
      %v1899 = vsel %vm854, %v1867, 0.0
      %v1900 = vsel %vm853, %v1868, 0.0
      %v1901 = vsel %vm854, %v1869, 0.0
      %v1902 = vsel %vm853, %v1870, 0.0
      %v1903 = vsel %vm854, %v1871, 0.0
      %v1904 = vsel %vm853, %v1872, 0.0
      %v1905 = vsel %vm854, %v1873, 0.0
      %v1906 = vsel %vm853, %v1874, 0.0
      %v1907 = vsel %vm854, %v1875, 0.0
      %v1908 = vsel %vm853, %v1876, 0.0
      %v1909 = vsel %vm854, %v1877, 0.0
      %v1910 = vsel %vm853, %v1878, 0.0
      %v1911 = vsel %vm854, %v1879, 0.0
      %v1912 = vsel %vm853, %v1880, 0.0
      %v1913 = vsel %vm854, %v1881, 0.0
      %v1914 = vsel %vm853, %v1882, 0.0
      %v1915 = vsel %vm854, %v1883, 0.0
      %v1916 = vsel %vm853, %v1884, 0.0
      %v1917 = vsel %vm854, %v1885, 0.0
      %v1918 = vsel %vm853, %v1886, 0.0
      %v1919 = vsel %vm854, %v1887, 0.0
      %s1920 = scalar_lea.vmem %s6, 640
      %v1921 = vld [vmem:[%s1920] sm:$0xff]
      %v1922 = vld [vmem:[%s1920 + $0x8] sm:$0xff]
      %v1923 = vld [vmem:[%s1920 + $0x10] sm:$0xff]
      %v1924 = vld [vmem:[%s1920 + $0x18] sm:$0xff]
      %v1925 = vld [vmem:[%s1920 + $0x20] sm:$0xff]
      %v1926 = vld [vmem:[%s1920 + $0x28] sm:$0xff]
      %v1927 = vld [vmem:[%s1920 + $0x30] sm:$0xff]
      %v1928 = vld [vmem:[%s1920 + $0x38] sm:$0xff]
      %v1929 = vld [vmem:[%s1920 + $0x40] sm:$0xff]
      %v1930 = vld [vmem:[%s1920 + $0x48] sm:$0xff]
      %v1931 = vld [vmem:[%s1920 + $0x50] sm:$0xff]
      %v1932 = vld [vmem:[%s1920 + $0x58] sm:$0xff]
      %v1933 = vld [vmem:[%s1920 + $0x60] sm:$0xff]
      %v1934 = vld [vmem:[%s1920 + $0x68] sm:$0xff]
      %v1935 = vld [vmem:[%s1920 + $0x70] sm:$0xff]
      %v1936 = vld [vmem:[%s1920 + $0x78] sm:$0xff]
      %1937 = vmatpush.msra.mxu0 %v1936
      %1938 = vmatpush.msra.mxu0 %v1935
      %1939 = vmatpush.msra.mxu0 %v1934
      %1940 = vmatpush.msra.mxu0 %v1933
      %1941 = vmatpush.msra.mxu0 %v1932
      %1942 = vmatpush.msra.mxu0 %v1931
      %1943 = vmatpush.msra.mxu0 %v1930
      %1944 = vmatpush.msra.mxu0 %v1929
      %1945 = vmatpush.msra.mxu0 %v1928
      %1946 = vmatpush.msra.mxu0 %v1927
      %1947 = vmatpush.msra.mxu0 %v1926
      %1948 = vmatpush.msra.mxu0 %v1925
      %1949 = vmatpush.msra.mxu0 %v1924
      %1950 = vmatpush.msra.mxu0 %v1923
      %1951 = vmatpush.msra.mxu0 %v1922
      %1952 = vmatpush.msra.mxu0 %v1921
      %1953 = vmatmul.f32.gmra.mxu0 %v1888
      %v1954 = vpop.f32.mrf.mxu0
      %v1955 = vadd.f32 0.0, %v1954
      %1956 = vmatmul.f32.gmra.mxu0 %v1889
      %v1957 = vpop.f32.mrf.mxu0
      %v1958 = vadd.f32 0.0, %v1957
      %1959 = vmatmul.f32.gmra.mxu0 %v1890
      %v1960 = vpop.f32.mrf.mxu0
      %v1961 = vadd.f32 0.0, %v1960
      %1962 = vmatmul.f32.gmra.mxu0 %v1891
      %v1963 = vpop.f32.mrf.mxu0
      %v1964 = vadd.f32 0.0, %v1963
      %1965 = vmatmul.f32.gmra.mxu0 %v1892
      %v1966 = vpop.f32.mrf.mxu0
      %v1967 = vadd.f32 0.0, %v1966
      %1968 = vmatmul.f32.gmra.mxu0 %v1893
      %v1969 = vpop.f32.mrf.mxu0
      %v1970 = vadd.f32 0.0, %v1969
      %1971 = vmatmul.f32.gmra.mxu0 %v1894
      %v1972 = vpop.f32.mrf.mxu0
      %v1973 = vadd.f32 0.0, %v1972
      %1974 = vmatmul.f32.gmra.mxu0 %v1895
      %v1975 = vpop.f32.mrf.mxu0
      %v1976 = vadd.f32 0.0, %v1975
      %1977 = vmatmul.f32.gmra.mxu0 %v1896
      %v1978 = vpop.f32.mrf.mxu0
      %v1979 = vadd.f32 0.0, %v1978
      %1980 = vmatmul.f32.gmra.mxu0 %v1897
      %v1981 = vpop.f32.mrf.mxu0
      %v1982 = vadd.f32 0.0, %v1981
      %1983 = vmatmul.f32.gmra.mxu0 %v1898
      %v1984 = vpop.f32.mrf.mxu0
      %v1985 = vadd.f32 0.0, %v1984
      %1986 = vmatmul.f32.gmra.mxu0 %v1899
      %v1987 = vpop.f32.mrf.mxu0
      %v1988 = vadd.f32 0.0, %v1987
      %1989 = vmatmul.f32.gmra.mxu0 %v1900
      %v1990 = vpop.f32.mrf.mxu0
      %v1991 = vadd.f32 0.0, %v1990
      %1992 = vmatmul.f32.gmra.mxu0 %v1901
      %v1993 = vpop.f32.mrf.mxu0
      %v1994 = vadd.f32 0.0, %v1993
      %1995 = vmatmul.f32.gmra.mxu0 %v1902
      %v1996 = vpop.f32.mrf.mxu0
      %v1997 = vadd.f32 0.0, %v1996
      %1998 = vmatmul.f32.gmra.mxu0 %v1903
      %v1999 = vpop.f32.mrf.mxu0
      %v2000 = vadd.f32 0.0, %v1999
      %2001 = vmatmul.f32.gmra.mxu0 %v1904
      %v2002 = vpop.f32.mrf.mxu0
      %v2003 = vadd.f32 0.0, %v2002
      %2004 = vmatmul.f32.gmra.mxu0 %v1905
      %v2005 = vpop.f32.mrf.mxu0
      %v2006 = vadd.f32 0.0, %v2005
      %2007 = vmatmul.f32.gmra.mxu0 %v1906
      %v2008 = vpop.f32.mrf.mxu0
      %v2009 = vadd.f32 0.0, %v2008
      %2010 = vmatmul.f32.gmra.mxu0 %v1907
      %v2011 = vpop.f32.mrf.mxu0
      %v2012 = vadd.f32 0.0, %v2011
      %2013 = vmatmul.f32.gmra.mxu0 %v1908
      %v2014 = vpop.f32.mrf.mxu0
      %v2015 = vadd.f32 0.0, %v2014
      %2016 = vmatmul.f32.gmra.mxu0 %v1909
      %v2017 = vpop.f32.mrf.mxu0
      %v2018 = vadd.f32 0.0, %v2017
      %2019 = vmatmul.f32.gmra.mxu0 %v1910
      %v2020 = vpop.f32.mrf.mxu0
      %v2021 = vadd.f32 0.0, %v2020
      %2022 = vmatmul.f32.gmra.mxu0 %v1911
      %v2023 = vpop.f32.mrf.mxu0
      %v2024 = vadd.f32 0.0, %v2023
      %2025 = vmatmul.f32.gmra.mxu0 %v1912
      %v2026 = vpop.f32.mrf.mxu0
      %v2027 = vadd.f32 0.0, %v2026
      %2028 = vmatmul.f32.gmra.mxu0 %v1913
      %v2029 = vpop.f32.mrf.mxu0
      %v2030 = vadd.f32 0.0, %v2029
      %2031 = vmatmul.f32.gmra.mxu0 %v1914
      %v2032 = vpop.f32.mrf.mxu0
      %v2033 = vadd.f32 0.0, %v2032
      %2034 = vmatmul.f32.gmra.mxu0 %v1915
      %v2035 = vpop.f32.mrf.mxu0
      %v2036 = vadd.f32 0.0, %v2035
      %2037 = vmatmul.f32.gmra.mxu0 %v1916
      %v2038 = vpop.f32.mrf.mxu0
      %v2039 = vadd.f32 0.0, %v2038
      %2040 = vmatmul.f32.gmra.mxu0 %v1917
      %v2041 = vpop.f32.mrf.mxu0
      %v2042 = vadd.f32 0.0, %v2041
      %2043 = vmatmul.f32.gmra.mxu0 %v1918
      %v2044 = vpop.f32.mrf.mxu0
      %v2045 = vadd.f32 0.0, %v2044
      %2046 = vmatmul.f32.gmra.mxu0 %v1919
      %v2047 = vpop.f32.mrf.mxu0
      %v2048 = vadd.f32 0.0, %v2047
      %2049 = vdwg.mxu0
      %v2050 = vadd.f32 %v1824, %v1955
      %v2051 = vadd.f32 %v1825, %v1958
      %v2052 = vadd.f32 %v1826, %v1961
      %v2053 = vadd.f32 %v1827, %v1964
      %v2054 = vadd.f32 %v1828, %v1967
      %v2055 = vadd.f32 %v1829, %v1970
      %v2056 = vadd.f32 %v1830, %v1973
      %v2057 = vadd.f32 %v1831, %v1976
      %v2058 = vadd.f32 %v1832, %v1979
      %v2059 = vadd.f32 %v1833, %v1982
      %v2060 = vadd.f32 %v1834, %v1985
      %v2061 = vadd.f32 %v1835, %v1988
      %v2062 = vadd.f32 %v1836, %v1991
      %v2063 = vadd.f32 %v1837, %v1994
      %v2064 = vadd.f32 %v1838, %v1997
      %v2065 = vadd.f32 %v1839, %v2000
      %v2066 = vadd.f32 %v1840, %v2003
      %v2067 = vadd.f32 %v1841, %v2006
      %v2068 = vadd.f32 %v1842, %v2009
      %v2069 = vadd.f32 %v1843, %v2012
      %v2070 = vadd.f32 %v1844, %v2015
      %v2071 = vadd.f32 %v1845, %v2018
      %v2072 = vadd.f32 %v1846, %v2021
      %v2073 = vadd.f32 %v1847, %v2024
      %v2074 = vadd.f32 %v1848, %v2027
      %v2075 = vadd.f32 %v1849, %v2030
      %v2076 = vadd.f32 %v1850, %v2033
      %v2077 = vadd.f32 %v1851, %v2036
      %v2078 = vadd.f32 %v1852, %v2039
      %v2079 = vadd.f32 %v1853, %v2042
      %v2080 = vadd.f32 %v1854, %v2045
      %v2081 = vadd.f32 %v1855, %v2048
      %v2082 = vld [vmem:[#allocation2 + $0x27] sm:$0xff]
      %v2083 = vld [vmem:[#allocation2 + $0x2f] sm:$0xff]
      %v2084 = vld [vmem:[#allocation2 + $0x37] sm:$0xff]
      %v2085 = vld [vmem:[#allocation2 + $0x3f] sm:$0xff]
      %v2086 = vld [vmem:[#allocation2 + $0x47] sm:$0xff]
      %v2087 = vld [vmem:[#allocation2 + $0x4f] sm:$0xff]
      %v2088 = vld [vmem:[#allocation2 + $0x57] sm:$0xff]
      %v2089 = vld [vmem:[#allocation2 + $0x5f] sm:$0xff]
      %v2090 = vld [vmem:[#allocation2 + $0x67] sm:$0xff]
      %v2091 = vld [vmem:[#allocation2 + $0x6f] sm:$0xff]
      %v2092 = vld [vmem:[#allocation2 + $0x77] sm:$0xff]
      %v2093 = vld [vmem:[#allocation2 + $0x7f] sm:$0xff]
      %v2094 = vld [vmem:[#allocation2 + $0x87] sm:$0xff]
      %v2095 = vld [vmem:[#allocation2 + $0x8f] sm:$0xff]
      %v2096 = vld [vmem:[#allocation2 + $0x97] sm:$0xff]
      %v2097 = vld [vmem:[#allocation2 + $0x9f] sm:$0xff]
      %v2098 = vld [vmem:[#allocation2 + $0xa7] sm:$0xff]
      %v2099 = vld [vmem:[#allocation2 + $0xaf] sm:$0xff]
      %v2100 = vld [vmem:[#allocation2 + $0xb7] sm:$0xff]
      %v2101 = vld [vmem:[#allocation2 + $0xbf] sm:$0xff]
      %v2102 = vld [vmem:[#allocation2 + $0xc7] sm:$0xff]
      %v2103 = vld [vmem:[#allocation2 + $0xcf] sm:$0xff]
      %v2104 = vld [vmem:[#allocation2 + $0xd7] sm:$0xff]
      %v2105 = vld [vmem:[#allocation2 + $0xdf] sm:$0xff]
      %v2106 = vld [vmem:[#allocation2 + $0xe7] sm:$0xff]
      %v2107 = vld [vmem:[#allocation2 + $0xef] sm:$0xff]
      %v2108 = vld [vmem:[#allocation2 + $0xf7] sm:$0xff]
      %v2109 = vld [vmem:[#allocation2 + $0xff] sm:$0xff]
      %v2110 = vld [vmem:[#allocation2 + $0x107] sm:$0xff]
      %v2111 = vld [vmem:[#allocation2 + $0x10f] sm:$0xff]
      %v2112 = vld [vmem:[#allocation2 + $0x117] sm:$0xff]
      %v2113 = vld [vmem:[#allocation2 + $0x11f] sm:$0xff]
      %v2114 = vsel %vm851, %v2082, 0.0
      %v2115 = vsel %vm852, %v2083, 0.0
      %v2116 = vsel %vm851, %v2084, 0.0
      %v2117 = vsel %vm852, %v2085, 0.0
      %v2118 = vsel %vm851, %v2086, 0.0
      %v2119 = vsel %vm852, %v2087, 0.0
      %v2120 = vsel %vm851, %v2088, 0.0
      %v2121 = vsel %vm852, %v2089, 0.0
      %v2122 = vsel %vm851, %v2090, 0.0
      %v2123 = vsel %vm852, %v2091, 0.0
      %v2124 = vsel %vm851, %v2092, 0.0
      %v2125 = vsel %vm852, %v2093, 0.0
      %v2126 = vsel %vm851, %v2094, 0.0
      %v2127 = vsel %vm852, %v2095, 0.0
      %v2128 = vsel %vm851, %v2096, 0.0
      %v2129 = vsel %vm852, %v2097, 0.0
      %v2130 = vsel %vm851, %v2098, 0.0
      %v2131 = vsel %vm852, %v2099, 0.0
      %v2132 = vsel %vm851, %v2100, 0.0
      %v2133 = vsel %vm852, %v2101, 0.0
      %v2134 = vsel %vm851, %v2102, 0.0
      %v2135 = vsel %vm852, %v2103, 0.0
      %v2136 = vsel %vm851, %v2104, 0.0
      %v2137 = vsel %vm852, %v2105, 0.0
      %v2138 = vsel %vm851, %v2106, 0.0
      %v2139 = vsel %vm852, %v2107, 0.0
      %v2140 = vsel %vm851, %v2108, 0.0
      %v2141 = vsel %vm852, %v2109, 0.0
      %v2142 = vsel %vm851, %v2110, 0.0
      %v2143 = vsel %vm852, %v2111, 0.0
      %v2144 = vsel %vm851, %v2112, 0.0
      %v2145 = vsel %vm852, %v2113, 0.0
      %s2146 = scalar_lea.vmem %s6, 768
      %v2147 = vld [vmem:[%s2146] sm:$0xff]
      %v2148 = vld [vmem:[%s2146 + $0x8] sm:$0xff]
      %v2149 = vld [vmem:[%s2146 + $0x10] sm:$0xff]
      %v2150 = vld [vmem:[%s2146 + $0x18] sm:$0xff]
      %v2151 = vld [vmem:[%s2146 + $0x20] sm:$0xff]
      %v2152 = vld [vmem:[%s2146 + $0x28] sm:$0xff]
      %v2153 = vld [vmem:[%s2146 + $0x30] sm:$0xff]
      %v2154 = vld [vmem:[%s2146 + $0x38] sm:$0xff]
      %v2155 = vld [vmem:[%s2146 + $0x40] sm:$0xff]
      %v2156 = vld [vmem:[%s2146 + $0x48] sm:$0xff]
      %v2157 = vld [vmem:[%s2146 + $0x50] sm:$0xff]
      %v2158 = vld [vmem:[%s2146 + $0x58] sm:$0xff]
      %v2159 = vld [vmem:[%s2146 + $0x60] sm:$0xff]
      %v2160 = vld [vmem:[%s2146 + $0x68] sm:$0xff]
      %v2161 = vld [vmem:[%s2146 + $0x70] sm:$0xff]
      %v2162 = vld [vmem:[%s2146 + $0x78] sm:$0xff]
      %2163 = vmatpush.msra.mxu0 %v2162
      %2164 = vmatpush.msra.mxu0 %v2161
      %2165 = vmatpush.msra.mxu0 %v2160
      %2166 = vmatpush.msra.mxu0 %v2159
      %2167 = vmatpush.msra.mxu0 %v2158
      %2168 = vmatpush.msra.mxu0 %v2157
      %2169 = vmatpush.msra.mxu0 %v2156
      %2170 = vmatpush.msra.mxu0 %v2155
      %2171 = vmatpush.msra.mxu0 %v2154
      %2172 = vmatpush.msra.mxu0 %v2153
      %2173 = vmatpush.msra.mxu0 %v2152
      %2174 = vmatpush.msra.mxu0 %v2151
      %2175 = vmatpush.msra.mxu0 %v2150
      %2176 = vmatpush.msra.mxu0 %v2149
      %2177 = vmatpush.msra.mxu0 %v2148
      %2178 = vmatpush.msra.mxu0 %v2147
      %2179 = vmatmul.f32.gmra.mxu0 %v2114
      %v2180 = vpop.f32.mrf.mxu0
      %v2181 = vadd.f32 0.0, %v2180
      %2182 = vmatmul.f32.gmra.mxu0 %v2115
      %v2183 = vpop.f32.mrf.mxu0
      %v2184 = vadd.f32 0.0, %v2183
      %2185 = vmatmul.f32.gmra.mxu0 %v2116
      %v2186 = vpop.f32.mrf.mxu0
      %v2187 = vadd.f32 0.0, %v2186
      %2188 = vmatmul.f32.gmra.mxu0 %v2117
      %v2189 = vpop.f32.mrf.mxu0
      %v2190 = vadd.f32 0.0, %v2189
      %2191 = vmatmul.f32.gmra.mxu0 %v2118
      %v2192 = vpop.f32.mrf.mxu0
      %v2193 = vadd.f32 0.0, %v2192
      %2194 = vmatmul.f32.gmra.mxu0 %v2119
      %v2195 = vpop.f32.mrf.mxu0
      %v2196 = vadd.f32 0.0, %v2195
      %2197 = vmatmul.f32.gmra.mxu0 %v2120
      %v2198 = vpop.f32.mrf.mxu0
      %v2199 = vadd.f32 0.0, %v2198
      %2200 = vmatmul.f32.gmra.mxu0 %v2121
      %v2201 = vpop.f32.mrf.mxu0
      %v2202 = vadd.f32 0.0, %v2201
      %2203 = vmatmul.f32.gmra.mxu0 %v2122
      %v2204 = vpop.f32.mrf.mxu0
      %v2205 = vadd.f32 0.0, %v2204
      %2206 = vmatmul.f32.gmra.mxu0 %v2123
      %v2207 = vpop.f32.mrf.mxu0
      %v2208 = vadd.f32 0.0, %v2207
      %2209 = vmatmul.f32.gmra.mxu0 %v2124
      %v2210 = vpop.f32.mrf.mxu0
      %v2211 = vadd.f32 0.0, %v2210
      %2212 = vmatmul.f32.gmra.mxu0 %v2125
      %v2213 = vpop.f32.mrf.mxu0
      %v2214 = vadd.f32 0.0, %v2213
      %2215 = vmatmul.f32.gmra.mxu0 %v2126
      %v2216 = vpop.f32.mrf.mxu0
      %v2217 = vadd.f32 0.0, %v2216
      %2218 = vmatmul.f32.gmra.mxu0 %v2127
      %v2219 = vpop.f32.mrf.mxu0
      %v2220 = vadd.f32 0.0, %v2219
      %2221 = vmatmul.f32.gmra.mxu0 %v2128
      %v2222 = vpop.f32.mrf.mxu0
      %v2223 = vadd.f32 0.0, %v2222
      %2224 = vmatmul.f32.gmra.mxu0 %v2129
      %v2225 = vpop.f32.mrf.mxu0
      %v2226 = vadd.f32 0.0, %v2225
      %2227 = vmatmul.f32.gmra.mxu0 %v2130
      %v2228 = vpop.f32.mrf.mxu0
      %v2229 = vadd.f32 0.0, %v2228
      %2230 = vmatmul.f32.gmra.mxu0 %v2131
      %v2231 = vpop.f32.mrf.mxu0
      %v2232 = vadd.f32 0.0, %v2231
      %2233 = vmatmul.f32.gmra.mxu0 %v2132
      %v2234 = vpop.f32.mrf.mxu0
      %v2235 = vadd.f32 0.0, %v2234
      %2236 = vmatmul.f32.gmra.mxu0 %v2133
      %v2237 = vpop.f32.mrf.mxu0
      %v2238 = vadd.f32 0.0, %v2237
      %2239 = vmatmul.f32.gmra.mxu0 %v2134
      %v2240 = vpop.f32.mrf.mxu0
      %v2241 = vadd.f32 0.0, %v2240
      %2242 = vmatmul.f32.gmra.mxu0 %v2135
      %v2243 = vpop.f32.mrf.mxu0
      %v2244 = vadd.f32 0.0, %v2243
      %2245 = vmatmul.f32.gmra.mxu0 %v2136
      %v2246 = vpop.f32.mrf.mxu0
      %v2247 = vadd.f32 0.0, %v2246
      %2248 = vmatmul.f32.gmra.mxu0 %v2137
      %v2249 = vpop.f32.mrf.mxu0
      %v2250 = vadd.f32 0.0, %v2249
      %2251 = vmatmul.f32.gmra.mxu0 %v2138
      %v2252 = vpop.f32.mrf.mxu0
      %v2253 = vadd.f32 0.0, %v2252
      %2254 = vmatmul.f32.gmra.mxu0 %v2139
      %v2255 = vpop.f32.mrf.mxu0
      %v2256 = vadd.f32 0.0, %v2255
      %2257 = vmatmul.f32.gmra.mxu0 %v2140
      %v2258 = vpop.f32.mrf.mxu0
      %v2259 = vadd.f32 0.0, %v2258
      %2260 = vmatmul.f32.gmra.mxu0 %v2141
      %v2261 = vpop.f32.mrf.mxu0
      %v2262 = vadd.f32 0.0, %v2261
      %2263 = vmatmul.f32.gmra.mxu0 %v2142
      %v2264 = vpop.f32.mrf.mxu0
      %v2265 = vadd.f32 0.0, %v2264
      %2266 = vmatmul.f32.gmra.mxu0 %v2143
      %v2267 = vpop.f32.mrf.mxu0
      %v2268 = vadd.f32 0.0, %v2267
      %2269 = vmatmul.f32.gmra.mxu0 %v2144
      %v2270 = vpop.f32.mrf.mxu0
      %v2271 = vadd.f32 0.0, %v2270
      %2272 = vmatmul.f32.gmra.mxu0 %v2145
      %v2273 = vpop.f32.mrf.mxu0
      %v2274 = vadd.f32 0.0, %v2273
      %2275 = vdwg.mxu0
      %v2276 = vadd.f32 %v2050, %v2181
      %v2277 = vadd.f32 %v2051, %v2184
      %v2278 = vadd.f32 %v2052, %v2187
      %v2279 = vadd.f32 %v2053, %v2190
      %v2280 = vadd.f32 %v2054, %v2193
      %v2281 = vadd.f32 %v2055, %v2196
      %v2282 = vadd.f32 %v2056, %v2199
      %v2283 = vadd.f32 %v2057, %v2202
      %v2284 = vadd.f32 %v2058, %v2205
      %v2285 = vadd.f32 %v2059, %v2208
      %v2286 = vadd.f32 %v2060, %v2211
      %v2287 = vadd.f32 %v2061, %v2214
      %v2288 = vadd.f32 %v2062, %v2217
      %v2289 = vadd.f32 %v2063, %v2220
      %v2290 = vadd.f32 %v2064, %v2223
      %v2291 = vadd.f32 %v2065, %v2226
      %v2292 = vadd.f32 %v2066, %v2229
      %v2293 = vadd.f32 %v2067, %v2232
      %v2294 = vadd.f32 %v2068, %v2235
      %v2295 = vadd.f32 %v2069, %v2238
      %v2296 = vadd.f32 %v2070, %v2241
      %v2297 = vadd.f32 %v2071, %v2244
      %v2298 = vadd.f32 %v2072, %v2247
      %v2299 = vadd.f32 %v2073, %v2250
      %v2300 = vadd.f32 %v2074, %v2253
      %v2301 = vadd.f32 %v2075, %v2256
      %v2302 = vadd.f32 %v2076, %v2259
      %v2303 = vadd.f32 %v2077, %v2262
      %v2304 = vadd.f32 %v2078, %v2265
      %v2305 = vadd.f32 %v2079, %v2268
      %v2306 = vadd.f32 %v2080, %v2271
      %v2307 = vadd.f32 %v2081, %v2274
      %v2308 = vld [vmem:[#allocation2 + $0x28] sm:$0xff]
      %v2309 = vld [vmem:[#allocation2 + $0x30] sm:$0xff]
      %v2310 = vld [vmem:[#allocation2 + $0x38] sm:$0xff]
      %v2311 = vld [vmem:[#allocation2 + $0x40] sm:$0xff]
      %v2312 = vld [vmem:[#allocation2 + $0x48] sm:$0xff]
      %v2313 = vld [vmem:[#allocation2 + $0x50] sm:$0xff]
      %v2314 = vld [vmem:[#allocation2 + $0x58] sm:$0xff]
      %v2315 = vld [vmem:[#allocation2 + $0x60] sm:$0xff]
      %v2316 = vld [vmem:[#allocation2 + $0x68] sm:$0xff]
      %v2317 = vld [vmem:[#allocation2 + $0x70] sm:$0xff]
      %v2318 = vld [vmem:[#allocation2 + $0x78] sm:$0xff]
      %v2319 = vld [vmem:[#allocation2 + $0x80] sm:$0xff]
      %v2320 = vld [vmem:[#allocation2 + $0x88] sm:$0xff]
      %v2321 = vld [vmem:[#allocation2 + $0x90] sm:$0xff]
      %v2322 = vld [vmem:[#allocation2 + $0x98] sm:$0xff]
      %v2323 = vld [vmem:[#allocation2 + $0xa0] sm:$0xff]
      %v2324 = vld [vmem:[#allocation2 + $0xa8] sm:$0xff]
      %v2325 = vld [vmem:[#allocation2 + $0xb0] sm:$0xff]
      %v2326 = vld [vmem:[#allocation2 + $0xb8] sm:$0xff]
      %v2327 = vld [vmem:[#allocation2 + $0xc0] sm:$0xff]
      %v2328 = vld [vmem:[#allocation2 + $0xc8] sm:$0xff]
      %v2329 = vld [vmem:[#allocation2 + $0xd0] sm:$0xff]
      %v2330 = vld [vmem:[#allocation2 + $0xd8] sm:$0xff]
      %v2331 = vld [vmem:[#allocation2 + $0xe0] sm:$0xff]
      %v2332 = vld [vmem:[#allocation2 + $0xe8] sm:$0xff]
      %v2333 = vld [vmem:[#allocation2 + $0xf0] sm:$0xff]
      %v2334 = vld [vmem:[#allocation2 + $0xf8] sm:$0xff]
      %v2335 = vld [vmem:[#allocation2 + $0x100] sm:$0xff]
      %v2336 = vld [vmem:[#allocation2 + $0x108] sm:$0xff]
      %v2337 = vld [vmem:[#allocation2 + $0x110] sm:$0xff]
      %v2338 = vld [vmem:[#allocation2 + $0x118] sm:$0xff]
      %v2339 = vld [vmem:[#allocation2 + $0x120] sm:$0xff]
      %s2340 = scalar_lea.vmem %s6, 896
      %v2341 = vld [vmem:[%s2340] sm:$0xff]
      %v2342 = vld [vmem:[%s2340 + $0x8] sm:$0xff]
      %v2343 = vld [vmem:[%s2340 + $0x10] sm:$0xff]
      %v2344 = vld [vmem:[%s2340 + $0x18] sm:$0xff]
      %v2345 = vld [vmem:[%s2340 + $0x20] sm:$0xff]
      %v2346 = vld [vmem:[%s2340 + $0x28] sm:$0xff]
      %v2347 = vld [vmem:[%s2340 + $0x30] sm:$0xff]
      %v2348 = vld [vmem:[%s2340 + $0x38] sm:$0xff]
      %v2349 = vld [vmem:[%s2340 + $0x40] sm:$0xff]
      %v2350 = vld [vmem:[%s2340 + $0x48] sm:$0xff]
      %v2351 = vld [vmem:[%s2340 + $0x50] sm:$0xff]
      %v2352 = vld [vmem:[%s2340 + $0x58] sm:$0xff]
      %v2353 = vld [vmem:[%s2340 + $0x60] sm:$0xff]
      %v2354 = vld [vmem:[%s2340 + $0x68] sm:$0xff]
      %v2355 = vld [vmem:[%s2340 + $0x70] sm:$0xff]
      %v2356 = vld [vmem:[%s2340 + $0x78] sm:$0xff]
      %2357 = vmatpush.msra.mxu0 %v2356
      %2358 = vmatpush.msra.mxu0 %v2355
      %2359 = vmatpush.msra.mxu0 %v2354
      %2360 = vmatpush.msra.mxu0 %v2353
      %2361 = vmatpush.msra.mxu0 %v2352
      %2362 = vmatpush.msra.mxu0 %v2351
      %2363 = vmatpush.msra.mxu0 %v2350
      %2364 = vmatpush.msra.mxu0 %v2349
      %2365 = vmatpush.msra.mxu0 %v2348
      %2366 = vmatpush.msra.mxu0 %v2347
      %2367 = vmatpush.msra.mxu0 %v2346
      %2368 = vmatpush.msra.mxu0 %v2345
      %2369 = vmatpush.msra.mxu0 %v2344
      %2370 = vmatpush.msra.mxu0 %v2343
      %2371 = vmatpush.msra.mxu0 %v2342
      %2372 = vmatpush.msra.mxu0 %v2341
      %2373 = vmatmul.f32.gmra.mxu0 %v2308
      %v2374 = vpop.f32.mrf.mxu0
      %v2375 = vadd.f32 0.0, %v2374
      %2376 = vmatmul.f32.gmra.mxu0 %v2309
      %v2377 = vpop.f32.mrf.mxu0
      %v2378 = vadd.f32 0.0, %v2377
      %2379 = vmatmul.f32.gmra.mxu0 %v2310
      %v2380 = vpop.f32.mrf.mxu0
      %v2381 = vadd.f32 0.0, %v2380
      %2382 = vmatmul.f32.gmra.mxu0 %v2311
      %v2383 = vpop.f32.mrf.mxu0
      %v2384 = vadd.f32 0.0, %v2383
      %2385 = vmatmul.f32.gmra.mxu0 %v2312
      %v2386 = vpop.f32.mrf.mxu0
      %v2387 = vadd.f32 0.0, %v2386
      %2388 = vmatmul.f32.gmra.mxu0 %v2313
      %v2389 = vpop.f32.mrf.mxu0
      %v2390 = vadd.f32 0.0, %v2389
      %2391 = vmatmul.f32.gmra.mxu0 %v2314
      %v2392 = vpop.f32.mrf.mxu0
      %v2393 = vadd.f32 0.0, %v2392
      %2394 = vmatmul.f32.gmra.mxu0 %v2315
      %v2395 = vpop.f32.mrf.mxu0
      %v2396 = vadd.f32 0.0, %v2395
      %2397 = vmatmul.f32.gmra.mxu0 %v2316
      %v2398 = vpop.f32.mrf.mxu0
      %v2399 = vadd.f32 0.0, %v2398
      %2400 = vmatmul.f32.gmra.mxu0 %v2317
      %v2401 = vpop.f32.mrf.mxu0
      %v2402 = vadd.f32 0.0, %v2401
      %2403 = vmatmul.f32.gmra.mxu0 %v2318
      %v2404 = vpop.f32.mrf.mxu0
      %v2405 = vadd.f32 0.0, %v2404
      %2406 = vmatmul.f32.gmra.mxu0 %v2319
      %v2407 = vpop.f32.mrf.mxu0
      %v2408 = vadd.f32 0.0, %v2407
      %2409 = vmatmul.f32.gmra.mxu0 %v2320
      %v2410 = vpop.f32.mrf.mxu0
      %v2411 = vadd.f32 0.0, %v2410
      %2412 = vmatmul.f32.gmra.mxu0 %v2321
      %v2413 = vpop.f32.mrf.mxu0
      %v2414 = vadd.f32 0.0, %v2413
      %2415 = vmatmul.f32.gmra.mxu0 %v2322
      %v2416 = vpop.f32.mrf.mxu0
      %v2417 = vadd.f32 0.0, %v2416
      %2418 = vmatmul.f32.gmra.mxu0 %v2323
      %v2419 = vpop.f32.mrf.mxu0
      %v2420 = vadd.f32 0.0, %v2419
      %2421 = vmatmul.f32.gmra.mxu0 %v2324
      %v2422 = vpop.f32.mrf.mxu0
      %v2423 = vadd.f32 0.0, %v2422
      %2424 = vmatmul.f32.gmra.mxu0 %v2325
      %v2425 = vpop.f32.mrf.mxu0
      %v2426 = vadd.f32 0.0, %v2425
      %2427 = vmatmul.f32.gmra.mxu0 %v2326
      %v2428 = vpop.f32.mrf.mxu0
      %v2429 = vadd.f32 0.0, %v2428
      %2430 = vmatmul.f32.gmra.mxu0 %v2327
      %v2431 = vpop.f32.mrf.mxu0
      %v2432 = vadd.f32 0.0, %v2431
      %2433 = vmatmul.f32.gmra.mxu0 %v2328
      %v2434 = vpop.f32.mrf.mxu0
      %v2435 = vadd.f32 0.0, %v2434
      %2436 = vmatmul.f32.gmra.mxu0 %v2329
      %v2437 = vpop.f32.mrf.mxu0
      %v2438 = vadd.f32 0.0, %v2437
      %2439 = vmatmul.f32.gmra.mxu0 %v2330
      %v2440 = vpop.f32.mrf.mxu0
      %v2441 = vadd.f32 0.0, %v2440
      %2442 = vmatmul.f32.gmra.mxu0 %v2331
      %v2443 = vpop.f32.mrf.mxu0
      %v2444 = vadd.f32 0.0, %v2443
      %2445 = vmatmul.f32.gmra.mxu0 %v2332
      %v2446 = vpop.f32.mrf.mxu0
      %v2447 = vadd.f32 0.0, %v2446
      %2448 = vmatmul.f32.gmra.mxu0 %v2333
      %v2449 = vpop.f32.mrf.mxu0
      %v2450 = vadd.f32 0.0, %v2449
      %2451 = vmatmul.f32.gmra.mxu0 %v2334
      %v2452 = vpop.f32.mrf.mxu0
      %v2453 = vadd.f32 0.0, %v2452
      %2454 = vmatmul.f32.gmra.mxu0 %v2335
      %v2455 = vpop.f32.mrf.mxu0
      %v2456 = vadd.f32 0.0, %v2455
      %2457 = vmatmul.f32.gmra.mxu0 %v2336
      %v2458 = vpop.f32.mrf.mxu0
      %v2459 = vadd.f32 0.0, %v2458
      %2460 = vmatmul.f32.gmra.mxu0 %v2337
      %v2461 = vpop.f32.mrf.mxu0
      %v2462 = vadd.f32 0.0, %v2461
      %2463 = vmatmul.f32.gmra.mxu0 %v2338
      %v2464 = vpop.f32.mrf.mxu0
      %v2465 = vadd.f32 0.0, %v2464
      %2466 = vmatmul.f32.gmra.mxu0 %v2339
      %v2467 = vpop.f32.mrf.mxu0
      %v2468 = vadd.f32 0.0, %v2467
      %2469 = vdwg.mxu0
      %v2470 = vadd.f32 %v2276, %v2375
      %v2471 = vadd.f32 %v2277, %v2378
      %v2472 = vadd.f32 %v2278, %v2381
      %v2473 = vadd.f32 %v2279, %v2384
      %v2474 = vadd.f32 %v2280, %v2387
      %v2475 = vadd.f32 %v2281, %v2390
      %v2476 = vadd.f32 %v2282, %v2393
      %v2477 = vadd.f32 %v2283, %v2396
      %v2478 = vadd.f32 %v2284, %v2399
      %v2479 = vadd.f32 %v2285, %v2402
      %v2480 = vadd.f32 %v2286, %v2405
      %v2481 = vadd.f32 %v2287, %v2408
      %v2482 = vadd.f32 %v2288, %v2411
      %v2483 = vadd.f32 %v2289, %v2414
      %v2484 = vadd.f32 %v2290, %v2417
      %v2485 = vadd.f32 %v2291, %v2420
      %v2486 = vadd.f32 %v2292, %v2423
      %v2487 = vadd.f32 %v2293, %v2426
      %v2488 = vadd.f32 %v2294, %v2429
      %v2489 = vadd.f32 %v2295, %v2432
      %v2490 = vadd.f32 %v2296, %v2435
      %v2491 = vadd.f32 %v2297, %v2438
      %v2492 = vadd.f32 %v2298, %v2441
      %v2493 = vadd.f32 %v2299, %v2444
      %v2494 = vadd.f32 %v2300, %v2447
      %v2495 = vadd.f32 %v2301, %v2450
      %v2496 = vadd.f32 %v2302, %v2453
      %v2497 = vadd.f32 %v2303, %v2456
      %v2498 = vadd.f32 %v2304, %v2459
      %v2499 = vadd.f32 %v2305, %v2462
      %v2500 = vadd.f32 %v2306, %v2465
      %v2501 = vadd.f32 %v2307, %v2468
      %v2502 = vld [vmem:[#allocation2 + $0x29] sm:$0xff]
      %v2503 = vld [vmem:[#allocation2 + $0x31] sm:$0xff]
      %v2504 = vld [vmem:[#allocation2 + $0x39] sm:$0xff]
      %v2505 = vld [vmem:[#allocation2 + $0x41] sm:$0xff]
      %v2506 = vld [vmem:[#allocation2 + $0x49] sm:$0xff]
      %v2507 = vld [vmem:[#allocation2 + $0x51] sm:$0xff]
      %v2508 = vld [vmem:[#allocation2 + $0x59] sm:$0xff]
      %v2509 = vld [vmem:[#allocation2 + $0x61] sm:$0xff]
      %v2510 = vld [vmem:[#allocation2 + $0x69] sm:$0xff]
      %v2511 = vld [vmem:[#allocation2 + $0x71] sm:$0xff]
      %v2512 = vld [vmem:[#allocation2 + $0x79] sm:$0xff]
      %v2513 = vld [vmem:[#allocation2 + $0x81] sm:$0xff]
      %v2514 = vld [vmem:[#allocation2 + $0x89] sm:$0xff]
      %v2515 = vld [vmem:[#allocation2 + $0x91] sm:$0xff]
      %v2516 = vld [vmem:[#allocation2 + $0x99] sm:$0xff]
      %v2517 = vld [vmem:[#allocation2 + $0xa1] sm:$0xff]
      %v2518 = vld [vmem:[#allocation2 + $0xa9] sm:$0xff]
      %v2519 = vld [vmem:[#allocation2 + $0xb1] sm:$0xff]
      %v2520 = vld [vmem:[#allocation2 + $0xb9] sm:$0xff]
      %v2521 = vld [vmem:[#allocation2 + $0xc1] sm:$0xff]
      %v2522 = vld [vmem:[#allocation2 + $0xc9] sm:$0xff]
      %v2523 = vld [vmem:[#allocation2 + $0xd1] sm:$0xff]
      %v2524 = vld [vmem:[#allocation2 + $0xd9] sm:$0xff]
      %v2525 = vld [vmem:[#allocation2 + $0xe1] sm:$0xff]
      %v2526 = vld [vmem:[#allocation2 + $0xe9] sm:$0xff]
      %v2527 = vld [vmem:[#allocation2 + $0xf1] sm:$0xff]
      %v2528 = vld [vmem:[#allocation2 + $0xf9] sm:$0xff]
      %v2529 = vld [vmem:[#allocation2 + $0x101] sm:$0xff]
      %v2530 = vld [vmem:[#allocation2 + $0x109] sm:$0xff]
      %v2531 = vld [vmem:[#allocation2 + $0x111] sm:$0xff]
      %v2532 = vld [vmem:[#allocation2 + $0x119] sm:$0xff]
      %v2533 = vld [vmem:[#allocation2 + $0x121] sm:$0xff]
      %v2534 = vsel %vm853, %v2502, 0.0
      %v2535 = vsel %vm854, %v2503, 0.0
      %v2536 = vsel %vm853, %v2504, 0.0
      %v2537 = vsel %vm854, %v2505, 0.0
      %v2538 = vsel %vm853, %v2506, 0.0
      %v2539 = vsel %vm854, %v2507, 0.0
      %v2540 = vsel %vm853, %v2508, 0.0
      %v2541 = vsel %vm854, %v2509, 0.0
      %v2542 = vsel %vm853, %v2510, 0.0
      %v2543 = vsel %vm854, %v2511, 0.0
      %v2544 = vsel %vm853, %v2512, 0.0
      %v2545 = vsel %vm854, %v2513, 0.0
      %v2546 = vsel %vm853, %v2514, 0.0
      %v2547 = vsel %vm854, %v2515, 0.0
      %v2548 = vsel %vm853, %v2516, 0.0
      %v2549 = vsel %vm854, %v2517, 0.0
      %v2550 = vsel %vm853, %v2518, 0.0
      %v2551 = vsel %vm854, %v2519, 0.0
      %v2552 = vsel %vm853, %v2520, 0.0
      %v2553 = vsel %vm854, %v2521, 0.0
      %v2554 = vsel %vm853, %v2522, 0.0
      %v2555 = vsel %vm854, %v2523, 0.0
      %v2556 = vsel %vm853, %v2524, 0.0
      %v2557 = vsel %vm854, %v2525, 0.0
      %v2558 = vsel %vm853, %v2526, 0.0
      %v2559 = vsel %vm854, %v2527, 0.0
      %v2560 = vsel %vm853, %v2528, 0.0
      %v2561 = vsel %vm854, %v2529, 0.0
      %v2562 = vsel %vm853, %v2530, 0.0
      %v2563 = vsel %vm854, %v2531, 0.0
      %v2564 = vsel %vm853, %v2532, 0.0
      %v2565 = vsel %vm854, %v2533, 0.0
      %s2566 = scalar_lea.vmem %s6, 1024
      %v2567 = vld [vmem:[%s2566] sm:$0xff]
      %v2568 = vld [vmem:[%s2566 + $0x8] sm:$0xff]
      %v2569 = vld [vmem:[%s2566 + $0x10] sm:$0xff]
      %v2570 = vld [vmem:[%s2566 + $0x18] sm:$0xff]
      %v2571 = vld [vmem:[%s2566 + $0x20] sm:$0xff]
      %v2572 = vld [vmem:[%s2566 + $0x28] sm:$0xff]
      %v2573 = vld [vmem:[%s2566 + $0x30] sm:$0xff]
      %v2574 = vld [vmem:[%s2566 + $0x38] sm:$0xff]
      %v2575 = vld [vmem:[%s2566 + $0x40] sm:$0xff]
      %v2576 = vld [vmem:[%s2566 + $0x48] sm:$0xff]
      %v2577 = vld [vmem:[%s2566 + $0x50] sm:$0xff]
      %v2578 = vld [vmem:[%s2566 + $0x58] sm:$0xff]
      %v2579 = vld [vmem:[%s2566 + $0x60] sm:$0xff]
      %v2580 = vld [vmem:[%s2566 + $0x68] sm:$0xff]
      %v2581 = vld [vmem:[%s2566 + $0x70] sm:$0xff]
      %v2582 = vld [vmem:[%s2566 + $0x78] sm:$0xff]
      %2583 = vmatpush.msra.mxu0 %v2582
      %2584 = vmatpush.msra.mxu0 %v2581
      %2585 = vmatpush.msra.mxu0 %v2580
      %2586 = vmatpush.msra.mxu0 %v2579
      %2587 = vmatpush.msra.mxu0 %v2578
      %2588 = vmatpush.msra.mxu0 %v2577
      %2589 = vmatpush.msra.mxu0 %v2576
      %2590 = vmatpush.msra.mxu0 %v2575
      %2591 = vmatpush.msra.mxu0 %v2574
      %2592 = vmatpush.msra.mxu0 %v2573
      %2593 = vmatpush.msra.mxu0 %v2572
      %2594 = vmatpush.msra.mxu0 %v2571
      %2595 = vmatpush.msra.mxu0 %v2570
      %2596 = vmatpush.msra.mxu0 %v2569
      %2597 = vmatpush.msra.mxu0 %v2568
      %2598 = vmatpush.msra.mxu0 %v2567
      %2599 = vmatmul.f32.gmra.mxu0 %v2534
      %v2600 = vpop.f32.mrf.mxu0
      %v2601 = vadd.f32 0.0, %v2600
      %2602 = vmatmul.f32.gmra.mxu0 %v2535
      %v2603 = vpop.f32.mrf.mxu0
      %v2604 = vadd.f32 0.0, %v2603
      %2605 = vmatmul.f32.gmra.mxu0 %v2536
      %v2606 = vpop.f32.mrf.mxu0
      %v2607 = vadd.f32 0.0, %v2606
      %2608 = vmatmul.f32.gmra.mxu0 %v2537
      %v2609 = vpop.f32.mrf.mxu0
      %v2610 = vadd.f32 0.0, %v2609
      %2611 = vmatmul.f32.gmra.mxu0 %v2538
      %v2612 = vpop.f32.mrf.mxu0
      %v2613 = vadd.f32 0.0, %v2612
      %2614 = vmatmul.f32.gmra.mxu0 %v2539
      %v2615 = vpop.f32.mrf.mxu0
      %v2616 = vadd.f32 0.0, %v2615
      %2617 = vmatmul.f32.gmra.mxu0 %v2540
      %v2618 = vpop.f32.mrf.mxu0
      %v2619 = vadd.f32 0.0, %v2618
      %2620 = vmatmul.f32.gmra.mxu0 %v2541
      %v2621 = vpop.f32.mrf.mxu0
      %v2622 = vadd.f32 0.0, %v2621
      %2623 = vmatmul.f32.gmra.mxu0 %v2542
      %v2624 = vpop.f32.mrf.mxu0
      %v2625 = vadd.f32 0.0, %v2624
      %2626 = vmatmul.f32.gmra.mxu0 %v2543
      %v2627 = vpop.f32.mrf.mxu0
      %v2628 = vadd.f32 0.0, %v2627
      %2629 = vmatmul.f32.gmra.mxu0 %v2544
      %v2630 = vpop.f32.mrf.mxu0
      %v2631 = vadd.f32 0.0, %v2630
      %2632 = vmatmul.f32.gmra.mxu0 %v2545
      %v2633 = vpop.f32.mrf.mxu0
      %v2634 = vadd.f32 0.0, %v2633
      %2635 = vmatmul.f32.gmra.mxu0 %v2546
      %v2636 = vpop.f32.mrf.mxu0
      %v2637 = vadd.f32 0.0, %v2636
      %2638 = vmatmul.f32.gmra.mxu0 %v2547
      %v2639 = vpop.f32.mrf.mxu0
      %v2640 = vadd.f32 0.0, %v2639
      %2641 = vmatmul.f32.gmra.mxu0 %v2548
      %v2642 = vpop.f32.mrf.mxu0
      %v2643 = vadd.f32 0.0, %v2642
      %2644 = vmatmul.f32.gmra.mxu0 %v2549
      %v2645 = vpop.f32.mrf.mxu0
      %v2646 = vadd.f32 0.0, %v2645
      %2647 = vmatmul.f32.gmra.mxu0 %v2550
      %v2648 = vpop.f32.mrf.mxu0
      %v2649 = vadd.f32 0.0, %v2648
      %2650 = vmatmul.f32.gmra.mxu0 %v2551
      %v2651 = vpop.f32.mrf.mxu0
      %v2652 = vadd.f32 0.0, %v2651
      %2653 = vmatmul.f32.gmra.mxu0 %v2552
      %v2654 = vpop.f32.mrf.mxu0
      %v2655 = vadd.f32 0.0, %v2654
      %2656 = vmatmul.f32.gmra.mxu0 %v2553
      %v2657 = vpop.f32.mrf.mxu0
      %v2658 = vadd.f32 0.0, %v2657
      %2659 = vmatmul.f32.gmra.mxu0 %v2554
      %v2660 = vpop.f32.mrf.mxu0
      %v2661 = vadd.f32 0.0, %v2660
      %2662 = vmatmul.f32.gmra.mxu0 %v2555
      %v2663 = vpop.f32.mrf.mxu0
      %v2664 = vadd.f32 0.0, %v2663
      %2665 = vmatmul.f32.gmra.mxu0 %v2556
      %v2666 = vpop.f32.mrf.mxu0
      %v2667 = vadd.f32 0.0, %v2666
      %2668 = vmatmul.f32.gmra.mxu0 %v2557
      %v2669 = vpop.f32.mrf.mxu0
      %v2670 = vadd.f32 0.0, %v2669
      %2671 = vmatmul.f32.gmra.mxu0 %v2558
      %v2672 = vpop.f32.mrf.mxu0
      %v2673 = vadd.f32 0.0, %v2672
      %2674 = vmatmul.f32.gmra.mxu0 %v2559
      %v2675 = vpop.f32.mrf.mxu0
      %v2676 = vadd.f32 0.0, %v2675
      %2677 = vmatmul.f32.gmra.mxu0 %v2560
      %v2678 = vpop.f32.mrf.mxu0
      %v2679 = vadd.f32 0.0, %v2678
      %2680 = vmatmul.f32.gmra.mxu0 %v2561
      %v2681 = vpop.f32.mrf.mxu0
      %v2682 = vadd.f32 0.0, %v2681
      %2683 = vmatmul.f32.gmra.mxu0 %v2562
      %v2684 = vpop.f32.mrf.mxu0
      %v2685 = vadd.f32 0.0, %v2684
      %2686 = vmatmul.f32.gmra.mxu0 %v2563
      %v2687 = vpop.f32.mrf.mxu0
      %v2688 = vadd.f32 0.0, %v2687
      %2689 = vmatmul.f32.gmra.mxu0 %v2564
      %v2690 = vpop.f32.mrf.mxu0
      %v2691 = vadd.f32 0.0, %v2690
      %2692 = vmatmul.f32.gmra.mxu0 %v2565
      %v2693 = vpop.f32.mrf.mxu0
      %v2694 = vadd.f32 0.0, %v2693
      %2695 = vdwg.mxu0
      %v2696 = vadd.f32 %v2470, %v2601
      %v2697 = vadd.f32 %v2471, %v2604
      %v2698 = vadd.f32 %v2472, %v2607
      %v2699 = vadd.f32 %v2473, %v2610
      %v2700 = vadd.f32 %v2474, %v2613
      %v2701 = vadd.f32 %v2475, %v2616
      %v2702 = vadd.f32 %v2476, %v2619
      %v2703 = vadd.f32 %v2477, %v2622
      %v2704 = vadd.f32 %v2478, %v2625
      %v2705 = vadd.f32 %v2479, %v2628
      %v2706 = vadd.f32 %v2480, %v2631
      %v2707 = vadd.f32 %v2481, %v2634
      %v2708 = vadd.f32 %v2482, %v2637
      %v2709 = vadd.f32 %v2483, %v2640
      %v2710 = vadd.f32 %v2484, %v2643
      %v2711 = vadd.f32 %v2485, %v2646
      %v2712 = vadd.f32 %v2486, %v2649
      %v2713 = vadd.f32 %v2487, %v2652
      %v2714 = vadd.f32 %v2488, %v2655
      %v2715 = vadd.f32 %v2489, %v2658
      %v2716 = vadd.f32 %v2490, %v2661
      %v2717 = vadd.f32 %v2491, %v2664
      %v2718 = vadd.f32 %v2492, %v2667
      %v2719 = vadd.f32 %v2493, %v2670
      %v2720 = vadd.f32 %v2494, %v2673
      %v2721 = vadd.f32 %v2495, %v2676
      %v2722 = vadd.f32 %v2496, %v2679
      %v2723 = vadd.f32 %v2497, %v2682
      %v2724 = vadd.f32 %v2498, %v2685
      %v2725 = vadd.f32 %v2499, %v2688
      %v2726 = vadd.f32 %v2500, %v2691
      %v2727 = vadd.f32 %v2501, %v2694
      %v2728 = vld [vmem:[%s7] sm:$0x1]
      %v2730 = vperm.slane %v2728, 0
      %v2732 = vmul.f32 %v2696, %v2730
      %v2733 = vmul.f32 %v2697, %v2730
      %v2734 = vmul.f32 %v2698, %v2730
      %v2735 = vmul.f32 %v2699, %v2730
      %v2736 = vmul.f32 %v2700, %v2730
      %v2737 = vmul.f32 %v2701, %v2730
      %v2738 = vmul.f32 %v2702, %v2730
      %v2739 = vmul.f32 %v2703, %v2730
      %v2740 = vmul.f32 %v2704, %v2730
      %v2741 = vmul.f32 %v2705, %v2730
      %v2742 = vmul.f32 %v2706, %v2730
      %v2743 = vmul.f32 %v2707, %v2730
      %v2744 = vmul.f32 %v2708, %v2730
      %v2745 = vmul.f32 %v2709, %v2730
      %v2746 = vmul.f32 %v2710, %v2730
      %v2747 = vmul.f32 %v2711, %v2730
      %v2748 = vmul.f32 %v2712, %v2730
      %v2749 = vmul.f32 %v2713, %v2730
      %v2750 = vmul.f32 %v2714, %v2730
      %v2751 = vmul.f32 %v2715, %v2730
      %v2752 = vmul.f32 %v2716, %v2730
      %v2753 = vmul.f32 %v2717, %v2730
      %v2754 = vmul.f32 %v2718, %v2730
      %v2755 = vmul.f32 %v2719, %v2730
      %v2756 = vmul.f32 %v2720, %v2730
      %v2757 = vmul.f32 %v2721, %v2730
      %v2758 = vmul.f32 %v2722, %v2730
      %v2759 = vmul.f32 %v2723, %v2730
      %v2760 = vmul.f32 %v2724, %v2730
      %v2761 = vmul.f32 %v2725, %v2730
      %v2762 = vmul.f32 %v2726, %v2730
      %v2763 = vmul.f32 %v2727, %v2730
      %v2764 = vld [vmem:[%s8] sm:$0x1]
      %v2766 = vperm.slane %v2764, 0
      %v2768 = vadd.f32 %v2732, %v2766
      %v2769 = vadd.f32 %v2733, %v2766
      %v2770 = vadd.f32 %v2734, %v2766
      %v2771 = vadd.f32 %v2735, %v2766
      %v2772 = vadd.f32 %v2736, %v2766
      %v2773 = vadd.f32 %v2737, %v2766
      %v2774 = vadd.f32 %v2738, %v2766
      %v2775 = vadd.f32 %v2739, %v2766
      %v2776 = vadd.f32 %v2740, %v2766
      %v2777 = vadd.f32 %v2741, %v2766
      %v2778 = vadd.f32 %v2742, %v2766
      %v2779 = vadd.f32 %v2743, %v2766
      %v2780 = vadd.f32 %v2744, %v2766
      %v2781 = vadd.f32 %v2745, %v2766
      %v2782 = vadd.f32 %v2746, %v2766
      %v2783 = vadd.f32 %v2747, %v2766
      %v2784 = vadd.f32 %v2748, %v2766
      %v2785 = vadd.f32 %v2749, %v2766
      %v2786 = vadd.f32 %v2750, %v2766
      %v2787 = vadd.f32 %v2751, %v2766
      %v2788 = vadd.f32 %v2752, %v2766
      %v2789 = vadd.f32 %v2753, %v2766
      %v2790 = vadd.f32 %v2754, %v2766
      %v2791 = vadd.f32 %v2755, %v2766
      %v2792 = vadd.f32 %v2756, %v2766
      %v2793 = vadd.f32 %v2757, %v2766
      %v2794 = vadd.f32 %v2758, %v2766
      %v2795 = vadd.f32 %v2759, %v2766
      %v2796 = vadd.f32 %v2760, %v2766
      %v2797 = vadd.f32 %v2761, %v2766
      %v2798 = vadd.f32 %v2762, %v2766
      %v2799 = vadd.f32 %v2763, %v2766
      %v2800 = vmax.f32 %v2768, 0.0
      %v2801 = vmax.f32 %v2769, 0.0
      %v2802 = vmax.f32 %v2770, 0.0
      %v2803 = vmax.f32 %v2771, 0.0
      %v2804 = vmax.f32 %v2772, 0.0
      %v2805 = vmax.f32 %v2773, 0.0
      %v2806 = vmax.f32 %v2774, 0.0
      %v2807 = vmax.f32 %v2775, 0.0
      %v2808 = vmax.f32 %v2776, 0.0
      %v2809 = vmax.f32 %v2777, 0.0
      %v2810 = vmax.f32 %v2778, 0.0
      %v2811 = vmax.f32 %v2779, 0.0
      %v2812 = vmax.f32 %v2780, 0.0
      %v2813 = vmax.f32 %v2781, 0.0
      %v2814 = vmax.f32 %v2782, 0.0
      %v2815 = vmax.f32 %v2783, 0.0
      %v2816 = vmax.f32 %v2784, 0.0
      %v2817 = vmax.f32 %v2785, 0.0
      %v2818 = vmax.f32 %v2786, 0.0
      %v2819 = vmax.f32 %v2787, 0.0
      %v2820 = vmax.f32 %v2788, 0.0
      %v2821 = vmax.f32 %v2789, 0.0
      %v2822 = vmax.f32 %v2790, 0.0
      %v2823 = vmax.f32 %v2791, 0.0
      %v2824 = vmax.f32 %v2792, 0.0
      %v2825 = vmax.f32 %v2793, 0.0
      %v2826 = vmax.f32 %v2794, 0.0
      %v2827 = vmax.f32 %v2795, 0.0
      %v2828 = vmax.f32 %v2796, 0.0
      %v2829 = vmax.f32 %v2797, 0.0
      %v2830 = vmax.f32 %v2798, 0.0
      %v2831 = vmax.f32 %v2799, 0.0
      %v2832 = vld [vmem:[%s9] sm:$0xff]
      %v2833 = vld [vmem:[%s9 + $0x8] sm:$0xff]
      %v2834 = vld [vmem:[%s9 + $0x10] sm:$0xff]
      %v2835 = vld [vmem:[%s9 + $0x18] sm:$0xff]
      %v2836 = vld [vmem:[%s9 + $0x20] sm:$0xff]
      %v2837 = vld [vmem:[%s9 + $0x28] sm:$0xff]
      %v2838 = vld [vmem:[%s9 + $0x30] sm:$0xff]
      %v2839 = vld [vmem:[%s9 + $0x38] sm:$0xff]
      %v2840 = vld [vmem:[%s9 + $0x40] sm:$0xff]
      %v2841 = vld [vmem:[%s9 + $0x48] sm:$0xff]
      %v2842 = vld [vmem:[%s9 + $0x50] sm:$0xff]
      %v2843 = vld [vmem:[%s9 + $0x58] sm:$0xff]
      %v2844 = vld [vmem:[%s9 + $0x60] sm:$0xff]
      %v2845 = vld [vmem:[%s9 + $0x68] sm:$0xff]
      %v2846 = vld [vmem:[%s9 + $0x70] sm:$0xff]
      %v2847 = vld [vmem:[%s9 + $0x78] sm:$0xff]
      %v2848 = vld [vmem:[%s10] sm:$0x1]
      %v2850 = vperm.slane %v2848, 0
      %2852 = vmatpush.msra.mxu0 %v2847
      %2853 = vmatpush.msra.mxu0 %v2846
      %2854 = vmatpush.msra.mxu0 %v2845
      %2855 = vmatpush.msra.mxu0 %v2844
      %2856 = vmatpush.msra.mxu0 %v2843
      %2857 = vmatpush.msra.mxu0 %v2842
      %2858 = vmatpush.msra.mxu0 %v2841
      %2859 = vmatpush.msra.mxu0 %v2840
      %2860 = vmatpush.msra.mxu0 %v2839
      %2861 = vmatpush.msra.mxu0 %v2838
      %2862 = vmatpush.msra.mxu0 %v2837
      %2863 = vmatpush.msra.mxu0 %v2836
      %2864 = vmatpush.msra.mxu0 %v2835
      %2865 = vmatpush.msra.mxu0 %v2834
      %2866 = vmatpush.msra.mxu0 %v2833
      %2867 = vmatpush.msra.mxu0 %v2832
      %2868 = vmatmul.f32.gmra.mxu0 %v2800
      %v2869 = vpop.f32.mrf.mxu0
      %v2870 = vadd.f32 %v2850, %v2869
      %2871 = vmatmul.f32.gmra.mxu0 %v2801
      %v2872 = vpop.f32.mrf.mxu0
      %v2873 = vadd.f32 %v2850, %v2872
      %2874 = vmatmul.f32.gmra.mxu0 %v2802
      %v2875 = vpop.f32.mrf.mxu0
      %v2876 = vadd.f32 %v2850, %v2875
      %2877 = vmatmul.f32.gmra.mxu0 %v2803
      %v2878 = vpop.f32.mrf.mxu0
      %v2879 = vadd.f32 %v2850, %v2878
      %2880 = vmatmul.f32.gmra.mxu0 %v2804
      %v2881 = vpop.f32.mrf.mxu0
      %v2882 = vadd.f32 %v2850, %v2881
      %2883 = vmatmul.f32.gmra.mxu0 %v2805
      %v2884 = vpop.f32.mrf.mxu0
      %v2885 = vadd.f32 %v2850, %v2884
      %2886 = vmatmul.f32.gmra.mxu0 %v2806
      %v2887 = vpop.f32.mrf.mxu0
      %v2888 = vadd.f32 %v2850, %v2887
      %2889 = vmatmul.f32.gmra.mxu0 %v2807
      %v2890 = vpop.f32.mrf.mxu0
      %v2891 = vadd.f32 %v2850, %v2890
      %2892 = vmatmul.f32.gmra.mxu0 %v2808
      %v2893 = vpop.f32.mrf.mxu0
      %v2894 = vadd.f32 %v2850, %v2893
      %2895 = vmatmul.f32.gmra.mxu0 %v2809
      %v2896 = vpop.f32.mrf.mxu0
      %v2897 = vadd.f32 %v2850, %v2896
      %2898 = vmatmul.f32.gmra.mxu0 %v2810
      %v2899 = vpop.f32.mrf.mxu0
      %v2900 = vadd.f32 %v2850, %v2899
      %2901 = vmatmul.f32.gmra.mxu0 %v2811
      %v2902 = vpop.f32.mrf.mxu0
      %v2903 = vadd.f32 %v2850, %v2902
      %2904 = vmatmul.f32.gmra.mxu0 %v2812
      %v2905 = vpop.f32.mrf.mxu0
      %v2906 = vadd.f32 %v2850, %v2905
      %2907 = vmatmul.f32.gmra.mxu0 %v2813
      %v2908 = vpop.f32.mrf.mxu0
      %v2909 = vadd.f32 %v2850, %v2908
      %2910 = vmatmul.f32.gmra.mxu0 %v2814
      %v2911 = vpop.f32.mrf.mxu0
      %v2912 = vadd.f32 %v2850, %v2911
      %2913 = vmatmul.f32.gmra.mxu0 %v2815
      %v2914 = vpop.f32.mrf.mxu0
      %v2915 = vadd.f32 %v2850, %v2914
      %2916 = vmatmul.f32.gmra.mxu0 %v2816
      %v2917 = vpop.f32.mrf.mxu0
      %v2918 = vadd.f32 %v2850, %v2917
      %2919 = vmatmul.f32.gmra.mxu0 %v2817
      %v2920 = vpop.f32.mrf.mxu0
      %v2921 = vadd.f32 %v2850, %v2920
      %2922 = vmatmul.f32.gmra.mxu0 %v2818
      %v2923 = vpop.f32.mrf.mxu0
      %v2924 = vadd.f32 %v2850, %v2923
      %2925 = vmatmul.f32.gmra.mxu0 %v2819
      %v2926 = vpop.f32.mrf.mxu0
      %v2927 = vadd.f32 %v2850, %v2926
      %2928 = vmatmul.f32.gmra.mxu0 %v2820
      %v2929 = vpop.f32.mrf.mxu0
      %v2930 = vadd.f32 %v2850, %v2929
      %2931 = vmatmul.f32.gmra.mxu0 %v2821
      %v2932 = vpop.f32.mrf.mxu0
      %v2933 = vadd.f32 %v2850, %v2932
      %2934 = vmatmul.f32.gmra.mxu0 %v2822
      %v2935 = vpop.f32.mrf.mxu0
      %v2936 = vadd.f32 %v2850, %v2935
      %2937 = vmatmul.f32.gmra.mxu0 %v2823
      %v2938 = vpop.f32.mrf.mxu0
      %v2939 = vadd.f32 %v2850, %v2938
      %2940 = vmatmul.f32.gmra.mxu0 %v2824
      %v2941 = vpop.f32.mrf.mxu0
      %v2942 = vadd.f32 %v2850, %v2941
      %2943 = vmatmul.f32.gmra.mxu0 %v2825
      %v2944 = vpop.f32.mrf.mxu0
      %v2945 = vadd.f32 %v2850, %v2944
      %2946 = vmatmul.f32.gmra.mxu0 %v2826
      %v2947 = vpop.f32.mrf.mxu0
      %v2948 = vadd.f32 %v2850, %v2947
      %2949 = vmatmul.f32.gmra.mxu0 %v2827
      %v2950 = vpop.f32.mrf.mxu0
      %v2951 = vadd.f32 %v2850, %v2950
      %2952 = vmatmul.f32.gmra.mxu0 %v2828
      %v2953 = vpop.f32.mrf.mxu0
      %v2954 = vadd.f32 %v2850, %v2953
      %2955 = vmatmul.f32.gmra.mxu0 %v2829
      %v2956 = vpop.f32.mrf.mxu0
      %v2957 = vadd.f32 %v2850, %v2956
      %2958 = vmatmul.f32.gmra.mxu0 %v2830
      %v2959 = vpop.f32.mrf.mxu0
      %v2960 = vadd.f32 %v2850, %v2959
      %2961 = vmatmul.f32.gmra.mxu0 %v2831
      %v2962 = vpop.f32.mrf.mxu0
      %v2963 = vadd.f32 %v2850, %v2962
      %2964 = vdwg.mxu0
      %v2965 = vld [vmem:[%s11] sm:$0xff]
      %v2966 = vld [vmem:[%s11 + $0x8] sm:$0xff]
      %v2967 = vld [vmem:[%s11 + $0x10] sm:$0xff]
      %v2968 = vld [vmem:[%s11 + $0x18] sm:$0xff]
      %v2969 = vld [vmem:[%s11 + $0x20] sm:$0xff]
      %v2970 = vld [vmem:[%s11 + $0x28] sm:$0xff]
      %v2971 = vld [vmem:[%s11 + $0x30] sm:$0xff]
      %v2972 = vld [vmem:[%s11 + $0x38] sm:$0xff]
      %v2973 = vld [vmem:[%s11 + $0x40] sm:$0xff]
      %v2974 = vld [vmem:[%s11 + $0x48] sm:$0xff]
      %v2975 = vld [vmem:[%s11 + $0x50] sm:$0xff]
      %v2976 = vld [vmem:[%s11 + $0x58] sm:$0xff]
      %v2977 = vld [vmem:[%s11 + $0x60] sm:$0xff]
      %v2978 = vld [vmem:[%s11 + $0x68] sm:$0xff]
      %v2979 = vld [vmem:[%s11 + $0x70] sm:$0xff]
      %v2980 = vld [vmem:[%s11 + $0x78] sm:$0xff]
      %v2981 = vld [vmem:[%s12] sm:$0x1]
      %v2983 = vperm.slane %v2981, 0
      %2985 = vmatpush.msra.mxu0 %v2980
      %2986 = vmatpush.msra.mxu0 %v2979
      %2987 = vmatpush.msra.mxu0 %v2978
      %2988 = vmatpush.msra.mxu0 %v2977
      %2989 = vmatpush.msra.mxu0 %v2976
      %2990 = vmatpush.msra.mxu0 %v2975
      %2991 = vmatpush.msra.mxu0 %v2974
      %2992 = vmatpush.msra.mxu0 %v2973
      %2993 = vmatpush.msra.mxu0 %v2972
      %2994 = vmatpush.msra.mxu0 %v2971
      %2995 = vmatpush.msra.mxu0 %v2970
      %2996 = vmatpush.msra.mxu0 %v2969
      %2997 = vmatpush.msra.mxu0 %v2968
      %2998 = vmatpush.msra.mxu0 %v2967
      %2999 = vmatpush.msra.mxu0 %v2966
      %3000 = vmatpush.msra.mxu0 %v2965
      %3001 = vmatmul.f32.gmra.mxu0 %v441
      %v3002 = vpop.f32.mrf.mxu0
      %v3003 = vadd.f32 %v2983, %v3002
      %3004 = vmatmul.f32.gmra.mxu0 %v442
      %v3005 = vpop.f32.mrf.mxu0
      %v3006 = vadd.f32 %v2983, %v3005
      %3007 = vmatmul.f32.gmra.mxu0 %v443
      %v3008 = vpop.f32.mrf.mxu0
      %v3009 = vadd.f32 %v2983, %v3008
      %3010 = vmatmul.f32.gmra.mxu0 %v444
      %v3011 = vpop.f32.mrf.mxu0
      %v3012 = vadd.f32 %v2983, %v3011
      %3013 = vmatmul.f32.gmra.mxu0 %v445
      %v3014 = vpop.f32.mrf.mxu0
      %v3015 = vadd.f32 %v2983, %v3014
      %3016 = vmatmul.f32.gmra.mxu0 %v446
      %v3017 = vpop.f32.mrf.mxu0
      %v3018 = vadd.f32 %v2983, %v3017
      %3019 = vmatmul.f32.gmra.mxu0 %v447
      %v3020 = vpop.f32.mrf.mxu0
      %v3021 = vadd.f32 %v2983, %v3020
      %3022 = vmatmul.f32.gmra.mxu0 %v448
      %v3023 = vpop.f32.mrf.mxu0
      %v3024 = vadd.f32 %v2983, %v3023
      %3025 = vmatmul.f32.gmra.mxu0 %v449
      %v3026 = vpop.f32.mrf.mxu0
      %v3027 = vadd.f32 %v2983, %v3026
      %3028 = vmatmul.f32.gmra.mxu0 %v450
      %v3029 = vpop.f32.mrf.mxu0
      %v3030 = vadd.f32 %v2983, %v3029
      %3031 = vmatmul.f32.gmra.mxu0 %v451
      %v3032 = vpop.f32.mrf.mxu0
      %v3033 = vadd.f32 %v2983, %v3032
      %3034 = vmatmul.f32.gmra.mxu0 %v452
      %v3035 = vpop.f32.mrf.mxu0
      %v3036 = vadd.f32 %v2983, %v3035
      %3037 = vmatmul.f32.gmra.mxu0 %v453
      %v3038 = vpop.f32.mrf.mxu0
      %v3039 = vadd.f32 %v2983, %v3038
      %3040 = vmatmul.f32.gmra.mxu0 %v454
      %v3041 = vpop.f32.mrf.mxu0
      %v3042 = vadd.f32 %v2983, %v3041
      %3043 = vmatmul.f32.gmra.mxu0 %v455
      %v3044 = vpop.f32.mrf.mxu0
      %v3045 = vadd.f32 %v2983, %v3044
      %3046 = vmatmul.f32.gmra.mxu0 %v456
      %v3047 = vpop.f32.mrf.mxu0
      %v3048 = vadd.f32 %v2983, %v3047
      %3049 = vmatmul.f32.gmra.mxu0 %v457
      %v3050 = vpop.f32.mrf.mxu0
      %v3051 = vadd.f32 %v2983, %v3050
      %3052 = vmatmul.f32.gmra.mxu0 %v458
      %v3053 = vpop.f32.mrf.mxu0
      %v3054 = vadd.f32 %v2983, %v3053
      %3055 = vmatmul.f32.gmra.mxu0 %v459
      %v3056 = vpop.f32.mrf.mxu0
      %v3057 = vadd.f32 %v2983, %v3056
      %3058 = vmatmul.f32.gmra.mxu0 %v460
      %v3059 = vpop.f32.mrf.mxu0
      %v3060 = vadd.f32 %v2983, %v3059
      %3061 = vmatmul.f32.gmra.mxu0 %v461
      %v3062 = vpop.f32.mrf.mxu0
      %v3063 = vadd.f32 %v2983, %v3062
      %3064 = vmatmul.f32.gmra.mxu0 %v462
      %v3065 = vpop.f32.mrf.mxu0
      %v3066 = vadd.f32 %v2983, %v3065
      %3067 = vmatmul.f32.gmra.mxu0 %v463
      %v3068 = vpop.f32.mrf.mxu0
      %v3069 = vadd.f32 %v2983, %v3068
      %3070 = vmatmul.f32.gmra.mxu0 %v464
      %v3071 = vpop.f32.mrf.mxu0
      %v3072 = vadd.f32 %v2983, %v3071
      %3073 = vmatmul.f32.gmra.mxu0 %v465
      %v3074 = vpop.f32.mrf.mxu0
      %v3075 = vadd.f32 %v2983, %v3074
      %3076 = vmatmul.f32.gmra.mxu0 %v466
      %v3077 = vpop.f32.mrf.mxu0
      %v3078 = vadd.f32 %v2983, %v3077
      %3079 = vmatmul.f32.gmra.mxu0 %v467
      %v3080 = vpop.f32.mrf.mxu0
      %v3081 = vadd.f32 %v2983, %v3080
      %3082 = vmatmul.f32.gmra.mxu0 %v468
      %v3083 = vpop.f32.mrf.mxu0
      %v3084 = vadd.f32 %v2983, %v3083
      %3085 = vmatmul.f32.gmra.mxu0 %v469
      %v3086 = vpop.f32.mrf.mxu0
      %v3087 = vadd.f32 %v2983, %v3086
      %3088 = vmatmul.f32.gmra.mxu0 %v470
      %v3089 = vpop.f32.mrf.mxu0
      %v3090 = vadd.f32 %v2983, %v3089
      %3091 = vmatmul.f32.gmra.mxu0 %v471
      %v3092 = vpop.f32.mrf.mxu0
      %v3093 = vadd.f32 %v2983, %v3092
      %3094 = vmatmul.f32.gmra.mxu0 %v472
      %v3095 = vpop.f32.mrf.mxu0
      %v3096 = vadd.f32 %v2983, %v3095
      %3097 = vdwg.mxu0
      %v3098 = vmax.f32 %v3003, 0.0
      %v3099 = vmax.f32 %v3006, 0.0
      %v3100 = vmax.f32 %v3009, 0.0
      %v3101 = vmax.f32 %v3012, 0.0
      %v3102 = vmax.f32 %v3015, 0.0
      %v3103 = vmax.f32 %v3018, 0.0
      %v3104 = vmax.f32 %v3021, 0.0
      %v3105 = vmax.f32 %v3024, 0.0
      %v3106 = vmax.f32 %v3027, 0.0
      %v3107 = vmax.f32 %v3030, 0.0
      %v3108 = vmax.f32 %v3033, 0.0
      %v3109 = vmax.f32 %v3036, 0.0
      %v3110 = vmax.f32 %v3039, 0.0
      %v3111 = vmax.f32 %v3042, 0.0
      %v3112 = vmax.f32 %v3045, 0.0
      %v3113 = vmax.f32 %v3048, 0.0
      %v3114 = vmax.f32 %v3051, 0.0
      %v3115 = vmax.f32 %v3054, 0.0
      %v3116 = vmax.f32 %v3057, 0.0
      %v3117 = vmax.f32 %v3060, 0.0
      %v3118 = vmax.f32 %v3063, 0.0
      %v3119 = vmax.f32 %v3066, 0.0
      %v3120 = vmax.f32 %v3069, 0.0
      %v3121 = vmax.f32 %v3072, 0.0
      %v3122 = vmax.f32 %v3075, 0.0
      %v3123 = vmax.f32 %v3078, 0.0
      %v3124 = vmax.f32 %v3081, 0.0
      %v3125 = vmax.f32 %v3084, 0.0
      %v3126 = vmax.f32 %v3087, 0.0
      %v3127 = vmax.f32 %v3090, 0.0
      %v3128 = vmax.f32 %v3093, 0.0
      %v3129 = vmax.f32 %v3096, 0.0
      %v3130 = vadd.f32 %v2870, %v3098
      %v3131 = vadd.f32 %v2873, %v3099
      %v3132 = vadd.f32 %v2876, %v3100
      %v3133 = vadd.f32 %v2879, %v3101
      %v3134 = vadd.f32 %v2882, %v3102
      %v3135 = vadd.f32 %v2885, %v3103
      %v3136 = vadd.f32 %v2888, %v3104
      %v3137 = vadd.f32 %v2891, %v3105
      %v3138 = vadd.f32 %v2894, %v3106
      %v3139 = vadd.f32 %v2897, %v3107
      %v3140 = vadd.f32 %v2900, %v3108
      %v3141 = vadd.f32 %v2903, %v3109
      %v3142 = vadd.f32 %v2906, %v3110
      %v3143 = vadd.f32 %v2909, %v3111
      %v3144 = vadd.f32 %v2912, %v3112
      %v3145 = vadd.f32 %v2915, %v3113
      %v3146 = vadd.f32 %v2918, %v3114
      %v3147 = vadd.f32 %v2921, %v3115
      %v3148 = vadd.f32 %v2924, %v3116
      %v3149 = vadd.f32 %v2927, %v3117
      %v3150 = vadd.f32 %v2930, %v3118
      %v3151 = vadd.f32 %v2933, %v3119
      %v3152 = vadd.f32 %v2936, %v3120
      %v3153 = vadd.f32 %v2939, %v3121
      %v3154 = vadd.f32 %v2942, %v3122
      %v3155 = vadd.f32 %v2945, %v3123
      %v3156 = vadd.f32 %v2948, %v3124
      %v3157 = vadd.f32 %v2951, %v3125
      %v3158 = vadd.f32 %v2954, %v3126
      %v3159 = vadd.f32 %v2957, %v3127
      %v3160 = vadd.f32 %v2960, %v3128
      %v3161 = vadd.f32 %v2963, %v3129
      %3162 = vst [vmem:[%s440] sm:$0xff] %v3130
      %3163 = vst [vmem:[%s440 + $0x8] sm:$0xff] %v3131
      %3164 = vst [vmem:[%s440 + $0x10] sm:$0xff] %v3132
      %3165 = vst [vmem:[%s440 + $0x18] sm:$0xff] %v3133
      %3166 = vst [vmem:[%s440 + $0x20] sm:$0xff] %v3134
      %3167 = vst [vmem:[%s440 + $0x28] sm:$0xff] %v3135
      %3168 = vst [vmem:[%s440 + $0x30] sm:$0xff] %v3136
      %3169 = vst [vmem:[%s440 + $0x38] sm:$0xff] %v3137
      %3170 = vst [vmem:[%s440 + $0x40] sm:$0xff] %v3138
      %3171 = vst [vmem:[%s440 + $0x48] sm:$0xff] %v3139
      %3172 = vst [vmem:[%s440 + $0x50] sm:$0xff] %v3140
      %3173 = vst [vmem:[%s440 + $0x58] sm:$0xff] %v3141
      %3174 = vst [vmem:[%s440 + $0x60] sm:$0xff] %v3142
      %3175 = vst [vmem:[%s440 + $0x68] sm:$0xff] %v3143
      %3176 = vst [vmem:[%s440 + $0x70] sm:$0xff] %v3144
      %3177 = vst [vmem:[%s440 + $0x78] sm:$0xff] %v3145
      %3178 = vst [vmem:[%s440 + $0x80] sm:$0xff] %v3146
      %3179 = vst [vmem:[%s440 + $0x88] sm:$0xff] %v3147
      %3180 = vst [vmem:[%s440 + $0x90] sm:$0xff] %v3148
      %3181 = vst [vmem:[%s440 + $0x98] sm:$0xff] %v3149
      %3182 = vst [vmem:[%s440 + $0xa0] sm:$0xff] %v3150
      %3183 = vst [vmem:[%s440 + $0xa8] sm:$0xff] %v3151
      %3184 = vst [vmem:[%s440 + $0xb0] sm:$0xff] %v3152
      %3185 = vst [vmem:[%s440 + $0xb8] sm:$0xff] %v3153
      %3186 = vst [vmem:[%s440 + $0xc0] sm:$0xff] %v3154
      %3187 = vst [vmem:[%s440 + $0xc8] sm:$0xff] %v3155
      %3188 = vst [vmem:[%s440 + $0xd0] sm:$0xff] %v3156
      %3189 = vst [vmem:[%s440 + $0xd8] sm:$0xff] %v3157
      %3190 = vst [vmem:[%s440 + $0xe0] sm:$0xff] %v3158
      %3191 = vst [vmem:[%s440 + $0xe8] sm:$0xff] %v3159
      %3192 = vst [vmem:[%s440 + $0xf0] sm:$0xff] %v3160
      %3193 = vst [vmem:[%s440 + $0xf8] sm:$0xff] %v3161
      %p3194 = scmp.lt.s32.totalorder %s24, 1
      %s3195 = scalar_select %p3194, %s24, 1
      %s3196 = smul.addr %s3195, 32
      %s3197 = smul.addr %s3196, 8
      %s3198 = scalar_lea.vmem %s13, %s3197
      // Predicated region
      $region73: #{residual_forward.1} parent=71 // pred_check
        %p3199 = pneg %p320
      $region74: #{residual_forward.1} parent=71 // pred_check_branch
        %3201 = sbr.rel (%p3199) target = $region76
      $region75: #{residual_forward.1} parent=71 // pred_region
        _
      $region76: #{residual_forward.1} parent=71 // pred_fallthru
        _
    $region72: #{residual_forward.1} parent=5 // pred_fallthru
      _
    %p3202 = scmp.le.s32.totalorder 2, %s19
    // Predicated region
    $region77: #{residual_forward.1} parent=5 // pred_check
      %p3203 = pneg %p3202
    $region78: #{residual_forward.1} parent=5 // pred_check_branch
      %3205 = sbr.rel (%p3203) target = $region80
    $region79: #{residual_forward.1} parent=5 // pred_region
      %s3206 = ssub.s32 %s19, 2
      // Predicated region
      $region81: #{residual_forward.1} parent=79 // pred_check
        %p3207 = pneg %p326
      $region82: #{residual_forward.1} parent=79 // pred_check_branch
        %3209 = sbr.rel (%p3207) target = $region84
      $region83: #{residual_forward.1} parent=79 // pred_region
        %p3210 = scmp.lt.s32.totalorder %s25, 1
        %s3211 = scalar_select %p3210, %s25, 1
        %s3212 = smul.addr %s3211, 32
        %s3213 = smul.addr %s3212, 8
        %s3214 = scalar_lea.vmem %s13, %s3213
      $region84: #{residual_forward.1} parent=79 // pred_fallthru
        _
    $region80: #{residual_forward.1} parent=5 // pred_fallthru
      _
  $region6: #{residual_forward.1} parent=0 // loop_footer
    %s23 = sadd.s32 1, %s19
  $region7: #{residual_forward.1} parent=0 // loop_footer_branch
    %18 = sbr.rel target = $region3
  $region8: #{residual_forward.1} parent=0 // loop_exit
    _

</llo_original>
